<compile_context>
chip_gen: v7x
topology: tpu7x:2x2x1
jax: 0.10.0
libtpu: 0.0.40
codegen_flags: <defaults>
</compile_context>

<pallas_src>
import functools

import jax
import jax.numpy as jnp
from jax.experimental import pallas as pl
from jax.experimental.pallas import tpu as pltpu

LANES = 128


def _mish(z):
    # Mish with one transcendental:
    #   tanh(softplus(z)) = (e^2 + 2e) / (e^2 + 2e + 2),  e = exp(z)
    # Clamp the exponent so exp never overflows; for z > 20 the ratio is 1.0
    # to f32 precision so the result is z, matching the exact function.
    e = jnp.exp(jnp.minimum(z, 20.0))
    num = e * (e + 2.0)
    return z * num * pl.reciprocal(num + 2.0, approx=True)


def _csp2_kernel(x_ref, w1_ref, wb1_ref, wk_ref, wy2_ref, w3_ref, vec_ref,
                 out_ref, *, hh, ww, n_bneck, shortcut, p_out):
    S = hh * ww
    bf16 = jnp.bfloat16

    def mm(a, w):
        return jnp.dot(a, w, preferred_element_type=jnp.float32)

    x = x_ref[0]                                        # (S, P) bf16, channels-last

    # cv1: 1x1 conv (BN folded into weights/bias) + Mish
    x1 = _mish(mm(x, w1_ref[...]) + vec_ref[0:1, :])    # f32
    x1_b = x1.astype(bf16)

    # Spatial validity masks for the 3x3 conv edges, hoisted out of the loop.
    ridx = jax.lax.broadcasted_iota(jnp.int32, (S, 1), 0)
    col = ridx % ww
    m_xm1 = col >= 1                 # x-1 in range
    m_xp1 = col < (ww - 1)           # x+1 in range
    m_ym1 = ridx >= ww               # y-1 in range
    m_yp1 = ridx < (S - ww)          # y+1 in range

    t, t_b = x1, x1_b
    for j in range(n_bneck):
        bb1 = vec_ref[5 + 2 * j:6 + 2 * j, :]
        bb2 = vec_ref[6 + 2 * j:7 + 2 * j, :]

        # Bottleneck cv1: 1x1 + BN + Mish
        h = _mish(mm(t_b, wb1_ref[j]) + bb1)

        # Bottleneck cv2: 3x3 (pad=1) + BN + Mish, as 3 matmuls with K = 3P.
        # Lane-pack the dx = -1 / 0 / +1 taps (roll is XLU, masks hoisted).
        h_xm1 = jnp.where(m_xm1, pltpu.roll(h, 1, axis=0), 0.0)       # h[y, x-1]
        h_xp1 = jnp.where(m_xp1, pltpu.roll(h, S - 1, axis=0), 0.0)   # h[y, x+1]
        hcat = jnp.concatenate(
            [h_xm1.astype(bf16), h.astype(bf16), h_xp1.astype(bf16)], axis=-1)

        p_ym1 = mm(hcat, wk_ref[3 * j + 0])     # dy = -1 taps
        acc = mm(hcat, wk_ref[3 * j + 1])       # dy =  0 taps (accumulator init)
        p_yp1 = mm(hcat, wk_ref[3 * j + 2])     # dy = +1 taps
        # out[r] += p_ym1[r - ww] (valid r >= ww) + p_yp1[r + ww] (valid r < S-ww)
        acc = acc + jnp.where(m_ym1, pltpu.roll(p_ym1, ww, axis=0), 0.0)
        acc = acc + jnp.where(m_yp1, pltpu.roll(p_yp1, S - ww, axis=0), 0.0)

        u = _mish(acc + bb2)
        t = t + u if shortcut else u
        t_b = t.astype(bf16)

    # BN over the (virtual) torch.cat, applied per half, then Mish.
    # First half acts on y1 directly; second half's scale is folded into cv2's
    # weight so only its bias appears here.
    a1 = _mish(t * vec_ref[1:2, :] + vec_ref[2:3, :])
    a2 = _mish(mm(x1_b, wy2_ref[...]) + vec_ref[3:4, :])

    # cv3 over the cat as a single K = 2P matmul (BN folded) + Mish.
    acat = jnp.concatenate([a1.astype(bf16), a2.astype(bf16)], axis=-1)
    out_ref[0] = _mish(mm(acat, w3_ref[...]) + vec_ref[4:5, :p_out])


def _fold_bn(bn, eps):
    g, b, m, v = bn
    s = g / jnp.sqrt(v + eps)
    return s, b - m * s


def _pad_mat(m, rows, cols):
    ci, co = m.shape
    out = jnp.zeros((rows, cols), jnp.float32)
    return out.at[:ci, :co].set(m.astype(jnp.float32))


def bottleneck_csp2(x, params, *, n=1, shortcut=False, eps=1e-5):
    N, C1, H, W = x.shape
    c_ = params["w_cv1"].shape[0]
    c2 = params["w_cv3"].shape[0]
    S = H * W
    P = LANES * pl.cdiv(max(C1, c_, c2), LANES)
    Pout = LANES * pl.cdiv(c2, LANES)
    bf16 = jnp.bfloat16

    # ---- fold BatchNorm (running stats) into weight scales / bias rows ----
    s1, b1 = _fold_bn(params["bn_cv1"], eps)
    w1 = params["w_cv1"][:, :, 0, 0].T * s1[None, :]                  # (C1, c_)

    wb1_list, wk_list, bneck_biases = [], [], []
    for j in range(n):
        sj1, bj1 = _fold_bn(params["bnb1"][j], eps)
        wb1_list.append(params["wb1"][j][:, :, 0, 0].T * sj1[None, :])
        sj2, bj2 = _fold_bn(params["bnb2"][j], eps)
        w3x3 = params["wb2"][j]                                       # (c_, c_, 3, 3)
        for kh in range(3):                                           # dy = kh - 1
            taps = [_pad_mat(w3x3[:, :, kh, kw].T * sj2[None, :], P, P)
                    for kw in range(3)]                               # dx = kw - 1
            wk_list.append(jnp.concatenate(taps, axis=0))             # (3P, P)
        bneck_biases.append((bj1, bj2))

    s_cat, b_cat = _fold_bn(params["bn_cat"], eps)
    s_a, b_a = s_cat[:c_], b_cat[:c_]
    s_b, b_b = s_cat[c_:], b_cat[c_:]
    wy2 = params["w_cv2"][:, :, 0, 0].T * s_b[None, :]                # (c_, c_)

    s3, b3 = _fold_bn(params["bn_cv3"], eps)
    w3 = params["w_cv3"][:, :, 0, 0].T * s3[None, :]                  # (2c_, c2)
    w3a, w3b = w3[:c_, :], w3[c_:, :]

    # ---- pad to lane-dense layouts; matmul operands in bf16 ----------------
    W1p = _pad_mat(w1, P, P).astype(bf16)
    Wb1p = jnp.stack([_pad_mat(m, P, P) for m in wb1_list]).astype(bf16)   # (n,P,P)
    Wkp = jnp.stack(wk_list).astype(bf16)                                  # (3n,3P,P)
    Wy2p = _pad_mat(wy2, P, P).astype(bf16)
    W3p = jnp.concatenate([_pad_mat(w3a, P, Pout),
                           _pad_mat(w3b, P, Pout)], axis=0).astype(bf16)   # (2P,Pout)

    n_rows = 5 + 2 * n
    R = 8 * pl.cdiv(n_rows, 8)
    rows = [b1, s_a, b_a, b_b, b3]
    for bj1, bj2 in bneck_biases:
        rows += [bj1, bj2]
    vec = jnp.zeros((R, P), jnp.float32)
    for i, r in enumerate(rows):
        vec = vec.at[i, :r.shape[0]].set(r.astype(jnp.float32))

    # ---- channels-last, lane-padded, bf16 input -----------------------------
    x_cl = jnp.transpose(x, (0, 2, 3, 1)).reshape(N, S, C1)
    x_pad = jnp.pad(x_cl, ((0, 0), (0, 0), (0, P - C1))).astype(bf16)

    kernel = functools.partial(_csp2_kernel, hh=H, ww=W, n_bneck=n,
                               shortcut=bool(shortcut), p_out=Pout)

    # TODO(synk): for very large feature maps (many (S,P) intermediates beyond
    # the v7x 64 MiB VMEM) add a halo'd spatial row-tile grid axis; at YOLO
    # head sizes whole-image blocks fit, so it is omitted here.
    out = pl.pallas_call(
        kernel,
        out_shape=jax.ShapeDtypeStruct((N, S, Pout), jnp.float32),
        grid_spec=pltpu.PrefetchScalarGridSpec(
            num_scalar_prefetch=0,
            grid=(N,),
            in_specs=[
                pl.BlockSpec((1, S, P), lambda b: (b, 0, 0)),           # x
                pl.BlockSpec((P, P), lambda b: (0, 0)),                 # cv1
                pl.BlockSpec((n, P, P), lambda b: (0, 0, 0)),           # bneck cv1
                pl.BlockSpec((3 * n, 3 * P, P), lambda b: (0, 0, 0)),   # bneck cv2
                pl.BlockSpec((P, P), lambda b: (0, 0)),                 # cv2 (plain)
                pl.BlockSpec((2 * P, Pout), lambda b: (0, 0)),          # cv3 (fused)
                pl.BlockSpec((R, P), lambda b: (0, 0)),                 # bias rows
            ],
            out_specs=pl.BlockSpec((1, S, Pout), lambda b: (b, 0, 0)),
        ),
        compiler_params=pltpu.CompilerParams(
            dimension_semantics=("parallel",),
            vmem_limit_bytes=64 * 1024 * 1024),
    )(x_pad, W1p, Wb1p, Wkp, Wy2p, W3p, vec)

    out = out[:, :, :c2].reshape(N, H, W, c2)
    return jnp.transpose(out, (0, 3, 1, 2))


# --------------------------- pure-JAX reference ------------------------------
def _ref_forward(x, params, *, n=1, shortcut=False, eps=1e-5):
    prec = jax.lax.Precision.HIGHEST

    def conv(z, w, pad):
        return jax.lax.conv_general_dilated(
            z, w, (1, 1), ((pad, pad), (pad, pad)),
            dimension_numbers=("NCHW", "OIHW", "NCHW"), precision=prec)

    def bn(z, p):
        g, b, m, v = p
        inv = g / jnp.sqrt(v + eps)
        return (z - m[None, :, None, None]) * inv[None, :, None, None] \
            + b[None, :, None, None]

    def mish(z):
        return z * jnp.tanh(jax.nn.softplus(z))

    x1 = mish(bn(conv(x, params["w_cv1"], 0), params["bn_cv1"]))
    t = x1
    for j in range(n):
        h = mish(bn(conv(t, params["wb1"][j], 0), params["bnb1"][j]))
        u = mish(bn(conv(h, params["wb2"][j], 1), params["bnb2"][j]))
        t = t + u if shortcut else u
    y2 = conv(x1, params["w_cv2"], 0)
    cat = jnp.concatenate([t, y2], axis=1)
    z = mish(bn(cat, params["bn_cat"]))
    return mish(bn(conv(z, params["w_cv3"], 0), params["bn_cv3"]))


if __name__ == "__main__":
    key = jax.random.PRNGKey(0)
    N, C1, H, W = 2, 4, 16, 16
    c2 = 4
    c_ = c2
    n = 1
    shortcut = False

    def bn_params(k, c):
        k1, k2, k3, k4 = jax.random.split(k, 4)
        gamma = 1.0 + 0.1 * jax.random.normal(k1, (c,), jnp.float32)
        beta = 0.1 * jax.random.normal(k2, (c,), jnp.float32)
        mean = 0.1 * jax.random.normal(k3, (c,), jnp.float32)
        var = jax.random.uniform(k4, (c,), jnp.float32, 0.5, 1.5)
        return (gamma, beta, mean, var)

    ks = jax.random.split(key, 12)
    params = {
        "w_cv1": 0.4 * jax.random.normal(ks[0], (c_, C1, 1, 1), jnp.float32),
        "bn_cv1": bn_params(ks[1], c_),
        "wb1": [0.4 * jax.random.normal(ks[2], (c_, c_, 1, 1), jnp.float32)],
        "bnb1": [bn_params(ks[3], c_)],
        "wb2": [0.2 * jax.random.normal(ks[4], (c_, c_, 3, 3), jnp.float32)],
        "bnb2": [bn_params(ks[5], c_)],
        "w_cv2": 0.4 * jax.random.normal(ks[6], (c_, c_, 1, 1), jnp.float32),
        "bn_cat": bn_params(ks[7], 2 * c_),
        "w_cv3": 0.4 * jax.random.normal(ks[8], (c2, 2 * c_, 1, 1), jnp.float32),
        "bn_cv3": bn_params(ks[9], c2),
    }
    x = jax.random.normal(ks[10], (N, C1, H, W), jnp.float32)

    out = bottleneck_csp2(x, params, n=n, shortcut=shortcut)
    out = jax.block_until_ready(out)

    ref = _ref_forward(x, params, n=n, shortcut=shortcut)
    assert out.shape == ref.shape, (out.shape, ref.shape)
    max_err = float(jnp.max(jnp.abs(out - ref)))
    scale = float(jnp.max(jnp.abs(ref)))
    # bf16 matmul operands (f32 accumulation) vs. an f32 HIGHEST-precision
    # reference -> relaxed, magnitude-normalized tolerance.
    assert max_err <= 3e-2 + 2e-2 * scale, (max_err, scale)
    print("KERNEL_OK")
</pallas_src>

<mosaic_0001>
module attributes {stable_mosaic.version = 11 : i64} {
  func.func @_csp2_kernel(%arg0: i32, %arg1: memref<1x256x128xbf16, #tpu.memory_space<vmem>>, %arg2: memref<128x128xbf16, #tpu.memory_space<vmem>>, %arg3: memref<1x128x128xbf16, #tpu.memory_space<vmem>>, %arg4: memref<3x384x128xbf16, #tpu.memory_space<vmem>>, %arg5: memref<128x128xbf16, #tpu.memory_space<vmem>>, %arg6: memref<256x128xbf16, #tpu.memory_space<vmem>>, %arg7: memref<8x128xf32, #tpu.memory_space<vmem>>, %arg8: memref<1x256x128xf32, #tpu.memory_space<vmem>>) attributes {dimension_semantics = [#tpu.dimension_semantics<parallel>], iteration_bounds = array<i64: 2>, scalar_prefetch = 0 : i64, scratch_operands = 0 : i64, tpu.core_type = #tpu.core_type<tc>, window_params = [{transform_indices = @transform_0, window_bounds = array<i64: 1, 256, 128>}, {pipeline_mode = #tpu.pipeline_mode<synchronous>, transform_indices = @transform_1, window_bounds = array<i64: 128, 128>}, {pipeline_mode = #tpu.pipeline_mode<synchronous>, transform_indices = @transform_2, window_bounds = array<i64: 1, 128, 128>}, {pipeline_mode = #tpu.pipeline_mode<synchronous>, transform_indices = @transform_3, window_bounds = array<i64: 3, 384, 128>}, {pipeline_mode = #tpu.pipeline_mode<synchronous>, transform_indices = @transform_4, window_bounds = array<i64: 128, 128>}, {pipeline_mode = #tpu.pipeline_mode<synchronous>, transform_indices = @transform_5, window_bounds = array<i64: 256, 128>}, {pipeline_mode = #tpu.pipeline_mode<synchronous>, transform_indices = @transform_6, window_bounds = array<i64: 8, 128>}, {transform_indices = @transform_7, window_bounds = array<i64: 1, 256, 128>}]} {
    %c0 = arith.constant 0 : index
    %c0_0 = arith.constant 0 : index
    %c0_1 = arith.constant 0 : index
    %0 = vector.load %arg1[%c0, %c0_0, %c0_1] : memref<1x256x128xbf16, #tpu.memory_space<vmem>>, vector<1x256x128xbf16>
    %1 = vector.shape_cast %0 : vector<1x256x128xbf16> to vector<256x128xbf16>
    %c0_2 = arith.constant 0 : index
    %c0_3 = arith.constant 0 : index
    %2 = vector.load %arg2[%c0_2, %c0_3] : memref<128x128xbf16, #tpu.memory_space<vmem>>, vector<128x128xbf16>
    %cst = arith.constant dense<0.000000e+00> : vector<256x128xf32>
    %3 = tpu.matmul %1, %2, %cst {dimension_numbers = #tpu.dot_dimension_numbers<[1], [0], [0], [1], [0, 0, 1, 1], [], []>} : vector<256x128xbf16>, vector<128x128xbf16>, vector<256x128xf32> -> vector<256x128xf32>
    %c0_4 = arith.constant 0 : index
    %c0_5 = arith.constant 0 : index
    %4 = vector.load %arg7[%c0_4, %c0_5] : memref<8x128xf32, #tpu.memory_space<vmem>>, vector<1x128xf32>
    %5 = vector.broadcast %4 : vector<1x128xf32> to vector<256x128xf32>
    %6 = arith.addf %3, %5 : vector<256x128xf32>
    %cst_6 = arith.constant 2.000000e+01 : f32
    %7 = vector.broadcast %cst_6 : f32 to vector<256x128xf32>
    %8 = arith.minimumf %6, %7 : vector<256x128xf32>
    %9 = math.exp %8 : vector<256x128xf32>
    %cst_7 = arith.constant 2.000000e+00 : f32
    %10 = vector.broadcast %cst_7 : f32 to vector<256x128xf32>
    %11 = arith.addf %9, %10 : vector<256x128xf32>
    %12 = arith.mulf %9, %11 : vector<256x128xf32>
    %13 = arith.mulf %6, %12 : vector<256x128xf32>
    %cst_8 = arith.constant 2.000000e+00 : f32
    %14 = vector.broadcast %cst_8 : f32 to vector<256x128xf32>
    %15 = arith.addf %12, %14 : vector<256x128xf32>
    %16 = tpu.reciprocal %15 {approx = true} : vector<256x128xf32> -> vector<256x128xf32>
    %17 = arith.mulf %13, %16 : vector<256x128xf32>
    %18 = arith.truncf %17 : vector<256x128xf32> to vector<256x128xbf16>
    %19 = tpu.iota {dimensions = array<i32: 0>} : vector<256x1xi32>
    %c16_i32 = arith.constant 16 : i32
    %c0_i32 = arith.constant 0 : i32
    %20 = arith.cmpi eq, %c16_i32, %c0_i32 : i32
    %c1_i32 = arith.constant 1 : i32
    %21 = arith.select %20, %c1_i32, %c16_i32 : i32
    %22 = vector.broadcast %21 : i32 to vector<256x1xi32>
    %23 = arith.remsi %19, %22 : vector<256x1xi32>
    %c0_i32_9 = arith.constant 0 : i32
    %24 = vector.broadcast %c0_i32_9 : i32 to vector<256x1xi32>
    %25 = arith.cmpi ne, %23, %24 : vector<256x1xi32>
    %c0_i32_10 = arith.constant 0 : i32
    %26 = vector.broadcast %c0_i32_10 : i32 to vector<256x1xi32>
    %27 = arith.cmpi slt, %23, %26 : vector<256x1xi32>
    %c0_i32_11 = arith.constant 0 : i32
    %28 = arith.cmpi slt, %21, %c0_i32_11 : i32
    %29 = vector.broadcast %28 : i1 to vector<256x1xi1>
    %30 = vector.broadcast %29 : vector<256x1xi1> to vector<256x1xi1>
    %31 = arith.xori %27, %30 : vector<256x1xi1>
    %32 = arith.andi %31, %25 : vector<256x1xi1>
    %33 = vector.broadcast %21 : i32 to vector<256x1xi32>
    %34 = arith.addi %23, %33 : vector<256x1xi32>
    %35 = arith.select %32, %34, %23 : vector<256x1xi1>, vector<256x1xi32>
    %c1_i32_12 = arith.constant 1 : i32
    %36 = vector.broadcast %c1_i32_12 : i32 to vector<256x1xi32>
    %37 = arith.cmpi sge, %35, %36 : vector<256x1xi32>
    %c15_i32 = arith.constant 15 : i32
    %38 = vector.broadcast %c15_i32 : i32 to vector<256x1xi32>
    %39 = arith.cmpi slt, %35, %38 : vector<256x1xi32>
    %c16_i32_13 = arith.constant 16 : i32
    %40 = vector.broadcast %c16_i32_13 : i32 to vector<256x1xi32>
    %41 = arith.cmpi sge, %19, %40 : vector<256x1xi32>
    %c240_i32 = arith.constant 240 : i32
    %42 = vector.broadcast %c240_i32 : i32 to vector<256x1xi32>
    %43 = arith.cmpi slt, %19, %42 : vector<256x1xi32>
    %c5 = arith.constant 5 : index
    %c0_14 = arith.constant 0 : index
    %44 = vector.load %arg7[%c5, %c0_14] : memref<8x128xf32, #tpu.memory_space<vmem>>, vector<1x128xf32>
    %c6 = arith.constant 6 : index
    %c0_15 = arith.constant 0 : index
    %45 = vector.load %arg7[%c6, %c0_15] : memref<8x128xf32, #tpu.memory_space<vmem>>, vector<1x128xf32>
    %c0_16 = arith.constant 0 : index
    %c0_17 = arith.constant 0 : index
    %c0_18 = arith.constant 0 : index
    %46 = vector.load %arg3[%c0_16, %c0_17, %c0_18] : memref<1x128x128xbf16, #tpu.memory_space<vmem>>, vector<1x128x128xbf16>
    %47 = vector.shape_cast %46 : vector<1x128x128xbf16> to vector<128x128xbf16>
    %cst_19 = arith.constant dense<0.000000e+00> : vector<256x128xf32>
    %48 = tpu.matmul %18, %47, %cst_19 {dimension_numbers = #tpu.dot_dimension_numbers<[1], [0], [0], [1], [0, 0, 1, 1], [], []>} : vector<256x128xbf16>, vector<128x128xbf16>, vector<256x128xf32> -> vector<256x128xf32>
    %49 = vector.broadcast %44 : vector<1x128xf32> to vector<256x128xf32>
    %50 = arith.addf %48, %49 : vector<256x128xf32>
    %cst_20 = arith.constant 2.000000e+01 : f32
    %51 = vector.broadcast %cst_20 : f32 to vector<256x128xf32>
    %52 = arith.minimumf %50, %51 : vector<256x128xf32>
    %53 = math.exp %52 : vector<256x128xf32>
    %cst_21 = arith.constant 2.000000e+00 : f32
    %54 = vector.broadcast %cst_21 : f32 to vector<256x128xf32>
    %55 = arith.addf %53, %54 : vector<256x128xf32>
    %56 = arith.mulf %53, %55 : vector<256x128xf32>
    %57 = arith.mulf %50, %56 : vector<256x128xf32>
    %cst_22 = arith.constant 2.000000e+00 : f32
    %58 = vector.broadcast %cst_22 : f32 to vector<256x128xf32>
    %59 = arith.addf %56, %58 : vector<256x128xf32>
    %60 = tpu.reciprocal %59 {approx = true} : vector<256x128xf32> -> vector<256x128xf32>
    %61 = arith.mulf %57, %60 : vector<256x128xf32>
    %c1_i32_23 = arith.constant 1 : i32
    %62 = tpu.dynamic_rotate %61 by %c1_i32_23 dim 0 : vector<256x128xf32>, i32 -> vector<256x128xf32>
    %cst_24 = arith.constant 0.000000e+00 : f32
    %63 = vector.shape_cast %37 : vector<256x1xi1> to vector<256x1xi1>
    %64 = vector.broadcast %63 : vector<256x1xi1> to vector<256x128xi1>
    %65 = vector.broadcast %cst_24 : f32 to vector<256x128xf32>
    %66 = arith.select %64, %62, %65 : vector<256x128xi1>, vector<256x128xf32>
    %c255_i32 = arith.constant 255 : i32
    %67 = tpu.dynamic_rotate %61 by %c255_i32 dim 0 : vector<256x128xf32>, i32 -> vector<256x128xf32>
    %cst_25 = arith.constant 0.000000e+00 : f32
    %68 = vector.shape_cast %39 : vector<256x1xi1> to vector<256x1xi1>
    %69 = vector.broadcast %68 : vector<256x1xi1> to vector<256x128xi1>
    %70 = vector.broadcast %cst_25 : f32 to vector<256x128xf32>
    %71 = arith.select %69, %67, %70 : vector<256x128xi1>, vector<256x128xf32>
    %72 = arith.truncf %66 : vector<256x128xf32> to vector<256x128xbf16>
    %73 = arith.truncf %61 : vector<256x128xf32> to vector<256x128xbf16>
    %74 = arith.truncf %71 : vector<256x128xf32> to vector<256x128xbf16>
    %75 = tpu.concatenate %72, %73, %74 in 1 : vector<256x128xbf16>, vector<256x128xbf16>, vector<256x128xbf16> -> vector<256x384xbf16>
    %c0_26 = arith.constant 0 : index
    %c0_27 = arith.constant 0 : index
    %c0_28 = arith.constant 0 : index
    %76 = vector.load %arg4[%c0_26, %c0_27, %c0_28] : memref<3x384x128xbf16, #tpu.memory_space<vmem>>, vector<1x384x128xbf16>
    %77 = vector.shape_cast %76 : vector<1x384x128xbf16> to vector<384x128xbf16>
    %cst_29 = arith.constant dense<0.000000e+00> : vector<256x128xf32>
    %78 = tpu.matmul %75, %77, %cst_29 {dimension_numbers = #tpu.dot_dimension_numbers<[1], [0], [0], [1], [0, 0, 1, 1], [], []>} : vector<256x384xbf16>, vector<384x128xbf16>, vector<256x128xf32> -> vector<256x128xf32>
    %c1 = arith.constant 1 : index
    %c0_30 = arith.constant 0 : index
    %c0_31 = arith.constant 0 : index
    %79 = vector.load %arg4[%c1, %c0_30, %c0_31] : memref<3x384x128xbf16, #tpu.memory_space<vmem>>, vector<1x384x128xbf16>
    %80 = vector.shape_cast %79 : vector<1x384x128xbf16> to vector<384x128xbf16>
    %cst_32 = arith.constant dense<0.000000e+00> : vector<256x128xf32>
    %81 = tpu.matmul %75, %80, %cst_32 {dimension_numbers = #tpu.dot_dimension_numbers<[1], [0], [0], [1], [0, 0, 1, 1], [], []>} : vector<256x384xbf16>, vector<384x128xbf16>, vector<256x128xf32> -> vector<256x128xf32>
    %c2 = arith.constant 2 : index
    %c0_33 = arith.constant 0 : index
    %c0_34 = arith.constant 0 : index
    %82 = vector.load %arg4[%c2, %c0_33, %c0_34] : memref<3x384x128xbf16, #tpu.memory_space<vmem>>, vector<1x384x128xbf16>
    %83 = vector.shape_cast %82 : vector<1x384x128xbf16> to vector<384x128xbf16>
    %cst_35 = arith.constant dense<0.000000e+00> : vector<256x128xf32>
    %84 = tpu.matmul %75, %83, %cst_35 {dimension_numbers = #tpu.dot_dimension_numbers<[1], [0], [0], [1], [0, 0, 1, 1], [], []>} : vector<256x384xbf16>, vector<384x128xbf16>, vector<256x128xf32> -> vector<256x128xf32>
    %c16_i32_36 = arith.constant 16 : i32
    %85 = tpu.dynamic_rotate %78 by %c16_i32_36 dim 0 : vector<256x128xf32>, i32 -> vector<256x128xf32>
    %cst_37 = arith.constant 0.000000e+00 : f32
    %86 = vector.shape_cast %41 : vector<256x1xi1> to vector<256x1xi1>
    %87 = vector.broadcast %86 : vector<256x1xi1> to vector<256x128xi1>
    %88 = vector.broadcast %cst_37 : f32 to vector<256x128xf32>
    %89 = arith.select %87, %85, %88 : vector<256x128xi1>, vector<256x128xf32>
    %90 = arith.addf %81, %89 : vector<256x128xf32>
    %c240_i32_38 = arith.constant 240 : i32
    %91 = tpu.dynamic_rotate %84 by %c240_i32_38 dim 0 : vector<256x128xf32>, i32 -> vector<256x128xf32>
    %cst_39 = arith.constant 0.000000e+00 : f32
    %92 = vector.shape_cast %43 : vector<256x1xi1> to vector<256x1xi1>
    %93 = vector.broadcast %92 : vector<256x1xi1> to vector<256x128xi1>
    %94 = vector.broadcast %cst_39 : f32 to vector<256x128xf32>
    %95 = arith.select %93, %91, %94 : vector<256x128xi1>, vector<256x128xf32>
    %96 = arith.addf %90, %95 : vector<256x128xf32>
    %97 = vector.broadcast %45 : vector<1x128xf32> to vector<256x128xf32>
    %98 = arith.addf %96, %97 : vector<256x128xf32>
    %cst_40 = arith.constant 2.000000e+01 : f32
    %99 = vector.broadcast %cst_40 : f32 to vector<256x128xf32>
    %100 = arith.minimumf %98, %99 : vector<256x128xf32>
    %101 = math.exp %100 : vector<256x128xf32>
    %cst_41 = arith.constant 2.000000e+00 : f32
    %102 = vector.broadcast %cst_41 : f32 to vector<256x128xf32>
    %103 = arith.addf %101, %102 : vector<256x128xf32>
    %104 = arith.mulf %101, %103 : vector<256x128xf32>
    %105 = arith.mulf %98, %104 : vector<256x128xf32>
    %cst_42 = arith.constant 2.000000e+00 : f32
    %106 = vector.broadcast %cst_42 : f32 to vector<256x128xf32>
    %107 = arith.addf %104, %106 : vector<256x128xf32>
    %108 = tpu.reciprocal %107 {approx = true} : vector<256x128xf32> -> vector<256x128xf32>
    %109 = arith.mulf %105, %108 : vector<256x128xf32>
    %c1_43 = arith.constant 1 : index
    %c0_44 = arith.constant 0 : index
    %110 = vector.load %arg7[%c1_43, %c0_44] : memref<8x128xf32, #tpu.memory_space<vmem>>, vector<1x128xf32>
    %111 = vector.broadcast %110 : vector<1x128xf32> to vector<256x128xf32>
    %112 = arith.mulf %109, %111 : vector<256x128xf32>
    %c2_45 = arith.constant 2 : index
    %c0_46 = arith.constant 0 : index
    %113 = vector.load %arg7[%c2_45, %c0_46] : memref<8x128xf32, #tpu.memory_space<vmem>>, vector<1x128xf32>
    %114 = vector.broadcast %113 : vector<1x128xf32> to vector<256x128xf32>
    %115 = arith.addf %112, %114 : vector<256x128xf32>
    %cst_47 = arith.constant 2.000000e+01 : f32
    %116 = vector.broadcast %cst_47 : f32 to vector<256x128xf32>
    %117 = arith.minimumf %115, %116 : vector<256x128xf32>
    %118 = math.exp %117 : vector<256x128xf32>
    %cst_48 = arith.constant 2.000000e+00 : f32
    %119 = vector.broadcast %cst_48 : f32 to vector<256x128xf32>
    %120 = arith.addf %118, %119 : vector<256x128xf32>
    %121 = arith.mulf %118, %120 : vector<256x128xf32>
    %122 = arith.mulf %115, %121 : vector<256x128xf32>
    %cst_49 = arith.constant 2.000000e+00 : f32
    %123 = vector.broadcast %cst_49 : f32 to vector<256x128xf32>
    %124 = arith.addf %121, %123 : vector<256x128xf32>
    %125 = tpu.reciprocal %124 {approx = true} : vector<256x128xf32> -> vector<256x128xf32>
    %126 = arith.mulf %122, %125 : vector<256x128xf32>
    %c0_50 = arith.constant 0 : index
    %c0_51 = arith.constant 0 : index
    %127 = vector.load %arg5[%c0_50, %c0_51] : memref<128x128xbf16, #tpu.memory_space<vmem>>, vector<128x128xbf16>
    %cst_52 = arith.constant dense<0.000000e+00> : vector<256x128xf32>
    %128 = tpu.matmul %18, %127, %cst_52 {dimension_numbers = #tpu.dot_dimension_numbers<[1], [0], [0], [1], [0, 0, 1, 1], [], []>} : vector<256x128xbf16>, vector<128x128xbf16>, vector<256x128xf32> -> vector<256x128xf32>
    %c3 = arith.constant 3 : index
    %c0_53 = arith.constant 0 : index
    %129 = vector.load %arg7[%c3, %c0_53] : memref<8x128xf32, #tpu.memory_space<vmem>>, vector<1x128xf32>
    %130 = vector.broadcast %129 : vector<1x128xf32> to vector<256x128xf32>
    %131 = arith.addf %128, %130 : vector<256x128xf32>
    %cst_54 = arith.constant 2.000000e+01 : f32
    %132 = vector.broadcast %cst_54 : f32 to vector<256x128xf32>
    %133 = arith.minimumf %131, %132 : vector<256x128xf32>
    %134 = math.exp %133 : vector<256x128xf32>
    %cst_55 = arith.constant 2.000000e+00 : f32
    %135 = vector.broadcast %cst_55 : f32 to vector<256x128xf32>
    %136 = arith.addf %134, %135 : vector<256x128xf32>
    %137 = arith.mulf %134, %136 : vector<256x128xf32>
    %138 = arith.mulf %131, %137 : vector<256x128xf32>
    %cst_56 = arith.constant 2.000000e+00 : f32
    %139 = vector.broadcast %cst_56 : f32 to vector<256x128xf32>
    %140 = arith.addf %137, %139 : vector<256x128xf32>
    %141 = tpu.reciprocal %140 {approx = true} : vector<256x128xf32> -> vector<256x128xf32>
    %142 = arith.mulf %138, %141 : vector<256x128xf32>
    %143 = arith.truncf %126 : vector<256x128xf32> to vector<256x128xbf16>
    %144 = arith.truncf %142 : vector<256x128xf32> to vector<256x128xbf16>
    %145 = tpu.concatenate %143, %144 in 1 : vector<256x128xbf16>, vector<256x128xbf16> -> vector<256x256xbf16>
    %c0_57 = arith.constant 0 : index
    %c0_58 = arith.constant 0 : index
    %146 = vector.load %arg6[%c0_57, %c0_58] : memref<256x128xbf16, #tpu.memory_space<vmem>>, vector<256x128xbf16>
    %cst_59 = arith.constant dense<0.000000e+00> : vector<256x128xf32>
    %147 = tpu.matmul %145, %146, %cst_59 {dimension_numbers = #tpu.dot_dimension_numbers<[1], [0], [0], [1], [0, 0, 1, 1], [], []>} : vector<256x256xbf16>, vector<256x128xbf16>, vector<256x128xf32> -> vector<256x128xf32>
    %c4 = arith.constant 4 : index
    %c0_60 = arith.constant 0 : index
    %148 = vector.load %arg7[%c4, %c0_60] : memref<8x128xf32, #tpu.memory_space<vmem>>, vector<1x128xf32>
    %149 = vector.broadcast %148 : vector<1x128xf32> to vector<256x128xf32>
    %150 = arith.addf %147, %149 : vector<256x128xf32>
    %cst_61 = arith.constant 2.000000e+01 : f32
    %151 = vector.broadcast %cst_61 : f32 to vector<256x128xf32>
    %152 = arith.minimumf %150, %151 : vector<256x128xf32>
    %153 = math.exp %152 : vector<256x128xf32>
    %cst_62 = arith.constant 2.000000e+00 : f32
    %154 = vector.broadcast %cst_62 : f32 to vector<256x128xf32>
    %155 = arith.addf %153, %154 : vector<256x128xf32>
    %156 = arith.mulf %153, %155 : vector<256x128xf32>
    %157 = arith.mulf %150, %156 : vector<256x128xf32>
    %cst_63 = arith.constant 2.000000e+00 : f32
    %158 = vector.broadcast %cst_63 : f32 to vector<256x128xf32>
    %159 = arith.addf %156, %158 : vector<256x128xf32>
    %160 = tpu.reciprocal %159 {approx = true} : vector<256x128xf32> -> vector<256x128xf32>
    %161 = arith.mulf %157, %160 : vector<256x128xf32>
    %c0_64 = arith.constant 0 : index
    %c0_65 = arith.constant 0 : index
    %c0_66 = arith.constant 0 : index
    %162 = vector.load %arg8[%c0_64, %c0_65, %c0_66] : memref<1x256x128xf32, #tpu.memory_space<vmem>>, vector<1x256x128xf32>
    %163 = vector.shape_cast %162 : vector<1x256x128xf32> to vector<256x128xf32>
    %164 = vector.shape_cast %161 : vector<256x128xf32> to vector<1x256x128xf32>
    tpu.vector_store %arg8[%c0_64, %c0_65, %c0_66], %164 {strides = array<i32>} : memref<1x256x128xf32, #tpu.memory_space<vmem>>, vector<1x256x128xf32>,
    return
  }
  func.func @transform_0(%arg0: i32) -> (i32, i32, i32) {
    %c0_i32 = arith.constant 0 : i32
    %c0_i32_0 = arith.constant 0 : i32
    %c0_i32_1 = arith.constant 0 : i32
    return %arg0, %c0_i32, %c0_i32_0 : i32, i32, i32
  }
  func.func @transform_1(%arg0: i32) -> (i32, i32) {
    %c0_i32 = arith.constant 0 : i32
    %c0_i32_0 = arith.constant 0 : i32
    %c0_i32_1 = arith.constant 0 : i32
    return %c0_i32, %c0_i32_0 : i32, i32
  }
  func.func @transform_2(%arg0: i32) -> (i32, i32, i32) {
    %c0_i32 = arith.constant 0 : i32
    %c0_i32_0 = arith.constant 0 : i32
    %c0_i32_1 = arith.constant 0 : i32
    %c0_i32_2 = arith.constant 0 : i32
    return %c0_i32, %c0_i32_0, %c0_i32_1 : i32, i32, i32
  }
  func.func @transform_3(%arg0: i32) -> (i32, i32, i32) {
    %c0_i32 = arith.constant 0 : i32
    %c0_i32_0 = arith.constant 0 : i32
    %c0_i32_1 = arith.constant 0 : i32
    %c0_i32_2 = arith.constant 0 : i32
    return %c0_i32, %c0_i32_0, %c0_i32_1 : i32, i32, i32
  }
  func.func @transform_4(%arg0: i32) -> (i32, i32) {
    %c0_i32 = arith.constant 0 : i32
    %c0_i32_0 = arith.constant 0 : i32
    %c0_i32_1 = arith.constant 0 : i32
    return %c0_i32, %c0_i32_0 : i32, i32
  }
  func.func @transform_5(%arg0: i32) -> (i32, i32) {
    %c0_i32 = arith.constant 0 : i32
    %c0_i32_0 = arith.constant 0 : i32
    %c0_i32_1 = arith.constant 0 : i32
    return %c0_i32, %c0_i32_0 : i32, i32
  }
  func.func @transform_6(%arg0: i32) -> (i32, i32) {
    %c0_i32 = arith.constant 0 : i32
    %c0_i32_0 = arith.constant 0 : i32
    %c0_i32_1 = arith.constant 0 : i32
    return %c0_i32, %c0_i32_0 : i32, i32
  }
  func.func @transform_7(%arg0: i32) -> (i32, i32, i32) {
    %c0_i32 = arith.constant 0 : i32
    %c0_i32_0 = arith.constant 0 : i32
    %c0_i32_1 = arith.constant 0 : i32
    return %arg0, %c0_i32, %c0_i32_0 : i32, i32, i32
  }
}

</mosaic_0001>

<llo_original>
// kernel: tpu_custom_call.1
$region0: #{tpu_custom_call.1}
  #allocation0 [shape = 'u32[]', space=smem, size = 0x4, offset = 0x4, fixed_abs, tag = 'smem constant byte address 0x4 - core index']
  #allocation1 [shape = 'u32[144,128]{1,0:T(1,128)}', space=vmem, size = 0x12000, scoped, tag = 'internal scratch']
  %s0 = inlined_call_operand.hbm [shape: bf16[2,256,128], index: 0, kind: input, shape index: {}]
  %s1 = inlined_call_operand.hbm [shape: bf16[128,128], index: 1, kind: input, shape index: {}]
  %s2 = inlined_call_operand.hbm [shape: bf16[1,128,128], index: 2, kind: input, shape index: {}]
  %s3 = inlined_call_operand.hbm [shape: bf16[3,384,128], index: 3, kind: input, shape index: {}]
  %s4 = inlined_call_operand.hbm [shape: bf16[128,128], index: 4, kind: input, shape index: {}]
  %s5 = inlined_call_operand.hbm [shape: bf16[256,128], index: 5, kind: input, shape index: {}]
  %s6 = inlined_call_operand.hbm [shape: f32[8,128], index: 6, kind: input, shape index: {}]
  %s7 = inlined_call_operand.hbm [shape: f32[2,256,128], index: 7, kind: output, shape index: {}]
  %s8 = sld [smem:[#allocation0]]
  $region89: #{tpu_custom_call.1} parent=0
    _
  %s10 = ssub.s32 1, %s8
  %s11 = scalar_select 0, %s10, %s8
  $region1: #{tpu_custom_call.1} parent=0
    #allocation2 [shape = 'u8[131072]{0}', space=vmem, size = 0x20000, scoped, tag = 'input window, operand 0']
    #allocation3 [shape = 's32[2]{0}', space=sflag, size = 0x8, scoped, tag = 'scoped memory for tpu_custom_call.1']
    #allocation4 [shape = 's32[2]{0}', space=sflag, size = 0x8, scoped, tag = 'scoped memory for tpu_custom_call.1']
    #allocation5 [shape = 'u8[32768]{0}', space=vmem, size = 0x8000, scoped, tag = 'input window, operand 1, single buffered']
    #allocation6 [shape = 's32[1]{0}', space=sflag, size = 0x4, scoped, tag = 'scoped memory for tpu_custom_call.1']
    #allocation7 [shape = 'u8[32768]{0}', space=vmem, size = 0x8000, scoped, tag = 'input window, operand 2, single buffered']
    #allocation8 [shape = 'u8[294912]{0}', space=vmem, size = 0x48000, scoped, tag = 'input window, operand 3, single buffered']
    #allocation9 [shape = 's32[1]{0}', space=sflag, size = 0x4, scoped, tag = 'scoped memory for tpu_custom_call.1']
    #allocation10 [shape = 'u8[32768]{0}', space=vmem, size = 0x8000, scoped, tag = 'input window, operand 4, single buffered']
    #allocation11 [shape = 'u8[65536]{0}', space=vmem, size = 0x10000, scoped, tag = 'input window, operand 5, single buffered']
    #allocation12 [shape = 's32[1]{0}', space=sflag, size = 0x4, scoped, tag = 'scoped memory for tpu_custom_call.1']
    #allocation13 [shape = 'u8[4096]{0}', space=vmem, size = 0x1000, scoped, tag = 'input window, operand 6, single buffered']
    #allocation14 [shape = 'u8[262144]{0}', space=vmem, size = 0x40000, scoped, tag = 'output window, operand 0']
    %12 = vsyncpa [#allocation3], 0
    %s13 = scalar_lea.sflag [#allocation3], 1
    %14 = vsyncpa %s13, 0
    %15 = vsyncpa [#allocation6], 0
    %16 = vsyncpa [#allocation9], 0
    %17 = vsyncpa [#allocation12], 0
    %18 = vsyncpa [#allocation4], 0
    %s19 = scalar_lea.sflag [#allocation4], 1
    %20 = vsyncpa %s19, 0
    loop: start=0, step=1, limit=4
    $region2: #{tpu_custom_call.1} parent=1 // loop_pre_header
      _
    $region3: #{tpu_custom_call.1} parent=1 // loop_header
      %s22 = sphi 0, %s26
      %p23 = scmp.ge.s32.totalorder %s22, 4
      %s32 = sphi 0, %s34
      %s35 = sphi 0, %s32
      %s36 = sphi 0, %s35
      %s52 = sphi 0, %s36
      %s56 = sphi 0, %s56
      %s58 = sphi 0, %s56
      %s59 = sphi 0, %s58
      %s73 = sphi 0, %s59
      %s77 = sphi 0, %s77
      %s79 = sphi 0, %s77
      %s80 = sphi 0, %s79
      %s94 = sphi 0, %s80
      %s98 = sphi 0, %s98
      %s100 = sphi 0, %s98
      %s101 = sphi 0, %s100
      %s115 = sphi 0, %s101
      %s119 = sphi 0, %s119
      %s121 = sphi 0, %s119
      %s122 = sphi 0, %s121
      %s136 = sphi 0, %s122
      %s140 = sphi 0, %s140
      %s142 = sphi 0, %s140
      %s143 = sphi 0, %s142
      %s157 = sphi 0, %s143
      %s161 = sphi 0, %s161
      %s163 = sphi 0, %s161
      %s164 = sphi 0, %s163
      %s178 = sphi 0, %s164
      %s184 = sphi 0, %s186
      %s187 = sphi 0, %s184
      %s188 = sphi 0, %s187
      %s204 = sphi 0, %s188
    $region4: #{tpu_custom_call.1} parent=1 // loop_header_branch
      %25 = sbr.rel (%p23) target = $region8
    $region5: #{tpu_custom_call.1} parent=1 // loop_body
      %s27 = ssub.s32 %s22, 1
      %s28 = ssub.s32 %s22, 2
      %s29 = sadd.s32 %s22, 1
      %s30 = ssub.s32 %s22, %s29
      %p31 = scmp.eq.s32.totalorder %s30, 0
      %s33 = sadd.s32 %s32, 1
      %s34 = scalar_select %p31, %s32, %s33
      %p37 = pneg %p31
      %p38 = scmp.eq.s32.totalorder %s22, 1
      %p39 = por %p37, %p38
      %p40 = scmp.ne.s32.totalorder %s32, %s35
      %p41 = scmp.eq.s32.totalorder %s22, 0
      %p42 = por %p40, %p41
      %p43 = scmp.ne.s32.totalorder %s32, %s35
      %p44 = scmp.eq.s32.totalorder %s27, 1
      %p45 = por %p43, %p44
      %p46 = scmp.ne.s32.totalorder %s35, %s36
      %p47 = scmp.eq.s32.totalorder %s27, 0
      %p48 = por %p46, %p47
      %p49 = scmp.ne.s32.totalorder %s35, %s36
      %p50 = scmp.eq.s32.totalorder %s28, 1
      %p51 = por %p49, %p50
      %p53 = scmp.ne.s32.totalorder %s36, %s52
      %p54 = scmp.eq.s32.totalorder %s28, 0
      %p55 = por %p53, %p54
      %s57 = sadd.s32 %s56, 1
      %p60 = scmp.eq.s32.totalorder %s22, 1
      %p61 = scmp.ne.s32.totalorder %s56, %s58
      %p62 = scmp.eq.s32.totalorder %s22, 0
      %p63 = por %p61, %p62
      %p64 = scmp.ne.s32.totalorder %s56, %s58
      %p65 = scmp.eq.s32.totalorder %s27, 1
      %p66 = por %p64, %p65
      %p67 = scmp.ne.s32.totalorder %s58, %s59
      %p68 = scmp.eq.s32.totalorder %s27, 0
      %p69 = por %p67, %p68
      %p70 = scmp.ne.s32.totalorder %s58, %s59
      %p71 = scmp.eq.s32.totalorder %s28, 1
      %p72 = por %p70, %p71
      %p74 = scmp.ne.s32.totalorder %s59, %s73
      %p75 = scmp.eq.s32.totalorder %s28, 0
      %p76 = por %p74, %p75
      %s78 = sadd.s32 %s77, 1
      %p81 = scmp.eq.s32.totalorder %s22, 1
      %p82 = scmp.ne.s32.totalorder %s77, %s79
      %p83 = scmp.eq.s32.totalorder %s22, 0
      %p84 = por %p82, %p83
      %p85 = scmp.ne.s32.totalorder %s77, %s79
      %p86 = scmp.eq.s32.totalorder %s27, 1
      %p87 = por %p85, %p86
      %p88 = scmp.ne.s32.totalorder %s79, %s80
      %p89 = scmp.eq.s32.totalorder %s27, 0
      %p90 = por %p88, %p89
      %p91 = scmp.ne.s32.totalorder %s79, %s80
      %p92 = scmp.eq.s32.totalorder %s28, 1
      %p93 = por %p91, %p92
      %p95 = scmp.ne.s32.totalorder %s80, %s94
      %p96 = scmp.eq.s32.totalorder %s28, 0
      %p97 = por %p95, %p96
      %s99 = sadd.s32 %s98, 1
      %p102 = scmp.eq.s32.totalorder %s22, 1
      %p103 = scmp.ne.s32.totalorder %s98, %s100
      %p104 = scmp.eq.s32.totalorder %s22, 0
      %p105 = por %p103, %p104
      %p106 = scmp.ne.s32.totalorder %s98, %s100
      %p107 = scmp.eq.s32.totalorder %s27, 1
      %p108 = por %p106, %p107
      %p109 = scmp.ne.s32.totalorder %s100, %s101
      %p110 = scmp.eq.s32.totalorder %s27, 0
      %p111 = por %p109, %p110
      %p112 = scmp.ne.s32.totalorder %s100, %s101
      %p113 = scmp.eq.s32.totalorder %s28, 1
      %p114 = por %p112, %p113
      %p116 = scmp.ne.s32.totalorder %s101, %s115
      %p117 = scmp.eq.s32.totalorder %s28, 0
      %p118 = por %p116, %p117
      %s120 = sadd.s32 %s119, 1
      %p123 = scmp.eq.s32.totalorder %s22, 1
      %p124 = scmp.ne.s32.totalorder %s119, %s121
      %p125 = scmp.eq.s32.totalorder %s22, 0
      %p126 = por %p124, %p125
      %p127 = scmp.ne.s32.totalorder %s119, %s121
      %p128 = scmp.eq.s32.totalorder %s27, 1
      %p129 = por %p127, %p128
      %p130 = scmp.ne.s32.totalorder %s121, %s122
      %p131 = scmp.eq.s32.totalorder %s27, 0
      %p132 = por %p130, %p131
      %p133 = scmp.ne.s32.totalorder %s121, %s122
      %p134 = scmp.eq.s32.totalorder %s28, 1
      %p135 = por %p133, %p134
      %p137 = scmp.ne.s32.totalorder %s122, %s136
      %p138 = scmp.eq.s32.totalorder %s28, 0
      %p139 = por %p137, %p138
      %s141 = sadd.s32 %s140, 1
      %p144 = scmp.eq.s32.totalorder %s22, 1
      %p145 = scmp.ne.s32.totalorder %s140, %s142
      %p146 = scmp.eq.s32.totalorder %s22, 0
      %p147 = por %p145, %p146
      %p148 = scmp.ne.s32.totalorder %s140, %s142
      %p149 = scmp.eq.s32.totalorder %s27, 1
      %p150 = por %p148, %p149
      %p151 = scmp.ne.s32.totalorder %s142, %s143
      %p152 = scmp.eq.s32.totalorder %s27, 0
      %p153 = por %p151, %p152
      %p154 = scmp.ne.s32.totalorder %s142, %s143
      %p155 = scmp.eq.s32.totalorder %s28, 1
      %p156 = por %p154, %p155
      %p158 = scmp.ne.s32.totalorder %s143, %s157
      %p159 = scmp.eq.s32.totalorder %s28, 0
      %p160 = por %p158, %p159
      %s162 = sadd.s32 %s161, 1
      %p165 = scmp.eq.s32.totalorder %s22, 1
      %p166 = scmp.ne.s32.totalorder %s161, %s163
      %p167 = scmp.eq.s32.totalorder %s22, 0
      %p168 = por %p166, %p167
      %p169 = scmp.ne.s32.totalorder %s161, %s163
      %p170 = scmp.eq.s32.totalorder %s27, 1
      %p171 = por %p169, %p170
      %p172 = scmp.ne.s32.totalorder %s163, %s164
      %p173 = scmp.eq.s32.totalorder %s27, 0
      %p174 = por %p172, %p173
      %p175 = scmp.ne.s32.totalorder %s163, %s164
      %p176 = scmp.eq.s32.totalorder %s28, 1
      %p177 = por %p175, %p176
      %p179 = scmp.ne.s32.totalorder %s164, %s178
      %p180 = scmp.eq.s32.totalorder %s28, 0
      %p181 = por %p179, %p180
      %s182 = ssub.s32 %s22, %s29
      %p183 = scmp.eq.s32.totalorder %s182, 0
      %s185 = sadd.s32 %s184, 1
      %s186 = scalar_select %p183, %s184, %s185
      %p189 = pneg %p183
      %p190 = scmp.eq.s32.totalorder %s22, 1
      %p191 = por %p189, %p190
      %p192 = scmp.ne.s32.totalorder %s184, %s187
      %p193 = scmp.eq.s32.totalorder %s22, 0
      %p194 = por %p192, %p193
      %p195 = scmp.ne.s32.totalorder %s184, %s187
      %p196 = scmp.eq.s32.totalorder %s27, 1
      %p197 = por %p195, %p196
      %p198 = scmp.ne.s32.totalorder %s187, %s188
      %p199 = scmp.eq.s32.totalorder %s27, 0
      %p200 = por %p198, %p199
      %p201 = scmp.ne.s32.totalorder %s187, %s188
      %p202 = scmp.eq.s32.totalorder %s28, 1
      %p203 = por %p201, %p202
      %p205 = scmp.ne.s32.totalorder %s188, %s204
      %p206 = scmp.eq.s32.totalorder %s28, 0
      %p207 = por %p205, %p206
      %p208 = scmp.le.s32.totalorder 1, %s22
      %p209 = scmp.lt.s32.totalorder %s22, 3
      %p210 = pnand %p208, %p209
      %p211 = pneg %p210
      // Predicated region
      $region9: #{tpu_custom_call.1} parent=5 // pred_check
        _
      $region10: #{tpu_custom_call.1} parent=5 // pred_check_branch
        %213 = sbr.rel (%p210) target = $region12
      $region11: #{tpu_custom_call.1} parent=5 // pred_region
        %s214 = ssub.s32 %s22, 1
        // Predicated region
        $region13: #{tpu_custom_call.1} parent=11 // pred_check
          %p215 = pneg %p69
        $region14: #{tpu_custom_call.1} parent=11 // pred_check_branch
          %217 = sbr.rel (%p215) target = $region16
        $region15: #{tpu_custom_call.1} parent=11 // pred_region
          %s219 = ssub.s32 1024, 1024
          %220 = vsyncadd [#allocation6], %s219
          %s221 = sshll.u32 [#allocation5], 4
          %s222 = int_to_ptr.vmem [resolvable:$true] %s221
          %227 = dma.hbm_to_vmem [thread:$0]  %s1, 1024, %s222, [#allocation6], 64, 64, 4
        $region16: #{tpu_custom_call.1} parent=11 // pred_fallthru
          _
        // Predicated region
        $region17: #{tpu_custom_call.1} parent=11 // pred_check
          %p228 = pneg %p90
        $region18: #{tpu_custom_call.1} parent=11 // pred_check_branch
          %230 = sbr.rel (%p228) target = $region20
        $region19: #{tpu_custom_call.1} parent=11 // pred_region
          %s232 = ssub.s32 1024, 1024
          %233 = vsyncadd [#allocation6], %s232
          %s234 = sshll.u32 [#allocation7], 4
          %s235 = int_to_ptr.vmem [resolvable:$true] %s234
          %240 = dma.hbm_to_vmem [thread:$0]  %s2, 1024, %s235, [#allocation6], 64, 64, 4
        $region20: #{tpu_custom_call.1} parent=11 // pred_fallthru
          _
        // Predicated region
        $region21: #{tpu_custom_call.1} parent=11 // pred_check
          %p241 = pneg %p111
        $region22: #{tpu_custom_call.1} parent=11 // pred_check_branch
          %243 = sbr.rel (%p241) target = $region24
        $region23: #{tpu_custom_call.1} parent=11 // pred_region
          %s245 = ssub.s32 9216, 9216
          %246 = vsyncadd [#allocation9], %s245
          %s247 = sshll.u32 [#allocation8], 4
          %s248 = int_to_ptr.vmem [resolvable:$true] %s247
          %253 = dma.hbm_to_vmem [thread:$0]  %s3, 9216, %s248, [#allocation9], 64, 64, 4
        $region24: #{tpu_custom_call.1} parent=11 // pred_fallthru
          _
        // Predicated region
        $region25: #{tpu_custom_call.1} parent=11 // pred_check
          %p254 = pneg %p132
        $region26: #{tpu_custom_call.1} parent=11 // pred_check_branch
          %256 = sbr.rel (%p254) target = $region28
        $region27: #{tpu_custom_call.1} parent=11 // pred_region
          %s258 = ssub.s32 1024, 1024
          %259 = vsyncadd [#allocation9], %s258
          %s260 = sshll.u32 [#allocation10], 4
          %s261 = int_to_ptr.vmem [resolvable:$true] %s260
          %266 = dma.hbm_to_vmem [thread:$0]  %s4, 1024, %s261, [#allocation9], 64, 64, 4
        $region28: #{tpu_custom_call.1} parent=11 // pred_fallthru
          _
        // Predicated region
        $region29: #{tpu_custom_call.1} parent=11 // pred_check
          %p267 = pneg %p153
        $region30: #{tpu_custom_call.1} parent=11 // pred_check_branch
          %269 = sbr.rel (%p267) target = $region32
        $region31: #{tpu_custom_call.1} parent=11 // pred_region
          %s271 = ssub.s32 2048, 2048
          %272 = vsyncadd [#allocation12], %s271
          %s273 = sshll.u32 [#allocation11], 4
          %s274 = int_to_ptr.vmem [resolvable:$true] %s273
          %279 = dma.hbm_to_vmem [thread:$0]  %s5, 2048, %s274, [#allocation12], 64, 64, 4
        $region32: #{tpu_custom_call.1} parent=11 // pred_fallthru
          _
        // Predicated region
        $region33: #{tpu_custom_call.1} parent=11 // pred_check
          %p280 = pneg %p174
        $region34: #{tpu_custom_call.1} parent=11 // pred_check_branch
          %282 = sbr.rel (%p280) target = $region36
        $region35: #{tpu_custom_call.1} parent=11 // pred_region
          %s284 = ssub.s32 128, 128
          %285 = vsyncadd [#allocation12], %s284
          %s287 = sshll.u32 [#allocation13], 4
          %s288 = int_to_ptr.vmem [resolvable:$true] %s287
          %290 = dma.hbm_to_vmem [thread:$0]  %s6, 128, %s288, [#allocation12]
        $region36: #{tpu_custom_call.1} parent=11 // pred_fallthru
          _
      $region12: #{tpu_custom_call.1} parent=5 // pred_fallthru
        _
      %p291 = scmp.lt.s32.totalorder %s22, 2
      // Predicated region
      $region37: #{tpu_custom_call.1} parent=5 // pred_check
        %p292 = pneg %p291
      $region38: #{tpu_custom_call.1} parent=5 // pred_check_branch
        %294 = sbr.rel (%p292) target = $region40
      $region39: #{tpu_custom_call.1} parent=5 // pred_region
        // Predicated region
        $region41: #{tpu_custom_call.1} parent=39 // pred_check
          %p295 = pneg %p42
        $region42: #{tpu_custom_call.1} parent=39 // pred_check_branch
          %297 = sbr.rel (%p295) target = $region44
        $region43: #{tpu_custom_call.1} parent=39 // pred_region
          %s298 = sand.u32 %s32, 1
          %s299 = scalar_lea.sflag [#allocation3], %s298
          %s300 = sand.u32 %s32, 1
          %s301 = smul.addr %s300, 128
          %s302 = scalar_lea.vmem [#allocation2], %s301
          %s304 = ssub.s32 2048, 2048
          %305 = vsyncadd %s299, %s304
          %s306 = smul.addr %s22, 32
          %s307 = smul.addr %s306, 64
          %s308 = scalar_lea.hbm %s0, %s307
          %s309 = sshll.u32 %s302, 4
          %s310 = int_to_ptr.vmem [resolvable:$true] %s309
          %315 = dma.hbm_to_vmem [thread:$0]  %s308, 2048, %s310, %s299, 64, 64, 4
        $region44: #{tpu_custom_call.1} parent=39 // pred_fallthru
          _
      $region40: #{tpu_custom_call.1} parent=5 // pred_fallthru
        _
      %p316 = scmp.le.s32.totalorder 1, %s22
      %p317 = scmp.lt.s32.totalorder %s22, 3
      %p318 = pnand %p316, %p317
      %p319 = pneg %p318
      // Predicated region
      $region45: #{tpu_custom_call.1} parent=5 // pred_check
        _
      $region46: #{tpu_custom_call.1} parent=5 // pred_check_branch
        %321 = sbr.rel (%p318) target = $region48
      $region47: #{tpu_custom_call.1} parent=5 // pred_region
        %s322 = ssub.s32 %s22, 1
        %s323 = sand.u32 %s35, 1
        %s324 = scalar_lea.sflag [#allocation3], %s323
        %s325 = sand.u32 %s35, 1
        %s326 = smul.addr %s325, 128
        %s327 = scalar_lea.vmem [#allocation2], %s326
        // Predicated region
        $region49: #{tpu_custom_call.1} parent=47 // pred_check
          %p328 = pneg %p48
        $region50: #{tpu_custom_call.1} parent=47 // pred_check_branch
          %330 = sbr.rel (%p328) target = $region52
        $region51: #{tpu_custom_call.1} parent=47 // pred_region
          %331 = dma.done %s324, 2048
        $region52: #{tpu_custom_call.1} parent=47 // pred_fallthru
          _
        // Predicated region
        $region53: #{tpu_custom_call.1} parent=47 // pred_check
          %p332 = pneg %p69
        $region54: #{tpu_custom_call.1} parent=47 // pred_check_branch
          %334 = sbr.rel (%p332) target = $region56
        $region55: #{tpu_custom_call.1} parent=47 // pred_region
          %335 = dma.done [#allocation6], 1024
        $region56: #{tpu_custom_call.1} parent=47 // pred_fallthru
          _
        // Predicated region
        $region57: #{tpu_custom_call.1} parent=47 // pred_check
          %p336 = pneg %p90
        $region58: #{tpu_custom_call.1} parent=47 // pred_check_branch
          %338 = sbr.rel (%p336) target = $region60
        $region59: #{tpu_custom_call.1} parent=47 // pred_region
          %339 = dma.done [#allocation6], 1024
        $region60: #{tpu_custom_call.1} parent=47 // pred_fallthru
          _
        // Predicated region
        $region61: #{tpu_custom_call.1} parent=47 // pred_check
          %p340 = pneg %p111
        $region62: #{tpu_custom_call.1} parent=47 // pred_check_branch
          %342 = sbr.rel (%p340) target = $region64
        $region63: #{tpu_custom_call.1} parent=47 // pred_region
          %343 = dma.done [#allocation9], 9216
        $region64: #{tpu_custom_call.1} parent=47 // pred_fallthru
          _
        // Predicated region
        $region65: #{tpu_custom_call.1} parent=47 // pred_check
          %p344 = pneg %p132
        $region66: #{tpu_custom_call.1} parent=47 // pred_check_branch
          %346 = sbr.rel (%p344) target = $region68
        $region67: #{tpu_custom_call.1} parent=47 // pred_region
          %347 = dma.done [#allocation9], 1024
        $region68: #{tpu_custom_call.1} parent=47 // pred_fallthru
          _
        // Predicated region
        $region69: #{tpu_custom_call.1} parent=47 // pred_check
          %p348 = pneg %p153
        $region70: #{tpu_custom_call.1} parent=47 // pred_check_branch
          %350 = sbr.rel (%p348) target = $region72
        $region71: #{tpu_custom_call.1} parent=47 // pred_region
          %351 = dma.done [#allocation12], 2048
        $region72: #{tpu_custom_call.1} parent=47 // pred_fallthru
          _
        // Predicated region
        $region73: #{tpu_custom_call.1} parent=47 // pred_check
          %p352 = pneg %p174
        $region74: #{tpu_custom_call.1} parent=47 // pred_check_branch
          %354 = sbr.rel (%p352) target = $region76
        $region75: #{tpu_custom_call.1} parent=47 // pred_region
          %355 = dma.done [#allocation12], 128
        $region76: #{tpu_custom_call.1} parent=47 // pred_fallthru
          _
        %s356 = sand.u32 %s35, 1
        %s357 = scalar_lea.sflag [#allocation3], %s356
        %s358 = sand.u32 %s35, 1
        %s359 = smul.addr %s358, 128
        %s360 = scalar_lea.vmem [#allocation2], %s359
        %p361 = pneg %p48
        %p362 = pneg %p45
        %p363 = pneg %p69
        %p364 = pneg %p66
        %p365 = pneg %p90
        %p366 = pneg %p87
        %p367 = pneg %p111
        %p368 = pneg %p108
        %p369 = pneg %p132
        %p370 = pneg %p129
        %p371 = pneg %p153
        %p372 = pneg %p150
        %p373 = pneg %p174
        %p374 = pneg %p171
        %p375 = pneg %p200
        %p376 = pneg %p197
        %s377 = sand.u32 %s187, 1
        %s378 = scalar_lea.sflag [#allocation4], %s377
        %s379 = sand.u32 %s187, 1
        %s380 = smul.addr %s379, 256
        %s381 = scalar_lea.vmem [#allocation14], %s380
        %v383 = vld [vmem:[%s327] sm:$0xf]
        %v384 = vld [vmem:[%s327 + $0x4] sm:$0xf]
        %v385 = vld [vmem:[%s327 + $0x8] sm:$0xf]
        %v386 = vld [vmem:[%s327 + $0xc] sm:$0xf]
        %v387 = vld [vmem:[%s327 + $0x10] sm:$0xf]
        %v388 = vld [vmem:[%s327 + $0x14] sm:$0xf]
        %v389 = vld [vmem:[%s327 + $0x18] sm:$0xf]
        %v390 = vld [vmem:[%s327 + $0x1c] sm:$0xf]
        %v391 = vld [vmem:[%s327 + $0x20] sm:$0xf]
        %v392 = vld [vmem:[%s327 + $0x24] sm:$0xf]
        %v393 = vld [vmem:[%s327 + $0x28] sm:$0xf]
        %v394 = vld [vmem:[%s327 + $0x2c] sm:$0xf]
        %v395 = vld [vmem:[%s327 + $0x30] sm:$0xf]
        %v396 = vld [vmem:[%s327 + $0x34] sm:$0xf]
        %v397 = vld [vmem:[%s327 + $0x38] sm:$0xf]
        %v398 = vld [vmem:[%s327 + $0x3c] sm:$0xf]
        %v399 = vld [vmem:[%s327 + $0x40] sm:$0xf]
        %v400 = vld [vmem:[%s327 + $0x44] sm:$0xf]
        %v401 = vld [vmem:[%s327 + $0x48] sm:$0xf]
        %v402 = vld [vmem:[%s327 + $0x4c] sm:$0xf]
        %v403 = vld [vmem:[%s327 + $0x50] sm:$0xf]
        %v404 = vld [vmem:[%s327 + $0x54] sm:$0xf]
        %v405 = vld [vmem:[%s327 + $0x58] sm:$0xf]
        %v406 = vld [vmem:[%s327 + $0x5c] sm:$0xf]
        %v407 = vld [vmem:[%s327 + $0x60] sm:$0xf]
        %v408 = vld [vmem:[%s327 + $0x64] sm:$0xf]
        %v409 = vld [vmem:[%s327 + $0x68] sm:$0xf]
        %v410 = vld [vmem:[%s327 + $0x6c] sm:$0xf]
        %v411 = vld [vmem:[%s327 + $0x70] sm:$0xf]
        %v412 = vld [vmem:[%s327 + $0x74] sm:$0xf]
        %v413 = vld [vmem:[%s327 + $0x78] sm:$0xf]
        %v414 = vld [vmem:[%s327 + $0x7c] sm:$0xf]
        %v415 = vld [vmem:[#allocation5] sm:$0xf]
        %v416 = vld [vmem:[#allocation5 + $0x4] sm:$0xf]
        %v417 = vld [vmem:[#allocation5 + $0x8] sm:$0xf]
        %v418 = vld [vmem:[#allocation5 + $0xc] sm:$0xf]
        %v419 = vld [vmem:[#allocation5 + $0x10] sm:$0xf]
        %v420 = vld [vmem:[#allocation5 + $0x14] sm:$0xf]
        %v421 = vld [vmem:[#allocation5 + $0x18] sm:$0xf]
        %v422 = vld [vmem:[#allocation5 + $0x1c] sm:$0xf]
        %v423 = vld [vmem:[#allocation5 + $0x20] sm:$0xf]
        %v424 = vld [vmem:[#allocation5 + $0x24] sm:$0xf]
        %v425 = vld [vmem:[#allocation5 + $0x28] sm:$0xf]
        %v426 = vld [vmem:[#allocation5 + $0x2c] sm:$0xf]
        %v427 = vld [vmem:[#allocation5 + $0x30] sm:$0xf]
        %v428 = vld [vmem:[#allocation5 + $0x34] sm:$0xf]
        %v429 = vld [vmem:[#allocation5 + $0x38] sm:$0xf]
        %v430 = vld [vmem:[#allocation5 + $0x3c] sm:$0xf]
        %v431 = vld [vmem:[#allocation13] sm:$0x1]
        %v432 = vlaneseq
        %v433 = vshrl.u32 %v432, 7
        %v434 = vsub.s32 0, %v433
        %v435 = vrot.slane %v431, %v434
        %v468 = vunpack.c.l.b16 %v383
        %v469 = vunpack.c.l.b16 %v384
        %v470 = vunpack.c.l.b16 %v385
        %v471 = vunpack.c.l.b16 %v386
        %v472 = vunpack.c.l.b16 %v387
        %v473 = vunpack.c.l.b16 %v388
        %v474 = vunpack.c.l.b16 %v389
        %v475 = vunpack.c.l.b16 %v390
        %v476 = vunpack.c.l.b16 %v391
        %v477 = vunpack.c.l.b16 %v392
        %v478 = vunpack.c.l.b16 %v393
        %v479 = vunpack.c.l.b16 %v394
        %v480 = vunpack.c.l.b16 %v395
        %v481 = vunpack.c.l.b16 %v396
        %v482 = vunpack.c.l.b16 %v397
        %v483 = vunpack.c.l.b16 %v398
        %v484 = vunpack.c.l.b16 %v399
        %v485 = vunpack.c.l.b16 %v400
        %v486 = vunpack.c.l.b16 %v401
        %v487 = vunpack.c.l.b16 %v402
        %v488 = vunpack.c.l.b16 %v403
        %v489 = vunpack.c.l.b16 %v404
        %v490 = vunpack.c.l.b16 %v405
        %v491 = vunpack.c.l.b16 %v406
        %v492 = vunpack.c.l.b16 %v407
        %v493 = vunpack.c.l.b16 %v408
        %v494 = vunpack.c.l.b16 %v409
        %v495 = vunpack.c.l.b16 %v410
        %v496 = vunpack.c.l.b16 %v411
        %v497 = vunpack.c.l.b16 %v412
        %v498 = vunpack.c.l.b16 %v413
        %v499 = vunpack.c.l.b16 %v414
        %v500 = vpack.c.b16 %v469, %v468
        %v501 = vpack.c.b16 %v471, %v470
        %v502 = vpack.c.b16 %v473, %v472
        %v503 = vpack.c.b16 %v475, %v474
        %v504 = vpack.c.b16 %v477, %v476
        %v505 = vpack.c.b16 %v479, %v478
        %v506 = vpack.c.b16 %v481, %v480
        %v507 = vpack.c.b16 %v483, %v482
        %v508 = vpack.c.b16 %v485, %v484
        %v509 = vpack.c.b16 %v487, %v486
        %v510 = vpack.c.b16 %v489, %v488
        %v511 = vpack.c.b16 %v491, %v490
        %v512 = vpack.c.b16 %v493, %v492
        %v513 = vpack.c.b16 %v495, %v494
        %v514 = vpack.c.b16 %v497, %v496
        %v515 = vpack.c.b16 %v499, %v498
        %v548 = vunpack.c.l.b16 %v415
        %v549 = vunpack.c.l.b16 %v416
        %v550 = vunpack.c.l.b16 %v417
        %v551 = vunpack.c.l.b16 %v418
        %v552 = vunpack.c.l.b16 %v419
        %v553 = vunpack.c.l.b16 %v420
        %v554 = vunpack.c.l.b16 %v421
        %v555 = vunpack.c.l.b16 %v422
        %v556 = vunpack.c.l.b16 %v423
        %v557 = vunpack.c.l.b16 %v424
        %v558 = vunpack.c.l.b16 %v425
        %v559 = vunpack.c.l.b16 %v426
        %v560 = vunpack.c.l.b16 %v427
        %v561 = vunpack.c.l.b16 %v428
        %v562 = vunpack.c.l.b16 %v429
        %v563 = vunpack.c.l.b16 %v430
        %v564 = vpack.c.b16 %v549, %v548
        %v565 = vpack.c.b16 %v551, %v550
        %v566 = vpack.c.b16 %v553, %v552
        %v567 = vpack.c.b16 %v555, %v554
        %v568 = vpack.c.b16 %v557, %v556
        %v569 = vpack.c.b16 %v559, %v558
        %v570 = vpack.c.b16 %v561, %v560
        %v571 = vpack.c.b16 %v563, %v562
        %580 = vmatprep.subr.bf16.mxu0 0
        %581 = vmatpush1.bf16.msra.mxu0 %v564
        %582 = vmatprep.subr.bf16.mxu0 0
        %583 = vmatpush1.bf16.msra.mxu0 %v565
        %584 = vmatprep.subr.bf16.mxu0 0
        %585 = vmatpush1.bf16.msra.mxu0 %v566
        %586 = vmatprep.subr.bf16.mxu0 0
        %587 = vmatpush1.bf16.msra.mxu0 %v567
        %588 = vmatprep.subr.bf16.mxu0 0
        %589 = vmatpush1.bf16.msra.mxu0 %v568
        %590 = vmatprep.subr.bf16.mxu0 0
        %591 = vmatpush1.bf16.msra.mxu0 %v569
        %592 = vmatprep.subr.bf16.mxu0 0
        %593 = vmatpush1.bf16.msra.mxu0 %v570
        %594 = vmatprep.subr.bf16.mxu0 0
        %595 = vmatpush1.bf16.msra.mxu0 %v571
        %596 = vmatprep.subr.bf16.mxu0 0
        %597 = vmatpush1.bf16.msra.mxu0 0
        %598 = vmatprep.subr.bf16.mxu0 0
        %599 = vmatpush1.bf16.msra.mxu0 0
        %600 = vmatprep.subr.bf16.mxu0 0
        %601 = vmatpush1.bf16.msra.mxu0 0
        %602 = vmatprep.subr.bf16.mxu0 0
        %603 = vmatpush1.bf16.msra.mxu0 0
        %604 = vmatprep.subr.bf16.mxu0 0
        %605 = vmatpush1.bf16.msra.mxu0 0
        %606 = vmatprep.subr.bf16.mxu0 0
        %607 = vmatpush1.bf16.msra.mxu0 0
        %608 = vmatprep.subr.bf16.mxu0 0
        %609 = vmatpush1.bf16.msra.mxu0 0
        %610 = vmatprep.subr.bf16.mxu0 0
        %611 = vmatpush1.bf16.msra.mxu0 0
        %612 = vmatprep.mubr.bf16.mxu0 0
        %613 = vmatmul.mubr.bf16.gmra.mrb[0].mxu0 %v500
        %v614 = vpop.f32.mrb[0].mxu0
        %v615 = vadd.f32 %v435, %v614
        %v616 = vpop.f32.mrb[0].mxu0
        %v617 = vpop.f32.mrb[0].mxu0
        %v618 = vadd.f32 %v435, %v617
        %v619 = vpop.f32.mrb[0].mxu0
        %620 = vmatprep.mubr.bf16.mxu0 0
        %621 = vmatmul.mubr.bf16.gmra.mrb[0].mxu0 %v501
        %v622 = vpop.f32.mrb[0].mxu0
        %v623 = vadd.f32 %v435, %v622
        %v624 = vpop.f32.mrb[0].mxu0
        %v625 = vpop.f32.mrb[0].mxu0
        %v626 = vadd.f32 %v435, %v625
        %v627 = vpop.f32.mrb[0].mxu0
        %628 = vmatprep.mubr.bf16.mxu0 0
        %629 = vmatmul.mubr.bf16.gmra.mrb[0].mxu0 %v502
        %v630 = vpop.f32.mrb[0].mxu0
        %v631 = vadd.f32 %v435, %v630
        %v632 = vpop.f32.mrb[0].mxu0
        %v633 = vpop.f32.mrb[0].mxu0
        %v634 = vadd.f32 %v435, %v633
        %v635 = vpop.f32.mrb[0].mxu0
        %636 = vmatprep.mubr.bf16.mxu0 0
        %637 = vmatmul.mubr.bf16.gmra.mrb[0].mxu0 %v503
        %v638 = vpop.f32.mrb[0].mxu0
        %v639 = vadd.f32 %v435, %v638
        %v640 = vpop.f32.mrb[0].mxu0
        %v641 = vpop.f32.mrb[0].mxu0
        %v642 = vadd.f32 %v435, %v641
        %v643 = vpop.f32.mrb[0].mxu0
        %644 = vmatprep.mubr.bf16.mxu0 0
        %645 = vmatmul.mubr.bf16.gmra.mrb[0].mxu0 %v504
        %v646 = vpop.f32.mrb[0].mxu0
        %v647 = vadd.f32 %v435, %v646
        %v648 = vpop.f32.mrb[0].mxu0
        %v649 = vpop.f32.mrb[0].mxu0
        %v650 = vadd.f32 %v435, %v649
        %v651 = vpop.f32.mrb[0].mxu0
        %652 = vmatprep.mubr.bf16.mxu0 0
        %653 = vmatmul.mubr.bf16.gmra.mrb[0].mxu0 %v505
        %v654 = vpop.f32.mrb[0].mxu0
        %v655 = vadd.f32 %v435, %v654
        %v656 = vpop.f32.mrb[0].mxu0
        %v657 = vpop.f32.mrb[0].mxu0
        %v658 = vadd.f32 %v435, %v657
        %v659 = vpop.f32.mrb[0].mxu0
        %660 = vmatprep.mubr.bf16.mxu0 0
        %661 = vmatmul.mubr.bf16.gmra.mrb[0].mxu0 %v506
        %v662 = vpop.f32.mrb[0].mxu0
        %v663 = vadd.f32 %v435, %v662
        %v664 = vpop.f32.mrb[0].mxu0
        %v665 = vpop.f32.mrb[0].mxu0
        %v666 = vadd.f32 %v435, %v665
        %v667 = vpop.f32.mrb[0].mxu0
        %668 = vmatprep.mubr.bf16.mxu0 0
        %669 = vmatmul.mubr.bf16.gmra.mrb[0].mxu0 %v507
        %v670 = vpop.f32.mrb[0].mxu0
        %v671 = vadd.f32 %v435, %v670
        %v672 = vpop.f32.mrb[0].mxu0
        %v673 = vpop.f32.mrb[0].mxu0
        %v674 = vadd.f32 %v435, %v673
        %v675 = vpop.f32.mrb[0].mxu0
        %676 = vmatprep.mubr.bf16.mxu0 0
        %677 = vmatmul.mubr.bf16.gmra.mrb[0].mxu0 %v508
        %v678 = vpop.f32.mrb[0].mxu0
        %v679 = vadd.f32 %v435, %v678
        %v680 = vpop.f32.mrb[0].mxu0
        %v681 = vpop.f32.mrb[0].mxu0
        %v682 = vadd.f32 %v435, %v681
        %v683 = vpop.f32.mrb[0].mxu0
        %684 = vmatprep.mubr.bf16.mxu0 0
        %685 = vmatmul.mubr.bf16.gmra.mrb[0].mxu0 %v509
        %v686 = vpop.f32.mrb[0].mxu0
        %v687 = vadd.f32 %v435, %v686
        %v688 = vpop.f32.mrb[0].mxu0
        %v689 = vpop.f32.mrb[0].mxu0
        %v690 = vadd.f32 %v435, %v689
        %v691 = vpop.f32.mrb[0].mxu0
        %692 = vmatprep.mubr.bf16.mxu0 0
        %693 = vmatmul.mubr.bf16.gmra.mrb[0].mxu0 %v510
        %v694 = vpop.f32.mrb[0].mxu0
        %v695 = vadd.f32 %v435, %v694
        %v696 = vpop.f32.mrb[0].mxu0
        %v697 = vpop.f32.mrb[0].mxu0
        %v698 = vadd.f32 %v435, %v697
        %v699 = vpop.f32.mrb[0].mxu0
        %700 = vmatprep.mubr.bf16.mxu0 0
        %701 = vmatmul.mubr.bf16.gmra.mrb[0].mxu0 %v511
        %v702 = vpop.f32.mrb[0].mxu0
        %v703 = vadd.f32 %v435, %v702
        %v704 = vpop.f32.mrb[0].mxu0
        %v705 = vpop.f32.mrb[0].mxu0
        %v706 = vadd.f32 %v435, %v705
        %v707 = vpop.f32.mrb[0].mxu0
        %708 = vmatprep.mubr.bf16.mxu0 0
        %709 = vmatmul.mubr.bf16.gmra.mrb[0].mxu0 %v512
        %v710 = vpop.f32.mrb[0].mxu0
        %v711 = vadd.f32 %v435, %v710
        %v712 = vpop.f32.mrb[0].mxu0
        %v713 = vpop.f32.mrb[0].mxu0
        %v714 = vadd.f32 %v435, %v713
        %v715 = vpop.f32.mrb[0].mxu0
        %716 = vmatprep.mubr.bf16.mxu0 0
        %717 = vmatmul.mubr.bf16.gmra.mrb[0].mxu0 %v513
        %v718 = vpop.f32.mrb[0].mxu0
        %v719 = vadd.f32 %v435, %v718
        %v720 = vpop.f32.mrb[0].mxu0
        %v721 = vpop.f32.mrb[0].mxu0
        %v722 = vadd.f32 %v435, %v721
        %v723 = vpop.f32.mrb[0].mxu0
        %724 = vmatprep.mubr.bf16.mxu0 0
        %725 = vmatmul.mubr.bf16.gmra.mrb[0].mxu0 %v514
        %v726 = vpop.f32.mrb[0].mxu0
        %v727 = vadd.f32 %v435, %v726
        %v728 = vpop.f32.mrb[0].mxu0
        %v729 = vpop.f32.mrb[0].mxu0
        %v730 = vadd.f32 %v435, %v729
        %v731 = vpop.f32.mrb[0].mxu0
        %732 = vmatprep.mubr.bf16.mxu0 0
        %733 = vmatmul.mubr.bf16.gmra.mrb[0].mxu0 %v515
        %v734 = vpop.f32.mrb[0].mxu0
        %v735 = vadd.f32 %v435, %v734
        %v736 = vpop.f32.mrb[0].mxu0
        %v737 = vpop.f32.mrb[0].mxu0
        %v738 = vadd.f32 %v435, %v737
        %v739 = vpop.f32.mrb[0].mxu0
        %740 = vdwg.mxu0
        %v741 = vmin.f32 %v615, 20.0
        %v742 = vmin.f32 %v618, 20.0
        %v743 = vmin.f32 %v623, 20.0
        %v744 = vmin.f32 %v626, 20.0
        %v745 = vmin.f32 %v631, 20.0
        %v746 = vmin.f32 %v634, 20.0
        %v747 = vmin.f32 %v639, 20.0
        %v748 = vmin.f32 %v642, 20.0
        %v749 = vmin.f32 %v647, 20.0
        %v750 = vmin.f32 %v650, 20.0
        %v751 = vmin.f32 %v655, 20.0
        %v752 = vmin.f32 %v658, 20.0
        %v753 = vmin.f32 %v663, 20.0
        %v754 = vmin.f32 %v666, 20.0
        %v755 = vmin.f32 %v671, 20.0
        %v756 = vmin.f32 %v674, 20.0
        %v757 = vmin.f32 %v679, 20.0
        %v758 = vmin.f32 %v682, 20.0
        %v759 = vmin.f32 %v687, 20.0
        %v760 = vmin.f32 %v690, 20.0
        %v761 = vmin.f32 %v695, 20.0
        %v762 = vmin.f32 %v698, 20.0
        %v763 = vmin.f32 %v703, 20.0
        %v764 = vmin.f32 %v706, 20.0
        %v765 = vmin.f32 %v711, 20.0
        %v766 = vmin.f32 %v714, 20.0
        %v767 = vmin.f32 %v719, 20.0
        %v768 = vmin.f32 %v722, 20.0
        %v769 = vmin.f32 %v727, 20.0
        %v770 = vmin.f32 %v730, 20.0
        %v771 = vmin.f32 %v735, 20.0
        %v772 = vmin.f32 %v738, 20.0
        %v773 = vmul.f32 %v741, 1.442695
        %v774 = vpow.pop %v773
        %v775 = vmul.f32 %v742, 1.442695
        %v776 = vpow.pop %v775
        %v777 = vmul.f32 %v743, 1.442695
        %v778 = vpow.pop %v777
        %v779 = vmul.f32 %v744, 1.442695
        %v780 = vpow.pop %v779
        %v781 = vmul.f32 %v745, 1.442695
        %v782 = vpow.pop %v781
        %v783 = vmul.f32 %v746, 1.442695
        %v784 = vpow.pop %v783
        %v785 = vmul.f32 %v747, 1.442695
        %v786 = vpow.pop %v785
        %v787 = vmul.f32 %v748, 1.442695
        %v788 = vpow.pop %v787
        %v789 = vmul.f32 %v749, 1.442695
        %v790 = vpow.pop %v789
        %v791 = vmul.f32 %v750, 1.442695
        %v792 = vpow.pop %v791
        %v793 = vmul.f32 %v751, 1.442695
        %v794 = vpow.pop %v793
        %v795 = vmul.f32 %v752, 1.442695
        %v796 = vpow.pop %v795
        %v797 = vmul.f32 %v753, 1.442695
        %v798 = vpow.pop %v797
        %v799 = vmul.f32 %v754, 1.442695
        %v800 = vpow.pop %v799
        %v801 = vmul.f32 %v755, 1.442695
        %v802 = vpow.pop %v801
        %v803 = vmul.f32 %v756, 1.442695
        %v804 = vpow.pop %v803
        %v805 = vmul.f32 %v757, 1.442695
        %v806 = vpow.pop %v805
        %v807 = vmul.f32 %v758, 1.442695
        %v808 = vpow.pop %v807
        %v809 = vmul.f32 %v759, 1.442695
        %v810 = vpow.pop %v809
        %v811 = vmul.f32 %v760, 1.442695
        %v812 = vpow.pop %v811
        %v813 = vmul.f32 %v761, 1.442695
        %v814 = vpow.pop %v813
        %v815 = vmul.f32 %v762, 1.442695
        %v816 = vpow.pop %v815
        %v817 = vmul.f32 %v763, 1.442695
        %v818 = vpow.pop %v817
        %v819 = vmul.f32 %v764, 1.442695
        %v820 = vpow.pop %v819
        %v821 = vmul.f32 %v765, 1.442695
        %v822 = vpow.pop %v821
        %v823 = vmul.f32 %v766, 1.442695
        %v824 = vpow.pop %v823
        %v825 = vmul.f32 %v767, 1.442695
        %v826 = vpow.pop %v825
        %v827 = vmul.f32 %v768, 1.442695
        %v828 = vpow.pop %v827
        %v829 = vmul.f32 %v769, 1.442695
        %v830 = vpow.pop %v829
        %v831 = vmul.f32 %v770, 1.442695
        %v832 = vpow.pop %v831
        %v833 = vmul.f32 %v771, 1.442695
        %v834 = vpow.pop %v833
        %v835 = vmul.f32 %v772, 1.442695
        %v836 = vpow.pop %v835
        %v837 = vadd.f32 %v774, 2.0
        %v838 = vadd.f32 %v776, 2.0
        %v839 = vadd.f32 %v778, 2.0
        %v840 = vadd.f32 %v780, 2.0
        %v841 = vadd.f32 %v782, 2.0
        %v842 = vadd.f32 %v784, 2.0
        %v843 = vadd.f32 %v786, 2.0
        %v844 = vadd.f32 %v788, 2.0
        %v845 = vadd.f32 %v790, 2.0
        %v846 = vadd.f32 %v792, 2.0
        %v847 = vadd.f32 %v794, 2.0
        %v848 = vadd.f32 %v796, 2.0
        %v849 = vadd.f32 %v798, 2.0
        %v850 = vadd.f32 %v800, 2.0
        %v851 = vadd.f32 %v802, 2.0
        %v852 = vadd.f32 %v804, 2.0
        %v853 = vadd.f32 %v806, 2.0
        %v854 = vadd.f32 %v808, 2.0
        %v855 = vadd.f32 %v810, 2.0
        %v856 = vadd.f32 %v812, 2.0
        %v857 = vadd.f32 %v814, 2.0
        %v858 = vadd.f32 %v816, 2.0
        %v859 = vadd.f32 %v818, 2.0
        %v860 = vadd.f32 %v820, 2.0
        %v861 = vadd.f32 %v822, 2.0
        %v862 = vadd.f32 %v824, 2.0
        %v863 = vadd.f32 %v826, 2.0
        %v864 = vadd.f32 %v828, 2.0
        %v865 = vadd.f32 %v830, 2.0
        %v866 = vadd.f32 %v832, 2.0
        %v867 = vadd.f32 %v834, 2.0
        %v868 = vadd.f32 %v836, 2.0
        %v869 = vmul.f32 %v774, %v837
        %v870 = vmul.f32 %v776, %v838
        %v871 = vmul.f32 %v778, %v839
        %v872 = vmul.f32 %v780, %v840
        %v873 = vmul.f32 %v782, %v841
        %v874 = vmul.f32 %v784, %v842
        %v875 = vmul.f32 %v786, %v843
        %v876 = vmul.f32 %v788, %v844
        %v877 = vmul.f32 %v790, %v845
        %v878 = vmul.f32 %v792, %v846
        %v879 = vmul.f32 %v794, %v847
        %v880 = vmul.f32 %v796, %v848
        %v881 = vmul.f32 %v798, %v849
        %v882 = vmul.f32 %v800, %v850
        %v883 = vmul.f32 %v802, %v851
        %v884 = vmul.f32 %v804, %v852
        %v885 = vmul.f32 %v806, %v853
        %v886 = vmul.f32 %v808, %v854
        %v887 = vmul.f32 %v810, %v855
        %v888 = vmul.f32 %v812, %v856
        %v889 = vmul.f32 %v814, %v857
        %v890 = vmul.f32 %v816, %v858
        %v891 = vmul.f32 %v818, %v859
        %v892 = vmul.f32 %v820, %v860
        %v893 = vmul.f32 %v822, %v861
        %v894 = vmul.f32 %v824, %v862
        %v895 = vmul.f32 %v826, %v863
        %v896 = vmul.f32 %v828, %v864
        %v897 = vmul.f32 %v830, %v865
        %v898 = vmul.f32 %v832, %v866
        %v899 = vmul.f32 %v834, %v867
        %v900 = vmul.f32 %v836, %v868
        %v901 = vmul.f32 %v615, %v869
        %v902 = vmul.f32 %v618, %v870
        %v903 = vmul.f32 %v623, %v871
        %v904 = vmul.f32 %v626, %v872
        %v905 = vmul.f32 %v631, %v873
        %v906 = vmul.f32 %v634, %v874
        %v907 = vmul.f32 %v639, %v875
        %v908 = vmul.f32 %v642, %v876
        %v909 = vmul.f32 %v647, %v877
        %v910 = vmul.f32 %v650, %v878
        %v911 = vmul.f32 %v655, %v879
        %v912 = vmul.f32 %v658, %v880
        %v913 = vmul.f32 %v663, %v881
        %v914 = vmul.f32 %v666, %v882
        %v915 = vmul.f32 %v671, %v883
        %v916 = vmul.f32 %v674, %v884
        %v917 = vmul.f32 %v679, %v885
        %v918 = vmul.f32 %v682, %v886
        %v919 = vmul.f32 %v687, %v887
        %v920 = vmul.f32 %v690, %v888
        %v921 = vmul.f32 %v695, %v889
        %v922 = vmul.f32 %v698, %v890
        %v923 = vmul.f32 %v703, %v891
        %v924 = vmul.f32 %v706, %v892
        %v925 = vmul.f32 %v711, %v893
        %v926 = vmul.f32 %v714, %v894
        %v927 = vmul.f32 %v719, %v895
        %v928 = vmul.f32 %v722, %v896
        %v929 = vmul.f32 %v727, %v897
        %v930 = vmul.f32 %v730, %v898
        %v931 = vmul.f32 %v735, %v899
        %v932 = vmul.f32 %v738, %v900
        %v933 = vadd.f32 %v869, 2.0
        %v934 = vadd.f32 %v870, 2.0
        %v935 = vadd.f32 %v871, 2.0
        %v936 = vadd.f32 %v872, 2.0
        %v937 = vadd.f32 %v873, 2.0
        %v938 = vadd.f32 %v874, 2.0
        %v939 = vadd.f32 %v875, 2.0
        %v940 = vadd.f32 %v876, 2.0
        %v941 = vadd.f32 %v877, 2.0
        %v942 = vadd.f32 %v878, 2.0
        %v943 = vadd.f32 %v879, 2.0
        %v944 = vadd.f32 %v880, 2.0
        %v945 = vadd.f32 %v881, 2.0
        %v946 = vadd.f32 %v882, 2.0
        %v947 = vadd.f32 %v883, 2.0
        %v948 = vadd.f32 %v884, 2.0
        %v949 = vadd.f32 %v885, 2.0
        %v950 = vadd.f32 %v886, 2.0
        %v951 = vadd.f32 %v887, 2.0
        %v952 = vadd.f32 %v888, 2.0
        %v953 = vadd.f32 %v889, 2.0
        %v954 = vadd.f32 %v890, 2.0
        %v955 = vadd.f32 %v891, 2.0
        %v956 = vadd.f32 %v892, 2.0
        %v957 = vadd.f32 %v893, 2.0
        %v958 = vadd.f32 %v894, 2.0
        %v959 = vadd.f32 %v895, 2.0
        %v960 = vadd.f32 %v896, 2.0
        %v961 = vadd.f32 %v897, 2.0
        %v962 = vadd.f32 %v898, 2.0
        %v963 = vadd.f32 %v899, 2.0
        %v964 = vadd.f32 %v900, 2.0
        %v965 = vrcp.pop %v933
        %v966 = vrcp.pop %v934
        %v967 = vrcp.pop %v935
        %v968 = vrcp.pop %v936
        %v969 = vrcp.pop %v937
        %v970 = vrcp.pop %v938
        %v971 = vrcp.pop %v939
        %v972 = vrcp.pop %v940
        %v973 = vrcp.pop %v941
        %v974 = vrcp.pop %v942
        %v975 = vrcp.pop %v943
        %v976 = vrcp.pop %v944
        %v977 = vrcp.pop %v945
        %v978 = vrcp.pop %v946
        %v979 = vrcp.pop %v947
        %v980 = vrcp.pop %v948
        %v981 = vrcp.pop %v949
        %v982 = vrcp.pop %v950
        %v983 = vrcp.pop %v951
        %v984 = vrcp.pop %v952
        %v985 = vrcp.pop %v953
        %v986 = vrcp.pop %v954
        %v987 = vrcp.pop %v955
        %v988 = vrcp.pop %v956
        %v989 = vrcp.pop %v957
        %v990 = vrcp.pop %v958
        %v991 = vrcp.pop %v959
        %v992 = vrcp.pop %v960
        %v993 = vrcp.pop %v961
        %v994 = vrcp.pop %v962
        %v995 = vrcp.pop %v963
        %v996 = vrcp.pop %v964
        %v997 = vmul.f32 %v901, %v965
        %v998 = vmul.f32 %v902, %v966
        %v999 = vmul.f32 %v903, %v967
        %v1000 = vmul.f32 %v904, %v968
        %v1001 = vmul.f32 %v905, %v969
        %v1002 = vmul.f32 %v906, %v970
        %v1003 = vmul.f32 %v907, %v971
        %v1004 = vmul.f32 %v908, %v972
        %v1005 = vmul.f32 %v909, %v973
        %v1006 = vmul.f32 %v910, %v974
        %v1007 = vmul.f32 %v911, %v975
        %v1008 = vmul.f32 %v912, %v976
        %v1009 = vmul.f32 %v913, %v977
        %v1010 = vmul.f32 %v914, %v978
        %v1011 = vmul.f32 %v915, %v979
        %v1012 = vmul.f32 %v916, %v980
        %v1013 = vmul.f32 %v917, %v981
        %v1014 = vmul.f32 %v918, %v982
        %v1015 = vmul.f32 %v919, %v983
        %v1016 = vmul.f32 %v920, %v984
        %v1017 = vmul.f32 %v921, %v985
        %v1018 = vmul.f32 %v922, %v986
        %v1019 = vmul.f32 %v923, %v987
        %v1020 = vmul.f32 %v924, %v988
        %v1021 = vmul.f32 %v925, %v989
        %v1022 = vmul.f32 %v926, %v990
        %v1023 = vmul.f32 %v927, %v991
        %v1024 = vmul.f32 %v928, %v992
        %v1025 = vmul.f32 %v929, %v993
        %v1026 = vmul.f32 %v930, %v994
        %v1027 = vmul.f32 %v931, %v995
        %v1028 = vmul.f32 %v932, %v996
        %v1029 = vpack.c.bf16 %v998, %v997
        %v1030 = vpack.c.bf16 %v1000, %v999
        %v1031 = vpack.c.bf16 %v1002, %v1001
        %v1032 = vpack.c.bf16 %v1004, %v1003
        %v1033 = vpack.c.bf16 %v1006, %v1005
        %v1034 = vpack.c.bf16 %v1008, %v1007
        %v1035 = vpack.c.bf16 %v1010, %v1009
        %v1036 = vpack.c.bf16 %v1012, %v1011
        %v1037 = vpack.c.bf16 %v1014, %v1013
        %v1038 = vpack.c.bf16 %v1016, %v1015
        %v1039 = vpack.c.bf16 %v1018, %v1017
        %v1040 = vpack.c.bf16 %v1020, %v1019
        %v1041 = vpack.c.bf16 %v1022, %v1021
        %v1042 = vpack.c.bf16 %v1024, %v1023
        %v1043 = vpack.c.bf16 %v1026, %v1025
        %v1044 = vpack.c.bf16 %v1028, %v1027
        %v1045 = vlaneseq
        %v1046 = vshrl.u32 %v1045, 7
        %v1047 = vadd.s32 %v1046, 8
        %v1048 = vadd.s32 %v1046, 16
        %v1049 = vadd.s32 %v1046, 24
        %v1050 = vadd.s32 %v1046, 32
        %v1051 = vadd.s32 %v1046, 40
        %v1052 = vadd.s32 %v1046, 48
        %v1053 = vadd.s32 %v1046, 56
        %v1054 = vadd.s32 %v1046, 64
        %v1055 = vadd.s32 %v1046, 72
        %v1056 = vadd.s32 %v1046, 80
        %v1057 = vadd.s32 %v1046, 88
        %v1058 = vadd.s32 %v1046, 96
        %v1059 = vadd.s32 %v1046, 104
        %v1060 = vadd.s32 %v1046, 112
        %v1061 = vadd.s32 %v1046, 120
        %v1062 = vadd.s32 %v1046, 128
        %v1063 = vadd.s32 %v1046, 136
        %v1064 = vadd.s32 %v1046, 144
        %v1065 = vadd.s32 %v1046, 152
        %v1066 = vadd.s32 %v1046, 160
        %v1067 = vadd.s32 %v1046, 168
        %v1068 = vadd.s32 %v1046, 176
        %v1069 = vadd.s32 %v1046, 184
        %v1070 = vadd.s32 %v1046, 192
        %v1071 = vadd.s32 %v1046, 200
        %v1072 = vadd.s32 %v1046, 208
        %v1073 = vadd.s32 %v1046, 216
        %v1074 = vadd.s32 %v1046, 224
        %v1075 = vadd.s32 %v1046, 232
        %v1076 = vadd.s32 %v1046, 240
        %v1077 = vadd.s32 %v1046, 248
        %vm1078 = vcmp.lt.s32.totalorder %v1046, 0
        %v1079 = vsub.s32 0, %v1046
        %v1080 = vsel %vm1078, %v1079, %v1046
        %v1081 = vshrl.u32 %v1080, 4
        %v1082 = vand.u32 %v1080, 15
        %v1083 = vsub.s32 0, %v1082
        %v1084 = vsel %vm1078, %v1083, %v1082
        %vm1085 = vcmp.lt.s32.totalorder %v1047, 0
        %v1086 = vsub.s32 0, %v1047
        %v1087 = vsel %vm1085, %v1086, %v1047
        %v1088 = vshrl.u32 %v1087, 4
        %v1089 = vand.u32 %v1087, 15
        %v1090 = vsub.s32 0, %v1089
        %v1091 = vsel %vm1085, %v1090, %v1089
        %vm1092 = vcmp.lt.s32.totalorder %v1048, 0
        %v1093 = vsub.s32 0, %v1048
        %v1094 = vsel %vm1092, %v1093, %v1048
        %v1095 = vshrl.u32 %v1094, 4
        %v1096 = vand.u32 %v1094, 15
        %v1097 = vsub.s32 0, %v1096
        %v1098 = vsel %vm1092, %v1097, %v1096
        %vm1099 = vcmp.lt.s32.totalorder %v1049, 0
        %v1100 = vsub.s32 0, %v1049
        %v1101 = vsel %vm1099, %v1100, %v1049
        %v1102 = vshrl.u32 %v1101, 4
        %v1103 = vand.u32 %v1101, 15
        %v1104 = vsub.s32 0, %v1103
        %v1105 = vsel %vm1099, %v1104, %v1103
        %vm1106 = vcmp.lt.s32.totalorder %v1050, 0
        %v1107 = vsub.s32 0, %v1050
        %v1108 = vsel %vm1106, %v1107, %v1050
        %v1109 = vshrl.u32 %v1108, 4
        %v1110 = vand.u32 %v1108, 15
        %v1111 = vsub.s32 0, %v1110
        %v1112 = vsel %vm1106, %v1111, %v1110
        %vm1113 = vcmp.lt.s32.totalorder %v1051, 0
        %v1114 = vsub.s32 0, %v1051
        %v1115 = vsel %vm1113, %v1114, %v1051
        %v1116 = vshrl.u32 %v1115, 4
        %v1117 = vand.u32 %v1115, 15
        %v1118 = vsub.s32 0, %v1117
        %v1119 = vsel %vm1113, %v1118, %v1117
        %vm1120 = vcmp.lt.s32.totalorder %v1052, 0
        %v1121 = vsub.s32 0, %v1052
        %v1122 = vsel %vm1120, %v1121, %v1052
        %v1123 = vshrl.u32 %v1122, 4
        %v1124 = vand.u32 %v1122, 15
        %v1125 = vsub.s32 0, %v1124
        %v1126 = vsel %vm1120, %v1125, %v1124
        %vm1127 = vcmp.lt.s32.totalorder %v1053, 0
        %v1128 = vsub.s32 0, %v1053
        %v1129 = vsel %vm1127, %v1128, %v1053
        %v1130 = vshrl.u32 %v1129, 4
        %v1131 = vand.u32 %v1129, 15
        %v1132 = vsub.s32 0, %v1131
        %v1133 = vsel %vm1127, %v1132, %v1131
        %vm1134 = vcmp.lt.s32.totalorder %v1054, 0
        %v1135 = vsub.s32 0, %v1054
        %v1136 = vsel %vm1134, %v1135, %v1054
        %v1137 = vshrl.u32 %v1136, 4
        %v1138 = vand.u32 %v1136, 15
        %v1139 = vsub.s32 0, %v1138
        %v1140 = vsel %vm1134, %v1139, %v1138
        %vm1141 = vcmp.lt.s32.totalorder %v1055, 0
        %v1142 = vsub.s32 0, %v1055
        %v1143 = vsel %vm1141, %v1142, %v1055
        %v1144 = vshrl.u32 %v1143, 4
        %v1145 = vand.u32 %v1143, 15
        %v1146 = vsub.s32 0, %v1145
        %v1147 = vsel %vm1141, %v1146, %v1145
        %vm1148 = vcmp.lt.s32.totalorder %v1056, 0
        %v1149 = vsub.s32 0, %v1056
        %v1150 = vsel %vm1148, %v1149, %v1056
        %v1151 = vshrl.u32 %v1150, 4
        %v1152 = vand.u32 %v1150, 15
        %v1153 = vsub.s32 0, %v1152
        %v1154 = vsel %vm1148, %v1153, %v1152
        %vm1155 = vcmp.lt.s32.totalorder %v1057, 0
        %v1156 = vsub.s32 0, %v1057
        %v1157 = vsel %vm1155, %v1156, %v1057
        %v1158 = vshrl.u32 %v1157, 4
        %v1159 = vand.u32 %v1157, 15
        %v1160 = vsub.s32 0, %v1159
        %v1161 = vsel %vm1155, %v1160, %v1159
        %vm1162 = vcmp.lt.s32.totalorder %v1058, 0
        %v1163 = vsub.s32 0, %v1058
        %v1164 = vsel %vm1162, %v1163, %v1058
        %v1165 = vshrl.u32 %v1164, 4
        %v1166 = vand.u32 %v1164, 15
        %v1167 = vsub.s32 0, %v1166
        %v1168 = vsel %vm1162, %v1167, %v1166
        %vm1169 = vcmp.lt.s32.totalorder %v1059, 0
        %v1170 = vsub.s32 0, %v1059
        %v1171 = vsel %vm1169, %v1170, %v1059
        %v1172 = vshrl.u32 %v1171, 4
        %v1173 = vand.u32 %v1171, 15
        %v1174 = vsub.s32 0, %v1173
        %v1175 = vsel %vm1169, %v1174, %v1173
        %vm1176 = vcmp.lt.s32.totalorder %v1060, 0
        %v1177 = vsub.s32 0, %v1060
        %v1178 = vsel %vm1176, %v1177, %v1060
        %v1179 = vshrl.u32 %v1178, 4
        %v1180 = vand.u32 %v1178, 15
        %v1181 = vsub.s32 0, %v1180
        %v1182 = vsel %vm1176, %v1181, %v1180
        %vm1183 = vcmp.lt.s32.totalorder %v1061, 0
        %v1184 = vsub.s32 0, %v1061
        %v1185 = vsel %vm1183, %v1184, %v1061
        %v1186 = vshrl.u32 %v1185, 4
        %v1187 = vand.u32 %v1185, 15
        %v1188 = vsub.s32 0, %v1187
        %v1189 = vsel %vm1183, %v1188, %v1187
        %vm1190 = vcmp.lt.s32.totalorder %v1062, 0
        %v1191 = vsub.s32 0, %v1062
        %v1192 = vsel %vm1190, %v1191, %v1062
        %v1193 = vshrl.u32 %v1192, 4
        %v1194 = vand.u32 %v1192, 15
        %v1195 = vsub.s32 0, %v1194
        %v1196 = vsel %vm1190, %v1195, %v1194
        %vm1197 = vcmp.lt.s32.totalorder %v1063, 0
        %v1198 = vsub.s32 0, %v1063
        %v1199 = vsel %vm1197, %v1198, %v1063
        %v1200 = vshrl.u32 %v1199, 4
        %v1201 = vand.u32 %v1199, 15
        %v1202 = vsub.s32 0, %v1201
        %v1203 = vsel %vm1197, %v1202, %v1201
        %vm1204 = vcmp.lt.s32.totalorder %v1064, 0
        %v1205 = vsub.s32 0, %v1064
        %v1206 = vsel %vm1204, %v1205, %v1064
        %v1207 = vshrl.u32 %v1206, 4
        %v1208 = vand.u32 %v1206, 15
        %v1209 = vsub.s32 0, %v1208
        %v1210 = vsel %vm1204, %v1209, %v1208
        %vm1211 = vcmp.lt.s32.totalorder %v1065, 0
        %v1212 = vsub.s32 0, %v1065
        %v1213 = vsel %vm1211, %v1212, %v1065
        %v1214 = vshrl.u32 %v1213, 4
        %v1215 = vand.u32 %v1213, 15
        %v1216 = vsub.s32 0, %v1215
        %v1217 = vsel %vm1211, %v1216, %v1215
        %vm1218 = vcmp.lt.s32.totalorder %v1066, 0
        %v1219 = vsub.s32 0, %v1066
        %v1220 = vsel %vm1218, %v1219, %v1066
        %v1221 = vshrl.u32 %v1220, 4
        %v1222 = vand.u32 %v1220, 15
        %v1223 = vsub.s32 0, %v1222
        %v1224 = vsel %vm1218, %v1223, %v1222
        %vm1225 = vcmp.lt.s32.totalorder %v1067, 0
        %v1226 = vsub.s32 0, %v1067
        %v1227 = vsel %vm1225, %v1226, %v1067
        %v1228 = vshrl.u32 %v1227, 4
        %v1229 = vand.u32 %v1227, 15
        %v1230 = vsub.s32 0, %v1229
        %v1231 = vsel %vm1225, %v1230, %v1229
        %vm1232 = vcmp.lt.s32.totalorder %v1068, 0
        %v1233 = vsub.s32 0, %v1068
        %v1234 = vsel %vm1232, %v1233, %v1068
        %v1235 = vshrl.u32 %v1234, 4
        %v1236 = vand.u32 %v1234, 15
        %v1237 = vsub.s32 0, %v1236
        %v1238 = vsel %vm1232, %v1237, %v1236
        %vm1239 = vcmp.lt.s32.totalorder %v1069, 0
        %v1240 = vsub.s32 0, %v1069
        %v1241 = vsel %vm1239, %v1240, %v1069
        %v1242 = vshrl.u32 %v1241, 4
        %v1243 = vand.u32 %v1241, 15
        %v1244 = vsub.s32 0, %v1243
        %v1245 = vsel %vm1239, %v1244, %v1243
        %vm1246 = vcmp.lt.s32.totalorder %v1070, 0
        %v1247 = vsub.s32 0, %v1070
        %v1248 = vsel %vm1246, %v1247, %v1070
        %v1249 = vshrl.u32 %v1248, 4
        %v1250 = vand.u32 %v1248, 15
        %v1251 = vsub.s32 0, %v1250
        %v1252 = vsel %vm1246, %v1251, %v1250
        %vm1253 = vcmp.lt.s32.totalorder %v1071, 0
        %v1254 = vsub.s32 0, %v1071
        %v1255 = vsel %vm1253, %v1254, %v1071
        %v1256 = vshrl.u32 %v1255, 4
        %v1257 = vand.u32 %v1255, 15
        %v1258 = vsub.s32 0, %v1257
        %v1259 = vsel %vm1253, %v1258, %v1257
        %vm1260 = vcmp.lt.s32.totalorder %v1072, 0
        %v1261 = vsub.s32 0, %v1072
        %v1262 = vsel %vm1260, %v1261, %v1072
        %v1263 = vshrl.u32 %v1262, 4
        %v1264 = vand.u32 %v1262, 15
        %v1265 = vsub.s32 0, %v1264
        %v1266 = vsel %vm1260, %v1265, %v1264
        %vm1267 = vcmp.lt.s32.totalorder %v1073, 0
        %v1268 = vsub.s32 0, %v1073
        %v1269 = vsel %vm1267, %v1268, %v1073
        %v1270 = vshrl.u32 %v1269, 4
        %v1271 = vand.u32 %v1269, 15
        %v1272 = vsub.s32 0, %v1271
        %v1273 = vsel %vm1267, %v1272, %v1271
        %vm1274 = vcmp.lt.s32.totalorder %v1074, 0
        %v1275 = vsub.s32 0, %v1074
        %v1276 = vsel %vm1274, %v1275, %v1074
        %v1277 = vshrl.u32 %v1276, 4
        %v1278 = vand.u32 %v1276, 15
        %v1279 = vsub.s32 0, %v1278
        %v1280 = vsel %vm1274, %v1279, %v1278
        %vm1281 = vcmp.lt.s32.totalorder %v1075, 0
        %v1282 = vsub.s32 0, %v1075
        %v1283 = vsel %vm1281, %v1282, %v1075
        %v1284 = vshrl.u32 %v1283, 4
        %v1285 = vand.u32 %v1283, 15
        %v1286 = vsub.s32 0, %v1285
        %v1287 = vsel %vm1281, %v1286, %v1285
        %vm1288 = vcmp.lt.s32.totalorder %v1076, 0
        %v1289 = vsub.s32 0, %v1076
        %v1290 = vsel %vm1288, %v1289, %v1076
        %v1291 = vshrl.u32 %v1290, 4
        %v1292 = vand.u32 %v1290, 15
        %v1293 = vsub.s32 0, %v1292
        %v1294 = vsel %vm1288, %v1293, %v1292
        %vm1295 = vcmp.lt.s32.totalorder %v1077, 0
        %v1296 = vsub.s32 0, %v1077
        %v1297 = vsel %vm1295, %v1296, %v1077
        %v1298 = vshrl.u32 %v1297, 4
        %v1299 = vand.u32 %v1297, 15
        %v1300 = vsub.s32 0, %v1299
        %v1301 = vsel %vm1295, %v1300, %v1299
        %vm1302 = vcmp.ne.s32.totalorder %v1084, 0
        %vm1303 = vcmp.ne.s32.totalorder %v1091, 0
        %vm1304 = vcmp.ne.s32.totalorder %v1098, 0
        %vm1305 = vcmp.ne.s32.totalorder %v1105, 0
        %vm1306 = vcmp.ne.s32.totalorder %v1112, 0
        %vm1307 = vcmp.ne.s32.totalorder %v1119, 0
        %vm1308 = vcmp.ne.s32.totalorder %v1126, 0
        %vm1309 = vcmp.ne.s32.totalorder %v1133, 0
        %vm1310 = vcmp.ne.s32.totalorder %v1140, 0
        %vm1311 = vcmp.ne.s32.totalorder %v1147, 0
        %vm1312 = vcmp.ne.s32.totalorder %v1154, 0
        %vm1313 = vcmp.ne.s32.totalorder %v1161, 0
        %vm1314 = vcmp.ne.s32.totalorder %v1168, 0
        %vm1315 = vcmp.ne.s32.totalorder %v1175, 0
        %vm1316 = vcmp.ne.s32.totalorder %v1182, 0
        %vm1317 = vcmp.ne.s32.totalorder %v1189, 0
        %vm1318 = vcmp.ne.s32.totalorder %v1196, 0
        %vm1319 = vcmp.ne.s32.totalorder %v1203, 0
        %vm1320 = vcmp.ne.s32.totalorder %v1210, 0
        %vm1321 = vcmp.ne.s32.totalorder %v1217, 0
        %vm1322 = vcmp.ne.s32.totalorder %v1224, 0
        %vm1323 = vcmp.ne.s32.totalorder %v1231, 0
        %vm1324 = vcmp.ne.s32.totalorder %v1238, 0
        %vm1325 = vcmp.ne.s32.totalorder %v1245, 0
        %vm1326 = vcmp.ne.s32.totalorder %v1252, 0
        %vm1327 = vcmp.ne.s32.totalorder %v1259, 0
        %vm1328 = vcmp.ne.s32.totalorder %v1266, 0
        %vm1329 = vcmp.ne.s32.totalorder %v1273, 0
        %vm1330 = vcmp.ne.s32.totalorder %v1280, 0
        %vm1331 = vcmp.ne.s32.totalorder %v1287, 0
        %vm1332 = vcmp.ne.s32.totalorder %v1294, 0
        %vm1333 = vcmp.ne.s32.totalorder %v1301, 0
        %vm1334 = vcmp.lt.s32.totalorder %v1084, 0
        %vm1335 = vcmp.lt.s32.totalorder %v1091, 0
        %vm1336 = vcmp.lt.s32.totalorder %v1098, 0
        %vm1337 = vcmp.lt.s32.totalorder %v1105, 0
        %vm1338 = vcmp.lt.s32.totalorder %v1112, 0
        %vm1339 = vcmp.lt.s32.totalorder %v1119, 0
        %vm1340 = vcmp.lt.s32.totalorder %v1126, 0
        %vm1341 = vcmp.lt.s32.totalorder %v1133, 0
        %vm1342 = vcmp.lt.s32.totalorder %v1140, 0
        %vm1343 = vcmp.lt.s32.totalorder %v1147, 0
        %vm1344 = vcmp.lt.s32.totalorder %v1154, 0
        %vm1345 = vcmp.lt.s32.totalorder %v1161, 0
        %vm1346 = vcmp.lt.s32.totalorder %v1168, 0
        %vm1347 = vcmp.lt.s32.totalorder %v1175, 0
        %vm1348 = vcmp.lt.s32.totalorder %v1182, 0
        %vm1349 = vcmp.lt.s32.totalorder %v1189, 0
        %vm1350 = vcmp.lt.s32.totalorder %v1196, 0
        %vm1351 = vcmp.lt.s32.totalorder %v1203, 0
        %vm1352 = vcmp.lt.s32.totalorder %v1210, 0
        %vm1353 = vcmp.lt.s32.totalorder %v1217, 0
        %vm1354 = vcmp.lt.s32.totalorder %v1224, 0
        %vm1355 = vcmp.lt.s32.totalorder %v1231, 0
        %vm1356 = vcmp.lt.s32.totalorder %v1238, 0
        %vm1357 = vcmp.lt.s32.totalorder %v1245, 0
        %vm1358 = vcmp.lt.s32.totalorder %v1252, 0
        %vm1359 = vcmp.lt.s32.totalorder %v1259, 0
        %vm1360 = vcmp.lt.s32.totalorder %v1266, 0
        %vm1361 = vcmp.lt.s32.totalorder %v1273, 0
        %vm1362 = vcmp.lt.s32.totalorder %v1280, 0
        %vm1363 = vcmp.lt.s32.totalorder %v1287, 0
        %vm1364 = vcmp.lt.s32.totalorder %v1294, 0
        %vm1365 = vcmp.lt.s32.totalorder %v1301, 0
        %vm1366 = vmand %vm1334, %vm1302
        %vm1367 = vmand %vm1335, %vm1303
        %vm1368 = vmand %vm1336, %vm1304
        %vm1369 = vmand %vm1337, %vm1305
        %vm1370 = vmand %vm1338, %vm1306
        %vm1371 = vmand %vm1339, %vm1307
        %vm1372 = vmand %vm1340, %vm1308
        %vm1373 = vmand %vm1341, %vm1309
        %vm1374 = vmand %vm1342, %vm1310
        %vm1375 = vmand %vm1343, %vm1311
        %vm1376 = vmand %vm1344, %vm1312
        %vm1377 = vmand %vm1345, %vm1313
        %vm1378 = vmand %vm1346, %vm1314
        %vm1379 = vmand %vm1347, %vm1315
        %vm1380 = vmand %vm1348, %vm1316
        %vm1381 = vmand %vm1349, %vm1317
        %vm1382 = vmand %vm1350, %vm1318
        %vm1383 = vmand %vm1351, %vm1319
        %vm1384 = vmand %vm1352, %vm1320
        %vm1385 = vmand %vm1353, %vm1321
        %vm1386 = vmand %vm1354, %vm1322
        %vm1387 = vmand %vm1355, %vm1323
        %vm1388 = vmand %vm1356, %vm1324
        %vm1389 = vmand %vm1357, %vm1325
        %vm1390 = vmand %vm1358, %vm1326
        %vm1391 = vmand %vm1359, %vm1327
        %vm1392 = vmand %vm1360, %vm1328
        %vm1393 = vmand %vm1361, %vm1329
        %vm1394 = vmand %vm1362, %vm1330
        %vm1395 = vmand %vm1363, %vm1331
        %vm1396 = vmand %vm1364, %vm1332
        %vm1397 = vmand %vm1365, %vm1333
        %v1398 = vadd.s32 %v1084, 16
        %v1399 = vadd.s32 %v1091, 16
        %v1400 = vadd.s32 %v1098, 16
        %v1401 = vadd.s32 %v1105, 16
        %v1402 = vadd.s32 %v1112, 16
        %v1403 = vadd.s32 %v1119, 16
        %v1404 = vadd.s32 %v1126, 16
        %v1405 = vadd.s32 %v1133, 16
        %v1406 = vadd.s32 %v1140, 16
        %v1407 = vadd.s32 %v1147, 16
        %v1408 = vadd.s32 %v1154, 16
        %v1409 = vadd.s32 %v1161, 16
        %v1410 = vadd.s32 %v1168, 16
        %v1411 = vadd.s32 %v1175, 16
        %v1412 = vadd.s32 %v1182, 16
        %v1413 = vadd.s32 %v1189, 16
        %v1414 = vadd.s32 %v1196, 16
        %v1415 = vadd.s32 %v1203, 16
        %v1416 = vadd.s32 %v1210, 16
        %v1417 = vadd.s32 %v1217, 16
        %v1418 = vadd.s32 %v1224, 16
        %v1419 = vadd.s32 %v1231, 16
        %v1420 = vadd.s32 %v1238, 16
        %v1421 = vadd.s32 %v1245, 16
        %v1422 = vadd.s32 %v1252, 16
        %v1423 = vadd.s32 %v1259, 16
        %v1424 = vadd.s32 %v1266, 16
        %v1425 = vadd.s32 %v1273, 16
        %v1426 = vadd.s32 %v1280, 16
        %v1427 = vadd.s32 %v1287, 16
        %v1428 = vadd.s32 %v1294, 16
        %v1429 = vadd.s32 %v1301, 16
        %v1430 = vsel %vm1366, %v1398, %v1084
        %v1431 = vsel %vm1367, %v1399, %v1091
        %v1432 = vsel %vm1368, %v1400, %v1098
        %v1433 = vsel %vm1369, %v1401, %v1105
        %v1434 = vsel %vm1370, %v1402, %v1112
        %v1435 = vsel %vm1371, %v1403, %v1119
        %v1436 = vsel %vm1372, %v1404, %v1126
        %v1437 = vsel %vm1373, %v1405, %v1133
        %v1438 = vsel %vm1374, %v1406, %v1140
        %v1439 = vsel %vm1375, %v1407, %v1147
        %v1440 = vsel %vm1376, %v1408, %v1154
        %v1441 = vsel %vm1377, %v1409, %v1161
        %v1442 = vsel %vm1378, %v1410, %v1168
        %v1443 = vsel %vm1379, %v1411, %v1175
        %v1444 = vsel %vm1380, %v1412, %v1182
        %v1445 = vsel %vm1381, %v1413, %v1189
        %v1446 = vsel %vm1382, %v1414, %v1196
        %v1447 = vsel %vm1383, %v1415, %v1203
        %v1448 = vsel %vm1384, %v1416, %v1210
        %v1449 = vsel %vm1385, %v1417, %v1217
        %v1450 = vsel %vm1386, %v1418, %v1224
        %v1451 = vsel %vm1387, %v1419, %v1231
        %v1452 = vsel %vm1388, %v1420, %v1238
        %v1453 = vsel %vm1389, %v1421, %v1245
        %v1454 = vsel %vm1390, %v1422, %v1252
        %v1455 = vsel %vm1391, %v1423, %v1259
        %v1456 = vsel %vm1392, %v1424, %v1266
        %v1457 = vsel %vm1393, %v1425, %v1273
        %v1458 = vsel %vm1394, %v1426, %v1280
        %v1459 = vsel %vm1395, %v1427, %v1287
        %v1460 = vsel %vm1396, %v1428, %v1294
        %v1461 = vsel %vm1397, %v1429, %v1301
        %vm1462 = vcmp.ge.s32.totalorder %v1430, 1
        %vm1463 = vcmp.ge.s32.totalorder %v1431, 1
        %vm1464 = vcmp.ge.s32.totalorder %v1432, 1
        %vm1465 = vcmp.ge.s32.totalorder %v1433, 1
        %vm1466 = vcmp.ge.s32.totalorder %v1434, 1
        %vm1467 = vcmp.ge.s32.totalorder %v1435, 1
        %vm1468 = vcmp.ge.s32.totalorder %v1436, 1
        %vm1469 = vcmp.ge.s32.totalorder %v1437, 1
        %vm1470 = vcmp.ge.s32.totalorder %v1438, 1
        %vm1471 = vcmp.ge.s32.totalorder %v1439, 1
        %vm1472 = vcmp.ge.s32.totalorder %v1440, 1
        %vm1473 = vcmp.ge.s32.totalorder %v1441, 1
        %vm1474 = vcmp.ge.s32.totalorder %v1442, 1
        %vm1475 = vcmp.ge.s32.totalorder %v1443, 1
        %vm1476 = vcmp.ge.s32.totalorder %v1444, 1
        %vm1477 = vcmp.ge.s32.totalorder %v1445, 1
        %vm1478 = vcmp.ge.s32.totalorder %v1446, 1
        %vm1479 = vcmp.ge.s32.totalorder %v1447, 1
        %vm1480 = vcmp.ge.s32.totalorder %v1448, 1
        %vm1481 = vcmp.ge.s32.totalorder %v1449, 1
        %vm1482 = vcmp.ge.s32.totalorder %v1450, 1
        %vm1483 = vcmp.ge.s32.totalorder %v1451, 1
        %vm1484 = vcmp.ge.s32.totalorder %v1452, 1
        %vm1485 = vcmp.ge.s32.totalorder %v1453, 1
        %vm1486 = vcmp.ge.s32.totalorder %v1454, 1
        %vm1487 = vcmp.ge.s32.totalorder %v1455, 1
        %vm1488 = vcmp.ge.s32.totalorder %v1456, 1
        %vm1489 = vcmp.ge.s32.totalorder %v1457, 1
        %vm1490 = vcmp.ge.s32.totalorder %v1458, 1
        %vm1491 = vcmp.ge.s32.totalorder %v1459, 1
        %vm1492 = vcmp.ge.s32.totalorder %v1460, 1
        %vm1493 = vcmp.ge.s32.totalorder %v1461, 1
        %vm1494 = vcmp.lt.s32.totalorder %v1430, 15
        %vm1495 = vcmp.lt.s32.totalorder %v1431, 15
        %vm1496 = vcmp.lt.s32.totalorder %v1432, 15
        %vm1497 = vcmp.lt.s32.totalorder %v1433, 15
        %vm1498 = vcmp.lt.s32.totalorder %v1434, 15
        %vm1499 = vcmp.lt.s32.totalorder %v1435, 15
        %vm1500 = vcmp.lt.s32.totalorder %v1436, 15
        %vm1501 = vcmp.lt.s32.totalorder %v1437, 15
        %vm1502 = vcmp.lt.s32.totalorder %v1438, 15
        %vm1503 = vcmp.lt.s32.totalorder %v1439, 15
        %vm1504 = vcmp.lt.s32.totalorder %v1440, 15
        %vm1505 = vcmp.lt.s32.totalorder %v1441, 15
        %vm1506 = vcmp.lt.s32.totalorder %v1442, 15
        %vm1507 = vcmp.lt.s32.totalorder %v1443, 15
        %vm1508 = vcmp.lt.s32.totalorder %v1444, 15
        %vm1509 = vcmp.lt.s32.totalorder %v1445, 15
        %vm1510 = vcmp.lt.s32.totalorder %v1446, 15
        %vm1511 = vcmp.lt.s32.totalorder %v1447, 15
        %vm1512 = vcmp.lt.s32.totalorder %v1448, 15
        %vm1513 = vcmp.lt.s32.totalorder %v1449, 15
        %vm1514 = vcmp.lt.s32.totalorder %v1450, 15
        %vm1515 = vcmp.lt.s32.totalorder %v1451, 15
        %vm1516 = vcmp.lt.s32.totalorder %v1452, 15
        %vm1517 = vcmp.lt.s32.totalorder %v1453, 15
        %vm1518 = vcmp.lt.s32.totalorder %v1454, 15
        %vm1519 = vcmp.lt.s32.totalorder %v1455, 15
        %vm1520 = vcmp.lt.s32.totalorder %v1456, 15
        %vm1521 = vcmp.lt.s32.totalorder %v1457, 15
        %vm1522 = vcmp.lt.s32.totalorder %v1458, 15
        %vm1523 = vcmp.lt.s32.totalorder %v1459, 15
        %vm1524 = vcmp.lt.s32.totalorder %v1460, 15
        %vm1525 = vcmp.lt.s32.totalorder %v1461, 15
        %vm1526 = vcmp.ge.s32.totalorder %v1046, 16
        %vm1527 = vcmp.ge.s32.totalorder %v1047, 16
        %vm1528 = vcmp.ge.s32.totalorder %v1048, 16
        %vm1529 = vcmp.ge.s32.totalorder %v1049, 16
        %vm1530 = vcmp.ge.s32.totalorder %v1050, 16
        %vm1531 = vcmp.ge.s32.totalorder %v1051, 16
        %vm1532 = vcmp.ge.s32.totalorder %v1052, 16
        %vm1533 = vcmp.ge.s32.totalorder %v1053, 16
        %vm1534 = vcmp.ge.s32.totalorder %v1054, 16
        %vm1535 = vcmp.ge.s32.totalorder %v1055, 16
        %vm1536 = vcmp.ge.s32.totalorder %v1056, 16
        %vm1537 = vcmp.ge.s32.totalorder %v1057, 16
        %vm1538 = vcmp.ge.s32.totalorder %v1058, 16
        %vm1539 = vcmp.ge.s32.totalorder %v1059, 16
        %vm1540 = vcmp.ge.s32.totalorder %v1060, 16
        %vm1541 = vcmp.ge.s32.totalorder %v1061, 16
        %vm1542 = vcmp.ge.s32.totalorder %v1062, 16
        %vm1543 = vcmp.ge.s32.totalorder %v1063, 16
        %vm1544 = vcmp.ge.s32.totalorder %v1064, 16
        %vm1545 = vcmp.ge.s32.totalorder %v1065, 16
        %vm1546 = vcmp.ge.s32.totalorder %v1066, 16
        %vm1547 = vcmp.ge.s32.totalorder %v1067, 16
        %vm1548 = vcmp.ge.s32.totalorder %v1068, 16
        %vm1549 = vcmp.ge.s32.totalorder %v1069, 16
        %vm1550 = vcmp.ge.s32.totalorder %v1070, 16
        %vm1551 = vcmp.ge.s32.totalorder %v1071, 16
        %vm1552 = vcmp.ge.s32.totalorder %v1072, 16
        %vm1553 = vcmp.ge.s32.totalorder %v1073, 16
        %vm1554 = vcmp.ge.s32.totalorder %v1074, 16
        %vm1555 = vcmp.ge.s32.totalorder %v1075, 16
        %vm1556 = vcmp.ge.s32.totalorder %v1076, 16
        %vm1557 = vcmp.ge.s32.totalorder %v1077, 16
        %vm1558 = vcmp.lt.s32.totalorder %v1046, 240
        %vm1559 = vcmp.lt.s32.totalorder %v1047, 240
        %vm1560 = vcmp.lt.s32.totalorder %v1048, 240
        %vm1561 = vcmp.lt.s32.totalorder %v1049, 240
        %vm1562 = vcmp.lt.s32.totalorder %v1050, 240
        %vm1563 = vcmp.lt.s32.totalorder %v1051, 240
        %vm1564 = vcmp.lt.s32.totalorder %v1052, 240
        %vm1565 = vcmp.lt.s32.totalorder %v1053, 240
        %vm1566 = vcmp.lt.s32.totalorder %v1054, 240
        %vm1567 = vcmp.lt.s32.totalorder %v1055, 240
        %vm1568 = vcmp.lt.s32.totalorder %v1056, 240
        %vm1569 = vcmp.lt.s32.totalorder %v1057, 240
        %vm1570 = vcmp.lt.s32.totalorder %v1058, 240
        %vm1571 = vcmp.lt.s32.totalorder %v1059, 240
        %vm1572 = vcmp.lt.s32.totalorder %v1060, 240
        %vm1573 = vcmp.lt.s32.totalorder %v1061, 240
        %vm1574 = vcmp.lt.s32.totalorder %v1062, 240
        %vm1575 = vcmp.lt.s32.totalorder %v1063, 240
        %vm1576 = vcmp.lt.s32.totalorder %v1064, 240
        %vm1577 = vcmp.lt.s32.totalorder %v1065, 240
        %vm1578 = vcmp.lt.s32.totalorder %v1066, 240
        %vm1579 = vcmp.lt.s32.totalorder %v1067, 240
        %vm1580 = vcmp.lt.s32.totalorder %v1068, 240
        %vm1581 = vcmp.lt.s32.totalorder %v1069, 240
        %vm1582 = vcmp.lt.s32.totalorder %v1070, 240
        %vm1583 = vcmp.lt.s32.totalorder %v1071, 240
        %vm1584 = vcmp.lt.s32.totalorder %v1072, 240
        %vm1585 = vcmp.lt.s32.totalorder %v1073, 240
        %vm1586 = vcmp.lt.s32.totalorder %v1074, 240
        %vm1587 = vcmp.lt.s32.totalorder %v1075, 240
        %vm1588 = vcmp.lt.s32.totalorder %v1076, 240
        %vm1589 = vcmp.lt.s32.totalorder %v1077, 240
        %v1590 = vld [vmem:[#allocation13 + $0x5] sm:$0x1]
        %v1591 = vld [vmem:[#allocation13 + $0x6] sm:$0x1]
        %v1592 = vld [vmem:[#allocation7] sm:$0xf]
        %v1593 = vld [vmem:[#allocation7 + $0x4] sm:$0xf]
        %v1594 = vld [vmem:[#allocation7 + $0x8] sm:$0xf]
        %v1595 = vld [vmem:[#allocation7 + $0xc] sm:$0xf]
        %v1596 = vld [vmem:[#allocation7 + $0x10] sm:$0xf]
        %v1597 = vld [vmem:[#allocation7 + $0x14] sm:$0xf]
        %v1598 = vld [vmem:[#allocation7 + $0x18] sm:$0xf]
        %v1599 = vld [vmem:[#allocation7 + $0x1c] sm:$0xf]
        %v1600 = vld [vmem:[#allocation7 + $0x20] sm:$0xf]
        %v1601 = vld [vmem:[#allocation7 + $0x24] sm:$0xf]
        %v1602 = vld [vmem:[#allocation7 + $0x28] sm:$0xf]
        %v1603 = vld [vmem:[#allocation7 + $0x2c] sm:$0xf]
        %v1604 = vld [vmem:[#allocation7 + $0x30] sm:$0xf]
        %v1605 = vld [vmem:[#allocation7 + $0x34] sm:$0xf]
        %v1606 = vld [vmem:[#allocation7 + $0x38] sm:$0xf]
        %v1607 = vld [vmem:[#allocation7 + $0x3c] sm:$0xf]
        %v1608 = vlaneseq
        %v1609 = vshrl.u32 %v1608, 7
        %v1610 = vsub.s32 0, %v1609
        %v1611 = vrot.slane %v1590, %v1610
        %v1628 = vunpack.c.l.b16 %v1592
        %v1629 = vunpack.c.l.b16 %v1593
        %v1630 = vunpack.c.l.b16 %v1594
        %v1631 = vunpack.c.l.b16 %v1595
        %v1632 = vunpack.c.l.b16 %v1596
        %v1633 = vunpack.c.l.b16 %v1597
        %v1634 = vunpack.c.l.b16 %v1598
        %v1635 = vunpack.c.l.b16 %v1599
        %v1636 = vunpack.c.l.b16 %v1600
        %v1637 = vunpack.c.l.b16 %v1601
        %v1638 = vunpack.c.l.b16 %v1602
        %v1639 = vunpack.c.l.b16 %v1603
        %v1640 = vunpack.c.l.b16 %v1604
        %v1641 = vunpack.c.l.b16 %v1605
        %v1642 = vunpack.c.l.b16 %v1606
        %v1643 = vunpack.c.l.b16 %v1607
        %v1644 = vpack.c.b16 %v1629, %v1628
        %v1645 = vpack.c.b16 %v1631, %v1630
        %v1646 = vpack.c.b16 %v1633, %v1632
        %v1647 = vpack.c.b16 %v1635, %v1634
        %v1648 = vpack.c.b16 %v1637, %v1636
        %v1649 = vpack.c.b16 %v1639, %v1638
        %v1650 = vpack.c.b16 %v1641, %v1640
        %v1651 = vpack.c.b16 %v1643, %v1642
        %1660 = vmatprep.subr.bf16.mxu0 0
        %1661 = vmatpush1.bf16.msra.mxu0 %v1644
        %1662 = vmatprep.subr.bf16.mxu0 0
        %1663 = vmatpush1.bf16.msra.mxu0 %v1645
        %1664 = vmatprep.subr.bf16.mxu0 0
        %1665 = vmatpush1.bf16.msra.mxu0 %v1646
        %1666 = vmatprep.subr.bf16.mxu0 0
        %1667 = vmatpush1.bf16.msra.mxu0 %v1647
        %1668 = vmatprep.subr.bf16.mxu0 0
        %1669 = vmatpush1.bf16.msra.mxu0 %v1648
        %1670 = vmatprep.subr.bf16.mxu0 0
        %1671 = vmatpush1.bf16.msra.mxu0 %v1649
        %1672 = vmatprep.subr.bf16.mxu0 0
        %1673 = vmatpush1.bf16.msra.mxu0 %v1650
        %1674 = vmatprep.subr.bf16.mxu0 0
        %1675 = vmatpush1.bf16.msra.mxu0 %v1651
        %1676 = vmatprep.subr.bf16.mxu0 0
        %1677 = vmatpush1.bf16.msra.mxu0 0
        %1678 = vmatprep.subr.bf16.mxu0 0
        %1679 = vmatpush1.bf16.msra.mxu0 0
        %1680 = vmatprep.subr.bf16.mxu0 0
        %1681 = vmatpush1.bf16.msra.mxu0 0
        %1682 = vmatprep.subr.bf16.mxu0 0
        %1683 = vmatpush1.bf16.msra.mxu0 0
        %1684 = vmatprep.subr.bf16.mxu0 0
        %1685 = vmatpush1.bf16.msra.mxu0 0
        %1686 = vmatprep.subr.bf16.mxu0 0
        %1687 = vmatpush1.bf16.msra.mxu0 0
        %1688 = vmatprep.subr.bf16.mxu0 0
        %1689 = vmatpush1.bf16.msra.mxu0 0
        %1690 = vmatprep.subr.bf16.mxu0 0
        %1691 = vmatpush1.bf16.msra.mxu0 0
        %1692 = vmatprep.mubr.bf16.mxu0 0
        %1693 = vmatmul.mubr.bf16.gmra.mrb[0].mxu0 %v1029
        %v1694 = vpop.f32.mrb[0].mxu0
        %v1695 = vadd.f32 %v1611, %v1694
        %v1696 = vpop.f32.mrb[0].mxu0
        %v1697 = vpop.f32.mrb[0].mxu0
        %v1698 = vadd.f32 %v1611, %v1697
        %v1699 = vpop.f32.mrb[0].mxu0
        %1700 = vmatprep.mubr.bf16.mxu0 0
        %1701 = vmatmul.mubr.bf16.gmra.mrb[0].mxu0 %v1030
        %v1702 = vpop.f32.mrb[0].mxu0
        %v1703 = vadd.f32 %v1611, %v1702
        %v1704 = vpop.f32.mrb[0].mxu0
        %v1705 = vpop.f32.mrb[0].mxu0
        %v1706 = vadd.f32 %v1611, %v1705
        %v1707 = vpop.f32.mrb[0].mxu0
        %1708 = vmatprep.mubr.bf16.mxu0 0
        %1709 = vmatmul.mubr.bf16.gmra.mrb[0].mxu0 %v1031
        %v1710 = vpop.f32.mrb[0].mxu0
        %v1711 = vadd.f32 %v1611, %v1710
        %v1712 = vpop.f32.mrb[0].mxu0
        %v1713 = vpop.f32.mrb[0].mxu0
        %v1714 = vadd.f32 %v1611, %v1713
        %v1715 = vpop.f32.mrb[0].mxu0
        %1716 = vmatprep.mubr.bf16.mxu0 0
        %1717 = vmatmul.mubr.bf16.gmra.mrb[0].mxu0 %v1032
        %v1718 = vpop.f32.mrb[0].mxu0
        %v1719 = vadd.f32 %v1611, %v1718
        %v1720 = vpop.f32.mrb[0].mxu0
        %v1721 = vpop.f32.mrb[0].mxu0
        %v1722 = vadd.f32 %v1611, %v1721
        %v1723 = vpop.f32.mrb[0].mxu0
        %1724 = vmatprep.mubr.bf16.mxu0 0
        %1725 = vmatmul.mubr.bf16.gmra.mrb[0].mxu0 %v1033
        %v1726 = vpop.f32.mrb[0].mxu0
        %v1727 = vadd.f32 %v1611, %v1726
        %v1728 = vpop.f32.mrb[0].mxu0
        %v1729 = vpop.f32.mrb[0].mxu0
        %v1730 = vadd.f32 %v1611, %v1729
        %v1731 = vpop.f32.mrb[0].mxu0
        %1732 = vmatprep.mubr.bf16.mxu0 0
        %1733 = vmatmul.mubr.bf16.gmra.mrb[0].mxu0 %v1034
        %v1734 = vpop.f32.mrb[0].mxu0
        %v1735 = vadd.f32 %v1611, %v1734
        %v1736 = vpop.f32.mrb[0].mxu0
        %v1737 = vpop.f32.mrb[0].mxu0
        %v1738 = vadd.f32 %v1611, %v1737
        %v1739 = vpop.f32.mrb[0].mxu0
        %1740 = vmatprep.mubr.bf16.mxu0 0
        %1741 = vmatmul.mubr.bf16.gmra.mrb[0].mxu0 %v1035
        %v1742 = vpop.f32.mrb[0].mxu0
        %v1743 = vadd.f32 %v1611, %v1742
        %v1744 = vpop.f32.mrb[0].mxu0
        %v1745 = vpop.f32.mrb[0].mxu0
        %v1746 = vadd.f32 %v1611, %v1745
        %v1747 = vpop.f32.mrb[0].mxu0
        %1748 = vmatprep.mubr.bf16.mxu0 0
        %1749 = vmatmul.mubr.bf16.gmra.mrb[0].mxu0 %v1036
        %v1750 = vpop.f32.mrb[0].mxu0
        %v1751 = vadd.f32 %v1611, %v1750
        %v1752 = vpop.f32.mrb[0].mxu0
        %v1753 = vpop.f32.mrb[0].mxu0
        %v1754 = vadd.f32 %v1611, %v1753
        %v1755 = vpop.f32.mrb[0].mxu0
        %1756 = vmatprep.mubr.bf16.mxu0 0
        %1757 = vmatmul.mubr.bf16.gmra.mrb[0].mxu0 %v1037
        %v1758 = vpop.f32.mrb[0].mxu0
        %v1759 = vadd.f32 %v1611, %v1758
        %v1760 = vpop.f32.mrb[0].mxu0
        %v1761 = vpop.f32.mrb[0].mxu0
        %v1762 = vadd.f32 %v1611, %v1761
        %v1763 = vpop.f32.mrb[0].mxu0
        %1764 = vmatprep.mubr.bf16.mxu0 0
        %1765 = vmatmul.mubr.bf16.gmra.mrb[0].mxu0 %v1038
        %v1766 = vpop.f32.mrb[0].mxu0
        %v1767 = vadd.f32 %v1611, %v1766
        %v1768 = vpop.f32.mrb[0].mxu0
        %v1769 = vpop.f32.mrb[0].mxu0
        %v1770 = vadd.f32 %v1611, %v1769
        %v1771 = vpop.f32.mrb[0].mxu0
        %1772 = vmatprep.mubr.bf16.mxu0 0
        %1773 = vmatmul.mubr.bf16.gmra.mrb[0].mxu0 %v1039
        %v1774 = vpop.f32.mrb[0].mxu0
        %v1775 = vadd.f32 %v1611, %v1774
        %v1776 = vpop.f32.mrb[0].mxu0
        %v1777 = vpop.f32.mrb[0].mxu0
        %v1778 = vadd.f32 %v1611, %v1777
        %v1779 = vpop.f32.mrb[0].mxu0
        %1780 = vmatprep.mubr.bf16.mxu0 0
        %1781 = vmatmul.mubr.bf16.gmra.mrb[0].mxu0 %v1040
        %v1782 = vpop.f32.mrb[0].mxu0
        %v1783 = vadd.f32 %v1611, %v1782
        %v1784 = vpop.f32.mrb[0].mxu0
        %v1785 = vpop.f32.mrb[0].mxu0
        %v1786 = vadd.f32 %v1611, %v1785
        %v1787 = vpop.f32.mrb[0].mxu0
        %1788 = vmatprep.mubr.bf16.mxu0 0
        %1789 = vmatmul.mubr.bf16.gmra.mrb[0].mxu0 %v1041
        %v1790 = vpop.f32.mrb[0].mxu0
        %v1791 = vadd.f32 %v1611, %v1790
        %v1792 = vpop.f32.mrb[0].mxu0
        %v1793 = vpop.f32.mrb[0].mxu0
        %v1794 = vadd.f32 %v1611, %v1793
        %v1795 = vpop.f32.mrb[0].mxu0
        %1796 = vmatprep.mubr.bf16.mxu0 0
        %1797 = vmatmul.mubr.bf16.gmra.mrb[0].mxu0 %v1042
        %v1798 = vpop.f32.mrb[0].mxu0
        %v1799 = vadd.f32 %v1611, %v1798
        %v1800 = vpop.f32.mrb[0].mxu0
        %v1801 = vpop.f32.mrb[0].mxu0
        %v1802 = vadd.f32 %v1611, %v1801
        %v1803 = vpop.f32.mrb[0].mxu0
        %1804 = vmatprep.mubr.bf16.mxu0 0
        %1805 = vmatmul.mubr.bf16.gmra.mrb[0].mxu0 %v1043
        %v1806 = vpop.f32.mrb[0].mxu0
        %v1807 = vadd.f32 %v1611, %v1806
        %v1808 = vpop.f32.mrb[0].mxu0
        %v1809 = vpop.f32.mrb[0].mxu0
        %v1810 = vadd.f32 %v1611, %v1809
        %v1811 = vpop.f32.mrb[0].mxu0
        %1812 = vmatprep.mubr.bf16.mxu0 0
        %1813 = vmatmul.mubr.bf16.gmra.mrb[0].mxu0 %v1044
        %v1814 = vpop.f32.mrb[0].mxu0
        %v1815 = vadd.f32 %v1611, %v1814
        %v1816 = vpop.f32.mrb[0].mxu0
        %v1817 = vpop.f32.mrb[0].mxu0
        %v1818 = vadd.f32 %v1611, %v1817
        %v1819 = vpop.f32.mrb[0].mxu0
        %1820 = vdwg.mxu0
        %v1821 = vmin.f32 %v1695, 20.0
        %v1822 = vmin.f32 %v1698, 20.0
        %v1823 = vmin.f32 %v1703, 20.0
        %v1824 = vmin.f32 %v1706, 20.0
        %v1825 = vmin.f32 %v1711, 20.0
        %v1826 = vmin.f32 %v1714, 20.0
        %v1827 = vmin.f32 %v1719, 20.0
        %v1828 = vmin.f32 %v1722, 20.0
        %v1829 = vmin.f32 %v1727, 20.0
        %v1830 = vmin.f32 %v1730, 20.0
        %v1831 = vmin.f32 %v1735, 20.0
        %v1832 = vmin.f32 %v1738, 20.0
        %v1833 = vmin.f32 %v1743, 20.0
        %v1834 = vmin.f32 %v1746, 20.0
        %v1835 = vmin.f32 %v1751, 20.0
        %v1836 = vmin.f32 %v1754, 20.0
        %v1837 = vmin.f32 %v1759, 20.0
        %v1838 = vmin.f32 %v1762, 20.0
        %v1839 = vmin.f32 %v1767, 20.0
        %v1840 = vmin.f32 %v1770, 20.0
        %v1841 = vmin.f32 %v1775, 20.0
        %v1842 = vmin.f32 %v1778, 20.0
        %v1843 = vmin.f32 %v1783, 20.0
        %v1844 = vmin.f32 %v1786, 20.0
        %v1845 = vmin.f32 %v1791, 20.0
        %v1846 = vmin.f32 %v1794, 20.0
        %v1847 = vmin.f32 %v1799, 20.0
        %v1848 = vmin.f32 %v1802, 20.0
        %v1849 = vmin.f32 %v1807, 20.0
        %v1850 = vmin.f32 %v1810, 20.0
        %v1851 = vmin.f32 %v1815, 20.0
        %v1852 = vmin.f32 %v1818, 20.0
        %v1853 = vmul.f32 %v1821, 1.442695
        %v1854 = vpow.pop %v1853
        %v1855 = vmul.f32 %v1822, 1.442695
        %v1856 = vpow.pop %v1855
        %v1857 = vmul.f32 %v1823, 1.442695
        %v1858 = vpow.pop %v1857
        %v1859 = vmul.f32 %v1824, 1.442695
        %v1860 = vpow.pop %v1859
        %v1861 = vmul.f32 %v1825, 1.442695
        %v1862 = vpow.pop %v1861
        %v1863 = vmul.f32 %v1826, 1.442695
        %v1864 = vpow.pop %v1863
        %v1865 = vmul.f32 %v1827, 1.442695
        %v1866 = vpow.pop %v1865
        %v1867 = vmul.f32 %v1828, 1.442695
        %v1868 = vpow.pop %v1867
        %v1869 = vmul.f32 %v1829, 1.442695
        %v1870 = vpow.pop %v1869
        %v1871 = vmul.f32 %v1830, 1.442695
        %v1872 = vpow.pop %v1871
        %v1873 = vmul.f32 %v1831, 1.442695
        %v1874 = vpow.pop %v1873
        %v1875 = vmul.f32 %v1832, 1.442695
        %v1876 = vpow.pop %v1875
        %v1877 = vmul.f32 %v1833, 1.442695
        %v1878 = vpow.pop %v1877
        %v1879 = vmul.f32 %v1834, 1.442695
        %v1880 = vpow.pop %v1879
        %v1881 = vmul.f32 %v1835, 1.442695
        %v1882 = vpow.pop %v1881
        %v1883 = vmul.f32 %v1836, 1.442695
        %v1884 = vpow.pop %v1883
        %v1885 = vmul.f32 %v1837, 1.442695
        %v1886 = vpow.pop %v1885
        %v1887 = vmul.f32 %v1838, 1.442695
        %v1888 = vpow.pop %v1887
        %v1889 = vmul.f32 %v1839, 1.442695
        %v1890 = vpow.pop %v1889
        %v1891 = vmul.f32 %v1840, 1.442695
        %v1892 = vpow.pop %v1891
        %v1893 = vmul.f32 %v1841, 1.442695
        %v1894 = vpow.pop %v1893
        %v1895 = vmul.f32 %v1842, 1.442695
        %v1896 = vpow.pop %v1895
        %v1897 = vmul.f32 %v1843, 1.442695
        %v1898 = vpow.pop %v1897
        %v1899 = vmul.f32 %v1844, 1.442695
        %v1900 = vpow.pop %v1899
        %v1901 = vmul.f32 %v1845, 1.442695
        %v1902 = vpow.pop %v1901
        %v1903 = vmul.f32 %v1846, 1.442695
        %v1904 = vpow.pop %v1903
        %v1905 = vmul.f32 %v1847, 1.442695
        %v1906 = vpow.pop %v1905
        %v1907 = vmul.f32 %v1848, 1.442695
        %v1908 = vpow.pop %v1907
        %v1909 = vmul.f32 %v1849, 1.442695
        %v1910 = vpow.pop %v1909
        %v1911 = vmul.f32 %v1850, 1.442695
        %v1912 = vpow.pop %v1911
        %v1913 = vmul.f32 %v1851, 1.442695
        %v1914 = vpow.pop %v1913
        %v1915 = vmul.f32 %v1852, 1.442695
        %v1916 = vpow.pop %v1915
        %v1917 = vadd.f32 %v1854, 2.0
        %v1918 = vadd.f32 %v1856, 2.0
        %v1919 = vadd.f32 %v1858, 2.0
        %v1920 = vadd.f32 %v1860, 2.0
        %v1921 = vadd.f32 %v1862, 2.0
        %v1922 = vadd.f32 %v1864, 2.0
        %v1923 = vadd.f32 %v1866, 2.0
        %v1924 = vadd.f32 %v1868, 2.0
        %v1925 = vadd.f32 %v1870, 2.0
        %v1926 = vadd.f32 %v1872, 2.0
        %v1927 = vadd.f32 %v1874, 2.0
        %v1928 = vadd.f32 %v1876, 2.0
        %v1929 = vadd.f32 %v1878, 2.0
        %v1930 = vadd.f32 %v1880, 2.0
        %v1931 = vadd.f32 %v1882, 2.0
        %v1932 = vadd.f32 %v1884, 2.0
        %v1933 = vadd.f32 %v1886, 2.0
        %v1934 = vadd.f32 %v1888, 2.0
        %v1935 = vadd.f32 %v1890, 2.0
        %v1936 = vadd.f32 %v1892, 2.0
        %v1937 = vadd.f32 %v1894, 2.0
        %v1938 = vadd.f32 %v1896, 2.0
        %v1939 = vadd.f32 %v1898, 2.0
        %v1940 = vadd.f32 %v1900, 2.0
        %v1941 = vadd.f32 %v1902, 2.0
        %v1942 = vadd.f32 %v1904, 2.0
        %v1943 = vadd.f32 %v1906, 2.0
        %v1944 = vadd.f32 %v1908, 2.0
        %v1945 = vadd.f32 %v1910, 2.0
        %v1946 = vadd.f32 %v1912, 2.0
        %v1947 = vadd.f32 %v1914, 2.0
        %v1948 = vadd.f32 %v1916, 2.0
        %v1949 = vmul.f32 %v1854, %v1917
        %v1950 = vmul.f32 %v1856, %v1918
        %v1951 = vmul.f32 %v1858, %v1919
        %v1952 = vmul.f32 %v1860, %v1920
        %v1953 = vmul.f32 %v1862, %v1921
        %v1954 = vmul.f32 %v1864, %v1922
        %v1955 = vmul.f32 %v1866, %v1923
        %v1956 = vmul.f32 %v1868, %v1924
        %v1957 = vmul.f32 %v1870, %v1925
        %v1958 = vmul.f32 %v1872, %v1926
        %v1959 = vmul.f32 %v1874, %v1927
        %v1960 = vmul.f32 %v1876, %v1928
        %v1961 = vmul.f32 %v1878, %v1929
        %v1962 = vmul.f32 %v1880, %v1930
        %v1963 = vmul.f32 %v1882, %v1931
        %v1964 = vmul.f32 %v1884, %v1932
        %v1965 = vmul.f32 %v1886, %v1933
        %v1966 = vmul.f32 %v1888, %v1934
        %v1967 = vmul.f32 %v1890, %v1935
        %v1968 = vmul.f32 %v1892, %v1936
        %v1969 = vmul.f32 %v1894, %v1937
        %v1970 = vmul.f32 %v1896, %v1938
        %v1971 = vmul.f32 %v1898, %v1939
        %v1972 = vmul.f32 %v1900, %v1940
        %v1973 = vmul.f32 %v1902, %v1941
        %v1974 = vmul.f32 %v1904, %v1942
        %v1975 = vmul.f32 %v1906, %v1943
        %v1976 = vmul.f32 %v1908, %v1944
        %v1977 = vmul.f32 %v1910, %v1945
        %v1978 = vmul.f32 %v1912, %v1946
        %v1979 = vmul.f32 %v1914, %v1947
        %v1980 = vmul.f32 %v1916, %v1948
        %v1981 = vmul.f32 %v1695, %v1949
        %v1982 = vmul.f32 %v1698, %v1950
        %v1983 = vmul.f32 %v1703, %v1951
        %v1984 = vmul.f32 %v1706, %v1952
        %v1985 = vmul.f32 %v1711, %v1953
        %v1986 = vmul.f32 %v1714, %v1954
        %v1987 = vmul.f32 %v1719, %v1955
        %v1988 = vmul.f32 %v1722, %v1956
        %v1989 = vmul.f32 %v1727, %v1957
        %v1990 = vmul.f32 %v1730, %v1958
        %v1991 = vmul.f32 %v1735, %v1959
        %v1992 = vmul.f32 %v1738, %v1960
        %v1993 = vmul.f32 %v1743, %v1961
        %v1994 = vmul.f32 %v1746, %v1962
        %v1995 = vmul.f32 %v1751, %v1963
        %v1996 = vmul.f32 %v1754, %v1964
        %v1997 = vmul.f32 %v1759, %v1965
        %v1998 = vmul.f32 %v1762, %v1966
        %v1999 = vmul.f32 %v1767, %v1967
        %v2000 = vmul.f32 %v1770, %v1968
        %v2001 = vmul.f32 %v1775, %v1969
        %v2002 = vmul.f32 %v1778, %v1970
        %v2003 = vmul.f32 %v1783, %v1971
        %v2004 = vmul.f32 %v1786, %v1972
        %v2005 = vmul.f32 %v1791, %v1973
        %v2006 = vmul.f32 %v1794, %v1974
        %v2007 = vmul.f32 %v1799, %v1975
        %v2008 = vmul.f32 %v1802, %v1976
        %v2009 = vmul.f32 %v1807, %v1977
        %v2010 = vmul.f32 %v1810, %v1978
        %v2011 = vmul.f32 %v1815, %v1979
        %v2012 = vmul.f32 %v1818, %v1980
        %v2013 = vadd.f32 %v1949, 2.0
        %v2014 = vadd.f32 %v1950, 2.0
        %v2015 = vadd.f32 %v1951, 2.0
        %v2016 = vadd.f32 %v1952, 2.0
        %v2017 = vadd.f32 %v1953, 2.0
        %v2018 = vadd.f32 %v1954, 2.0
        %v2019 = vadd.f32 %v1955, 2.0
        %v2020 = vadd.f32 %v1956, 2.0
        %v2021 = vadd.f32 %v1957, 2.0
        %v2022 = vadd.f32 %v1958, 2.0
        %v2023 = vadd.f32 %v1959, 2.0
        %v2024 = vadd.f32 %v1960, 2.0
        %v2025 = vadd.f32 %v1961, 2.0
        %v2026 = vadd.f32 %v1962, 2.0
        %v2027 = vadd.f32 %v1963, 2.0
        %v2028 = vadd.f32 %v1964, 2.0
        %v2029 = vadd.f32 %v1965, 2.0
        %v2030 = vadd.f32 %v1966, 2.0
        %v2031 = vadd.f32 %v1967, 2.0
        %v2032 = vadd.f32 %v1968, 2.0
        %v2033 = vadd.f32 %v1969, 2.0
        %v2034 = vadd.f32 %v1970, 2.0
        %v2035 = vadd.f32 %v1971, 2.0
        %v2036 = vadd.f32 %v1972, 2.0
        %v2037 = vadd.f32 %v1973, 2.0
        %v2038 = vadd.f32 %v1974, 2.0
        %v2039 = vadd.f32 %v1975, 2.0
        %v2040 = vadd.f32 %v1976, 2.0
        %v2041 = vadd.f32 %v1977, 2.0
        %v2042 = vadd.f32 %v1978, 2.0
        %v2043 = vadd.f32 %v1979, 2.0
        %v2044 = vadd.f32 %v1980, 2.0
        %v2045 = vrcp.pop %v2013
        %v2046 = vrcp.pop %v2014
        %v2047 = vrcp.pop %v2015
        %v2048 = vrcp.pop %v2016
        %v2049 = vrcp.pop %v2017
        %v2050 = vrcp.pop %v2018
        %v2051 = vrcp.pop %v2019
        %v2052 = vrcp.pop %v2020
        %v2053 = vrcp.pop %v2021
        %v2054 = vrcp.pop %v2022
        %v2055 = vrcp.pop %v2023
        %v2056 = vrcp.pop %v2024
        %v2057 = vrcp.pop %v2025
        %v2058 = vrcp.pop %v2026
        %v2059 = vrcp.pop %v2027
        %v2060 = vrcp.pop %v2028
        %v2061 = vrcp.pop %v2029
        %v2062 = vrcp.pop %v2030
        %v2063 = vrcp.pop %v2031
        %v2064 = vrcp.pop %v2032
        %v2065 = vrcp.pop %v2033
        %v2066 = vrcp.pop %v2034
        %v2067 = vrcp.pop %v2035
        %v2068 = vrcp.pop %v2036
        %v2069 = vrcp.pop %v2037
        %v2070 = vrcp.pop %v2038
        %v2071 = vrcp.pop %v2039
        %v2072 = vrcp.pop %v2040
        %v2073 = vrcp.pop %v2041
        %v2074 = vrcp.pop %v2042
        %v2075 = vrcp.pop %v2043
        %v2076 = vrcp.pop %v2044
        %v2077 = vmul.f32 %v1981, %v2045
        %v2078 = vmul.f32 %v1982, %v2046
        %v2079 = vmul.f32 %v1983, %v2047
        %v2080 = vmul.f32 %v1984, %v2048
        %v2081 = vmul.f32 %v1985, %v2049
        %v2082 = vmul.f32 %v1986, %v2050
        %v2083 = vmul.f32 %v1987, %v2051
        %v2084 = vmul.f32 %v1988, %v2052
        %v2085 = vmul.f32 %v1989, %v2053
        %v2086 = vmul.f32 %v1990, %v2054
        %v2087 = vmul.f32 %v1991, %v2055
        %v2088 = vmul.f32 %v1992, %v2056
        %v2089 = vmul.f32 %v1993, %v2057
        %v2090 = vmul.f32 %v1994, %v2058
        %v2091 = vmul.f32 %v1995, %v2059
        %v2092 = vmul.f32 %v1996, %v2060
        %v2093 = vmul.f32 %v1997, %v2061
        %v2094 = vmul.f32 %v1998, %v2062
        %v2095 = vmul.f32 %v1999, %v2063
        %v2096 = vmul.f32 %v2000, %v2064
        %v2097 = vmul.f32 %v2001, %v2065
        %v2098 = vmul.f32 %v2002, %v2066
        %v2099 = vmul.f32 %v2003, %v2067
        %v2100 = vmul.f32 %v2004, %v2068
        %v2101 = vmul.f32 %v2005, %v2069
        %v2102 = vmul.f32 %v2006, %v2070
        %v2103 = vmul.f32 %v2007, %v2071
        %v2104 = vmul.f32 %v2008, %v2072
        %v2105 = vmul.f32 %v2009, %v2073
        %v2106 = vmul.f32 %v2010, %v2074
        %v2107 = vmul.f32 %v2011, %v2075
        %v2108 = vmul.f32 %v2012, %v2076
        %v2109 = vrot.slane %v2077, 7
        %v2110 = vrot.slane %v2078, 7
        %v2111 = vrot.slane %v2079, 7
        %v2112 = vrot.slane %v2080, 7
        %v2113 = vrot.slane %v2081, 7
        %v2114 = vrot.slane %v2082, 7
        %v2115 = vrot.slane %v2083, 7
        %v2116 = vrot.slane %v2084, 7
        %v2117 = vrot.slane %v2085, 7
        %v2118 = vrot.slane %v2086, 7
        %v2119 = vrot.slane %v2087, 7
        %v2120 = vrot.slane %v2088, 7
        %v2121 = vrot.slane %v2089, 7
        %v2122 = vrot.slane %v2090, 7
        %v2123 = vrot.slane %v2091, 7
        %v2124 = vrot.slane %v2092, 7
        %v2125 = vrot.slane %v2093, 7
        %v2126 = vrot.slane %v2094, 7
        %v2127 = vrot.slane %v2095, 7
        %v2128 = vrot.slane %v2096, 7
        %v2129 = vrot.slane %v2097, 7
        %v2130 = vrot.slane %v2098, 7
        %v2131 = vrot.slane %v2099, 7
        %v2132 = vrot.slane %v2100, 7
        %v2133 = vrot.slane %v2101, 7
        %v2134 = vrot.slane %v2102, 7
        %v2135 = vrot.slane %v2103, 7
        %v2136 = vrot.slane %v2104, 7
        %v2137 = vrot.slane %v2105, 7
        %v2138 = vrot.slane %v2106, 7
        %v2139 = vrot.slane %v2107, 7
        %v2140 = vrot.slane %v2108, 7
        %vm2141 = vcmp.lt.s32.totalorder %v1046, 1
        %v2142 = vsel %vm2141, %v2139, %v2140
        %v2143 = vsel %vm2141, %v2138, %v2139
        %v2144 = vsel %vm2141, %v2137, %v2138
        %v2145 = vsel %vm2141, %v2136, %v2137
        %v2146 = vsel %vm2141, %v2135, %v2136
        %v2147 = vsel %vm2141, %v2134, %v2135
        %v2148 = vsel %vm2141, %v2133, %v2134
        %v2149 = vsel %vm2141, %v2132, %v2133
        %v2150 = vsel %vm2141, %v2131, %v2132
        %v2151 = vsel %vm2141, %v2130, %v2131
        %v2152 = vsel %vm2141, %v2129, %v2130
        %v2153 = vsel %vm2141, %v2128, %v2129
        %v2154 = vsel %vm2141, %v2127, %v2128
        %v2155 = vsel %vm2141, %v2126, %v2127
        %v2156 = vsel %vm2141, %v2125, %v2126
        %v2157 = vsel %vm2141, %v2124, %v2125
        %v2158 = vsel %vm2141, %v2123, %v2124
        %v2159 = vsel %vm2141, %v2122, %v2123
        %v2160 = vsel %vm2141, %v2121, %v2122
        %v2161 = vsel %vm2141, %v2120, %v2121
        %v2162 = vsel %vm2141, %v2119, %v2120
        %v2163 = vsel %vm2141, %v2118, %v2119
        %v2164 = vsel %vm2141, %v2117, %v2118
        %v2165 = vsel %vm2141, %v2116, %v2117
        %v2166 = vsel %vm2141, %v2115, %v2116
        %v2167 = vsel %vm2141, %v2114, %v2115
        %v2168 = vsel %vm2141, %v2113, %v2114
        %v2169 = vsel %vm2141, %v2112, %v2113
        %v2170 = vsel %vm2141, %v2111, %v2112
        %v2171 = vsel %vm2141, %v2110, %v2111
        %v2172 = vsel %vm2141, %v2109, %v2110
        %v2173 = vsel %vm2141, %v2140, %v2109
        %v2174 = vsel %vm1462, 1, 0
        %v2175 = vsel %vm1463, 1, 0
        %v2176 = vsel %vm1464, 1, 0
        %v2177 = vsel %vm1465, 1, 0
        %v2178 = vsel %vm1466, 1, 0
        %v2179 = vsel %vm1467, 1, 0
        %v2180 = vsel %vm1468, 1, 0
        %v2181 = vsel %vm1469, 1, 0
        %v2182 = vsel %vm1470, 1, 0
        %v2183 = vsel %vm1471, 1, 0
        %v2184 = vsel %vm1472, 1, 0
        %v2185 = vsel %vm1473, 1, 0
        %v2186 = vsel %vm1474, 1, 0
        %v2187 = vsel %vm1475, 1, 0
        %v2188 = vsel %vm1476, 1, 0
        %v2189 = vsel %vm1477, 1, 0
        %v2190 = vsel %vm1478, 1, 0
        %v2191 = vsel %vm1479, 1, 0
        %v2192 = vsel %vm1480, 1, 0
        %v2193 = vsel %vm1481, 1, 0
        %v2194 = vsel %vm1482, 1, 0
        %v2195 = vsel %vm1483, 1, 0
        %v2196 = vsel %vm1484, 1, 0
        %v2197 = vsel %vm1485, 1, 0
        %v2198 = vsel %vm1486, 1, 0
        %v2199 = vsel %vm1487, 1, 0
        %v2200 = vsel %vm1488, 1, 0
        %v2201 = vsel %vm1489, 1, 0
        %v2202 = vsel %vm1490, 1, 0
        %v2203 = vsel %vm1491, 1, 0
        %v2204 = vsel %vm1492, 1, 0
        %v2205 = vsel %vm1493, 1, 0
        %vm2206 = vcmp.eq.s32.totalorder %v2174, 1
        %vm2207 = vcmp.eq.s32.totalorder %v2175, 1
        %vm2208 = vcmp.eq.s32.totalorder %v2176, 1
        %vm2209 = vcmp.eq.s32.totalorder %v2177, 1
        %vm2210 = vcmp.eq.s32.totalorder %v2178, 1
        %vm2211 = vcmp.eq.s32.totalorder %v2179, 1
        %vm2212 = vcmp.eq.s32.totalorder %v2180, 1
        %vm2213 = vcmp.eq.s32.totalorder %v2181, 1
        %vm2214 = vcmp.eq.s32.totalorder %v2182, 1
        %vm2215 = vcmp.eq.s32.totalorder %v2183, 1
        %vm2216 = vcmp.eq.s32.totalorder %v2184, 1
        %vm2217 = vcmp.eq.s32.totalorder %v2185, 1
        %vm2218 = vcmp.eq.s32.totalorder %v2186, 1
        %vm2219 = vcmp.eq.s32.totalorder %v2187, 1
        %vm2220 = vcmp.eq.s32.totalorder %v2188, 1
        %vm2221 = vcmp.eq.s32.totalorder %v2189, 1
        %vm2222 = vcmp.eq.s32.totalorder %v2190, 1
        %vm2223 = vcmp.eq.s32.totalorder %v2191, 1
        %vm2224 = vcmp.eq.s32.totalorder %v2192, 1
        %vm2225 = vcmp.eq.s32.totalorder %v2193, 1
        %vm2226 = vcmp.eq.s32.totalorder %v2194, 1
        %vm2227 = vcmp.eq.s32.totalorder %v2195, 1
        %vm2228 = vcmp.eq.s32.totalorder %v2196, 1
        %vm2229 = vcmp.eq.s32.totalorder %v2197, 1
        %vm2230 = vcmp.eq.s32.totalorder %v2198, 1
        %vm2231 = vcmp.eq.s32.totalorder %v2199, 1
        %vm2232 = vcmp.eq.s32.totalorder %v2200, 1
        %vm2233 = vcmp.eq.s32.totalorder %v2201, 1
        %vm2234 = vcmp.eq.s32.totalorder %v2202, 1
        %vm2235 = vcmp.eq.s32.totalorder %v2203, 1
        %vm2236 = vcmp.eq.s32.totalorder %v2204, 1
        %vm2237 = vcmp.eq.s32.totalorder %v2205, 1
        %v2238 = vsel %vm2206, %v2173, 0.0
        %v2239 = vsel %vm2207, %v2172, 0.0
        %v2240 = vsel %vm2208, %v2171, 0.0
        %v2241 = vsel %vm2209, %v2170, 0.0
        %v2242 = vsel %vm2210, %v2169, 0.0
        %v2243 = vsel %vm2211, %v2168, 0.0
        %v2244 = vsel %vm2212, %v2167, 0.0
        %v2245 = vsel %vm2213, %v2166, 0.0
        %v2246 = vsel %vm2214, %v2165, 0.0
        %v2247 = vsel %vm2215, %v2164, 0.0
        %v2248 = vsel %vm2216, %v2163, 0.0
        %v2249 = vsel %vm2217, %v2162, 0.0
        %v2250 = vsel %vm2218, %v2161, 0.0
        %v2251 = vsel %vm2219, %v2160, 0.0
        %v2252 = vsel %vm2220, %v2159, 0.0
        %v2253 = vsel %vm2221, %v2158, 0.0
        %v2254 = vsel %vm2222, %v2157, 0.0
        %v2255 = vsel %vm2223, %v2156, 0.0
        %v2256 = vsel %vm2224, %v2155, 0.0
        %v2257 = vsel %vm2225, %v2154, 0.0
        %v2258 = vsel %vm2226, %v2153, 0.0
        %v2259 = vsel %vm2227, %v2152, 0.0
        %v2260 = vsel %vm2228, %v2151, 0.0
        %v2261 = vsel %vm2229, %v2150, 0.0
        %v2262 = vsel %vm2230, %v2149, 0.0
        %v2263 = vsel %vm2231, %v2148, 0.0
        %v2264 = vsel %vm2232, %v2147, 0.0
        %v2265 = vsel %vm2233, %v2146, 0.0
        %v2266 = vsel %vm2234, %v2145, 0.0
        %v2267 = vsel %vm2235, %v2144, 0.0
        %v2268 = vsel %vm2236, %v2143, 0.0
        %v2269 = vsel %vm2237, %v2142, 0.0
        %v2270 = vrot.slane %v2077, 1
        %v2271 = vrot.slane %v2078, 1
        %v2272 = vrot.slane %v2079, 1
        %v2273 = vrot.slane %v2080, 1
        %v2274 = vrot.slane %v2081, 1
        %v2275 = vrot.slane %v2082, 1
        %v2276 = vrot.slane %v2083, 1
        %v2277 = vrot.slane %v2084, 1
        %v2278 = vrot.slane %v2085, 1
        %v2279 = vrot.slane %v2086, 1
        %v2280 = vrot.slane %v2087, 1
        %v2281 = vrot.slane %v2088, 1
        %v2282 = vrot.slane %v2089, 1
        %v2283 = vrot.slane %v2090, 1
        %v2284 = vrot.slane %v2091, 1
        %v2285 = vrot.slane %v2092, 1
        %v2286 = vrot.slane %v2093, 1
        %v2287 = vrot.slane %v2094, 1
        %v2288 = vrot.slane %v2095, 1
        %v2289 = vrot.slane %v2096, 1
        %v2290 = vrot.slane %v2097, 1
        %v2291 = vrot.slane %v2098, 1
        %v2292 = vrot.slane %v2099, 1
        %v2293 = vrot.slane %v2100, 1
        %v2294 = vrot.slane %v2101, 1
        %v2295 = vrot.slane %v2102, 1
        %v2296 = vrot.slane %v2103, 1
        %v2297 = vrot.slane %v2104, 1
        %v2298 = vrot.slane %v2105, 1
        %v2299 = vrot.slane %v2106, 1
        %v2300 = vrot.slane %v2107, 1
        %v2301 = vrot.slane %v2108, 1
        %vm2302 = vcmp.lt.s32.totalorder %v1046, 7
        %v2303 = vsel %vm2302, %v2300, %v2301
        %v2304 = vsel %vm2302, %v2299, %v2300
        %v2305 = vsel %vm2302, %v2298, %v2299
        %v2306 = vsel %vm2302, %v2297, %v2298
        %v2307 = vsel %vm2302, %v2296, %v2297
        %v2308 = vsel %vm2302, %v2295, %v2296
        %v2309 = vsel %vm2302, %v2294, %v2295
        %v2310 = vsel %vm2302, %v2293, %v2294
        %v2311 = vsel %vm2302, %v2292, %v2293
        %v2312 = vsel %vm2302, %v2291, %v2292
        %v2313 = vsel %vm2302, %v2290, %v2291
        %v2314 = vsel %vm2302, %v2289, %v2290
        %v2315 = vsel %vm2302, %v2288, %v2289
        %v2316 = vsel %vm2302, %v2287, %v2288
        %v2317 = vsel %vm2302, %v2286, %v2287
        %v2318 = vsel %vm2302, %v2285, %v2286
        %v2319 = vsel %vm2302, %v2284, %v2285
        %v2320 = vsel %vm2302, %v2283, %v2284
        %v2321 = vsel %vm2302, %v2282, %v2283
        %v2322 = vsel %vm2302, %v2281, %v2282
        %v2323 = vsel %vm2302, %v2280, %v2281
        %v2324 = vsel %vm2302, %v2279, %v2280
        %v2325 = vsel %vm2302, %v2278, %v2279
        %v2326 = vsel %vm2302, %v2277, %v2278
        %v2327 = vsel %vm2302, %v2276, %v2277
        %v2328 = vsel %vm2302, %v2275, %v2276
        %v2329 = vsel %vm2302, %v2274, %v2275
        %v2330 = vsel %vm2302, %v2273, %v2274
        %v2331 = vsel %vm2302, %v2272, %v2273
        %v2332 = vsel %vm2302, %v2271, %v2272
        %v2333 = vsel %vm2302, %v2270, %v2271
        %v2334 = vsel %vm2302, %v2301, %v2270
        %v2335 = vsel %vm1494, 1, 0
        %v2336 = vsel %vm1495, 1, 0
        %v2337 = vsel %vm1496, 1, 0
        %v2338 = vsel %vm1497, 1, 0
        %v2339 = vsel %vm1498, 1, 0
        %v2340 = vsel %vm1499, 1, 0
        %v2341 = vsel %vm1500, 1, 0
        %v2342 = vsel %vm1501, 1, 0
        %v2343 = vsel %vm1502, 1, 0
        %v2344 = vsel %vm1503, 1, 0
        %v2345 = vsel %vm1504, 1, 0
        %v2346 = vsel %vm1505, 1, 0
        %v2347 = vsel %vm1506, 1, 0
        %v2348 = vsel %vm1507, 1, 0
        %v2349 = vsel %vm1508, 1, 0
        %v2350 = vsel %vm1509, 1, 0
        %v2351 = vsel %vm1510, 1, 0
        %v2352 = vsel %vm1511, 1, 0
        %v2353 = vsel %vm1512, 1, 0
        %v2354 = vsel %vm1513, 1, 0
        %v2355 = vsel %vm1514, 1, 0
        %v2356 = vsel %vm1515, 1, 0
        %v2357 = vsel %vm1516, 1, 0
        %v2358 = vsel %vm1517, 1, 0
        %v2359 = vsel %vm1518, 1, 0
        %v2360 = vsel %vm1519, 1, 0
        %v2361 = vsel %vm1520, 1, 0
        %v2362 = vsel %vm1521, 1, 0
        %v2363 = vsel %vm1522, 1, 0
        %v2364 = vsel %vm1523, 1, 0
        %v2365 = vsel %vm1524, 1, 0
        %v2366 = vsel %vm1525, 1, 0
        %vm2367 = vcmp.eq.s32.totalorder %v2335, 1
        %vm2368 = vcmp.eq.s32.totalorder %v2336, 1
        %vm2369 = vcmp.eq.s32.totalorder %v2337, 1
        %vm2370 = vcmp.eq.s32.totalorder %v2338, 1
        %vm2371 = vcmp.eq.s32.totalorder %v2339, 1
        %vm2372 = vcmp.eq.s32.totalorder %v2340, 1
        %vm2373 = vcmp.eq.s32.totalorder %v2341, 1
        %vm2374 = vcmp.eq.s32.totalorder %v2342, 1
        %vm2375 = vcmp.eq.s32.totalorder %v2343, 1
        %vm2376 = vcmp.eq.s32.totalorder %v2344, 1
        %vm2377 = vcmp.eq.s32.totalorder %v2345, 1
        %vm2378 = vcmp.eq.s32.totalorder %v2346, 1
        %vm2379 = vcmp.eq.s32.totalorder %v2347, 1
        %vm2380 = vcmp.eq.s32.totalorder %v2348, 1
        %vm2381 = vcmp.eq.s32.totalorder %v2349, 1
        %vm2382 = vcmp.eq.s32.totalorder %v2350, 1
        %vm2383 = vcmp.eq.s32.totalorder %v2351, 1
        %vm2384 = vcmp.eq.s32.totalorder %v2352, 1
        %vm2385 = vcmp.eq.s32.totalorder %v2353, 1
        %vm2386 = vcmp.eq.s32.totalorder %v2354, 1
        %vm2387 = vcmp.eq.s32.totalorder %v2355, 1
        %vm2388 = vcmp.eq.s32.totalorder %v2356, 1
        %vm2389 = vcmp.eq.s32.totalorder %v2357, 1
        %vm2390 = vcmp.eq.s32.totalorder %v2358, 1
        %vm2391 = vcmp.eq.s32.totalorder %v2359, 1
        %vm2392 = vcmp.eq.s32.totalorder %v2360, 1
        %vm2393 = vcmp.eq.s32.totalorder %v2361, 1
        %vm2394 = vcmp.eq.s32.totalorder %v2362, 1
        %vm2395 = vcmp.eq.s32.totalorder %v2363, 1
        %vm2396 = vcmp.eq.s32.totalorder %v2364, 1
        %vm2397 = vcmp.eq.s32.totalorder %v2365, 1
        %vm2398 = vcmp.eq.s32.totalorder %v2366, 1
        %v2399 = vsel %vm2367, %v2333, 0.0
        %v2400 = vsel %vm2368, %v2332, 0.0
        %v2401 = vsel %vm2369, %v2331, 0.0
        %v2402 = vsel %vm2370, %v2330, 0.0
        %v2403 = vsel %vm2371, %v2329, 0.0
        %v2404 = vsel %vm2372, %v2328, 0.0
        %v2405 = vsel %vm2373, %v2327, 0.0
        %v2406 = vsel %vm2374, %v2326, 0.0
        %v2407 = vsel %vm2375, %v2325, 0.0
        %v2408 = vsel %vm2376, %v2324, 0.0
        %v2409 = vsel %vm2377, %v2323, 0.0
        %v2410 = vsel %vm2378, %v2322, 0.0
        %v2411 = vsel %vm2379, %v2321, 0.0
        %v2412 = vsel %vm2380, %v2320, 0.0
        %v2413 = vsel %vm2381, %v2319, 0.0
        %v2414 = vsel %vm2382, %v2318, 0.0
        %v2415 = vsel %vm2383, %v2317, 0.0
        %v2416 = vsel %vm2384, %v2316, 0.0
        %v2417 = vsel %vm2385, %v2315, 0.0
        %v2418 = vsel %vm2386, %v2314, 0.0
        %v2419 = vsel %vm2387, %v2313, 0.0
        %v2420 = vsel %vm2388, %v2312, 0.0
        %v2421 = vsel %vm2389, %v2311, 0.0
        %v2422 = vsel %vm2390, %v2310, 0.0
        %v2423 = vsel %vm2391, %v2309, 0.0
        %v2424 = vsel %vm2392, %v2308, 0.0
        %v2425 = vsel %vm2393, %v2307, 0.0
        %v2426 = vsel %vm2394, %v2306, 0.0
        %v2427 = vsel %vm2395, %v2305, 0.0
        %v2428 = vsel %vm2396, %v2304, 0.0
        %v2429 = vsel %vm2397, %v2303, 0.0
        %v2430 = vsel %vm2398, %v2334, 0.0
        %v2431 = vpack.c.bf16 %v2239, %v2238
        %v2432 = vpack.c.bf16 %v2241, %v2240
        %v2433 = vpack.c.bf16 %v2243, %v2242
        %v2434 = vpack.c.bf16 %v2245, %v2244
        %v2435 = vpack.c.bf16 %v2247, %v2246
        %v2436 = vpack.c.bf16 %v2249, %v2248
        %v2437 = vpack.c.bf16 %v2251, %v2250
        %v2438 = vpack.c.bf16 %v2253, %v2252
        %v2439 = vpack.c.bf16 %v2255, %v2254
        %v2440 = vpack.c.bf16 %v2257, %v2256
        %v2441 = vpack.c.bf16 %v2259, %v2258
        %v2442 = vpack.c.bf16 %v2261, %v2260
        %v2443 = vpack.c.bf16 %v2263, %v2262
        %v2444 = vpack.c.bf16 %v2265, %v2264
        %v2445 = vpack.c.bf16 %v2267, %v2266
        %v2446 = vpack.c.bf16 %v2269, %v2268
        %v2447 = vpack.c.bf16 %v2078, %v2077
        %v2448 = vpack.c.bf16 %v2080, %v2079
        %v2449 = vpack.c.bf16 %v2082, %v2081
        %v2450 = vpack.c.bf16 %v2084, %v2083
        %v2451 = vpack.c.bf16 %v2086, %v2085
        %v2452 = vpack.c.bf16 %v2088, %v2087
        %v2453 = vpack.c.bf16 %v2090, %v2089
        %v2454 = vpack.c.bf16 %v2092, %v2091
        %v2455 = vpack.c.bf16 %v2094, %v2093
        %v2456 = vpack.c.bf16 %v2096, %v2095
        %v2457 = vpack.c.bf16 %v2098, %v2097
        %v2458 = vpack.c.bf16 %v2100, %v2099
        %v2459 = vpack.c.bf16 %v2102, %v2101
        %v2460 = vpack.c.bf16 %v2104, %v2103
        %v2461 = vpack.c.bf16 %v2106, %v2105
        %v2462 = vpack.c.bf16 %v2108, %v2107
        %v2463 = vpack.c.bf16 %v2400, %v2399
        %v2464 = vpack.c.bf16 %v2402, %v2401
        %v2465 = vpack.c.bf16 %v2404, %v2403
        %v2466 = vpack.c.bf16 %v2406, %v2405
        %v2467 = vpack.c.bf16 %v2408, %v2407
        %v2468 = vpack.c.bf16 %v2410, %v2409
        %v2469 = vpack.c.bf16 %v2412, %v2411
        %v2470 = vpack.c.bf16 %v2414, %v2413
        %v2471 = vpack.c.bf16 %v2416, %v2415
        %v2472 = vpack.c.bf16 %v2418, %v2417
        %v2473 = vpack.c.bf16 %v2420, %v2419
        %v2474 = vpack.c.bf16 %v2422, %v2421
        %v2475 = vpack.c.bf16 %v2424, %v2423
        %v2476 = vpack.c.bf16 %v2426, %v2425
        %v2477 = vpack.c.bf16 %v2428, %v2427
        %v2478 = vpack.c.bf16 %v2430, %v2429
        %v2479 = vld [vmem:[#allocation8] sm:$0xf]
        %v2480 = vld [vmem:[#allocation8 + $0x4] sm:$0xf]
        %v2481 = vld [vmem:[#allocation8 + $0x8] sm:$0xf]
        %v2482 = vld [vmem:[#allocation8 + $0xc] sm:$0xf]
        %v2483 = vld [vmem:[#allocation8 + $0x10] sm:$0xf]
        %v2484 = vld [vmem:[#allocation8 + $0x14] sm:$0xf]
        %v2485 = vld [vmem:[#allocation8 + $0x18] sm:$0xf]
        %v2486 = vld [vmem:[#allocation8 + $0x1c] sm:$0xf]
        %v2487 = vld [vmem:[#allocation8 + $0x20] sm:$0xf]
        %v2488 = vld [vmem:[#allocation8 + $0x24] sm:$0xf]
        %v2489 = vld [vmem:[#allocation8 + $0x28] sm:$0xf]
        %v2490 = vld [vmem:[#allocation8 + $0x2c] sm:$0xf]
        %v2491 = vld [vmem:[#allocation8 + $0x30] sm:$0xf]
        %v2492 = vld [vmem:[#allocation8 + $0x34] sm:$0xf]
        %v2493 = vld [vmem:[#allocation8 + $0x38] sm:$0xf]
        %v2494 = vld [vmem:[#allocation8 + $0x3c] sm:$0xf]
        %v2495 = vld [vmem:[#allocation8 + $0x40] sm:$0xf]
        %v2496 = vld [vmem:[#allocation8 + $0x44] sm:$0xf]
        %v2497 = vld [vmem:[#allocation8 + $0x48] sm:$0xf]
        %v2498 = vld [vmem:[#allocation8 + $0x4c] sm:$0xf]
        %v2499 = vld [vmem:[#allocation8 + $0x50] sm:$0xf]
        %v2500 = vld [vmem:[#allocation8 + $0x54] sm:$0xf]
        %v2501 = vld [vmem:[#allocation8 + $0x58] sm:$0xf]
        %v2502 = vld [vmem:[#allocation8 + $0x5c] sm:$0xf]
        %v2503 = vld [vmem:[#allocation8 + $0x60] sm:$0xf]
        %v2504 = vld [vmem:[#allocation8 + $0x64] sm:$0xf]
        %v2505 = vld [vmem:[#allocation8 + $0x68] sm:$0xf]
        %v2506 = vld [vmem:[#allocation8 + $0x6c] sm:$0xf]
        %v2507 = vld [vmem:[#allocation8 + $0x70] sm:$0xf]
        %v2508 = vld [vmem:[#allocation8 + $0x74] sm:$0xf]
        %v2509 = vld [vmem:[#allocation8 + $0x78] sm:$0xf]
        %v2510 = vld [vmem:[#allocation8 + $0x7c] sm:$0xf]
        %v2511 = vld [vmem:[#allocation8 + $0x80] sm:$0xf]
        %v2512 = vld [vmem:[#allocation8 + $0x84] sm:$0xf]
        %v2513 = vld [vmem:[#allocation8 + $0x88] sm:$0xf]
        %v2514 = vld [vmem:[#allocation8 + $0x8c] sm:$0xf]
        %v2515 = vld [vmem:[#allocation8 + $0x90] sm:$0xf]
        %v2516 = vld [vmem:[#allocation8 + $0x94] sm:$0xf]
        %v2517 = vld [vmem:[#allocation8 + $0x98] sm:$0xf]
        %v2518 = vld [vmem:[#allocation8 + $0x9c] sm:$0xf]
        %v2519 = vld [vmem:[#allocation8 + $0xa0] sm:$0xf]
        %v2520 = vld [vmem:[#allocation8 + $0xa4] sm:$0xf]
        %v2521 = vld [vmem:[#allocation8 + $0xa8] sm:$0xf]
        %v2522 = vld [vmem:[#allocation8 + $0xac] sm:$0xf]
        %v2523 = vld [vmem:[#allocation8 + $0xb0] sm:$0xf]
        %v2524 = vld [vmem:[#allocation8 + $0xb4] sm:$0xf]
        %v2525 = vld [vmem:[#allocation8 + $0xb8] sm:$0xf]
        %v2526 = vld [vmem:[#allocation8 + $0xbc] sm:$0xf]
        %v2575 = vunpack.c.l.b16 %v2479
        %v2576 = vunpack.c.l.b16 %v2480
        %v2577 = vunpack.c.l.b16 %v2481
        %v2578 = vunpack.c.l.b16 %v2482
        %v2579 = vunpack.c.l.b16 %v2483
        %v2580 = vunpack.c.l.b16 %v2484
        %v2581 = vunpack.c.l.b16 %v2485
        %v2582 = vunpack.c.l.b16 %v2486
        %v2583 = vunpack.c.l.b16 %v2487
        %v2584 = vunpack.c.l.b16 %v2488
        %v2585 = vunpack.c.l.b16 %v2489
        %v2586 = vunpack.c.l.b16 %v2490
        %v2587 = vunpack.c.l.b16 %v2491
        %v2588 = vunpack.c.l.b16 %v2492
        %v2589 = vunpack.c.l.b16 %v2493
        %v2590 = vunpack.c.l.b16 %v2494
        %v2591 = vunpack.c.l.b16 %v2495
        %v2592 = vunpack.c.l.b16 %v2496
        %v2593 = vunpack.c.l.b16 %v2497
        %v2594 = vunpack.c.l.b16 %v2498
        %v2595 = vunpack.c.l.b16 %v2499
        %v2596 = vunpack.c.l.b16 %v2500
        %v2597 = vunpack.c.l.b16 %v2501
        %v2598 = vunpack.c.l.b16 %v2502
        %v2599 = vunpack.c.l.b16 %v2503
        %v2600 = vunpack.c.l.b16 %v2504
        %v2601 = vunpack.c.l.b16 %v2505
        %v2602 = vunpack.c.l.b16 %v2506
        %v2603 = vunpack.c.l.b16 %v2507
        %v2604 = vunpack.c.l.b16 %v2508
        %v2605 = vunpack.c.l.b16 %v2509
        %v2606 = vunpack.c.l.b16 %v2510
        %v2607 = vunpack.c.l.b16 %v2511
        %v2608 = vunpack.c.l.b16 %v2512
        %v2609 = vunpack.c.l.b16 %v2513
        %v2610 = vunpack.c.l.b16 %v2514
        %v2611 = vunpack.c.l.b16 %v2515
        %v2612 = vunpack.c.l.b16 %v2516
        %v2613 = vunpack.c.l.b16 %v2517
        %v2614 = vunpack.c.l.b16 %v2518
        %v2615 = vunpack.c.l.b16 %v2519
        %v2616 = vunpack.c.l.b16 %v2520
        %v2617 = vunpack.c.l.b16 %v2521
        %v2618 = vunpack.c.l.b16 %v2522
        %v2619 = vunpack.c.l.b16 %v2523
        %v2620 = vunpack.c.l.b16 %v2524
        %v2621 = vunpack.c.l.b16 %v2525
        %v2622 = vunpack.c.l.b16 %v2526
        %v2623 = vpack.c.b16 %v2576, %v2575
        %v2624 = vpack.c.b16 %v2578, %v2577
        %v2625 = vpack.c.b16 %v2580, %v2579
        %v2626 = vpack.c.b16 %v2582, %v2581
        %v2627 = vpack.c.b16 %v2584, %v2583
        %v2628 = vpack.c.b16 %v2586, %v2585
        %v2629 = vpack.c.b16 %v2588, %v2587
        %v2630 = vpack.c.b16 %v2590, %v2589
        %v2631 = vpack.c.b16 %v2592, %v2591
        %v2632 = vpack.c.b16 %v2594, %v2593
        %v2633 = vpack.c.b16 %v2596, %v2595
        %v2634 = vpack.c.b16 %v2598, %v2597
        %v2635 = vpack.c.b16 %v2600, %v2599
        %v2636 = vpack.c.b16 %v2602, %v2601
        %v2637 = vpack.c.b16 %v2604, %v2603
        %v2638 = vpack.c.b16 %v2606, %v2605
        %v2639 = vpack.c.b16 %v2608, %v2607
        %v2640 = vpack.c.b16 %v2610, %v2609
        %v2641 = vpack.c.b16 %v2612, %v2611
        %v2642 = vpack.c.b16 %v2614, %v2613
        %v2643 = vpack.c.b16 %v2616, %v2615
        %v2644 = vpack.c.b16 %v2618, %v2617
        %v2645 = vpack.c.b16 %v2620, %v2619
        %v2646 = vpack.c.b16 %v2622, %v2621
        %2671 = vmatprep.subr.bf16.mxu0 0
        %2672 = vmatpush1.bf16.msra.mxu0 %v2623
        %2673 = vmatprep.subr.bf16.mxu0 0
        %2674 = vmatpush1.bf16.msra.mxu0 %v2624
        %2675 = vmatprep.subr.bf16.mxu0 0
        %2676 = vmatpush1.bf16.msra.mxu0 %v2625
        %2677 = vmatprep.subr.bf16.mxu0 0
        %2678 = vmatpush1.bf16.msra.mxu0 %v2626
        %2679 = vmatprep.subr.bf16.mxu0 0
        %2680 = vmatpush1.bf16.msra.mxu0 %v2627
        %2681 = vmatprep.subr.bf16.mxu0 0
        %2682 = vmatpush1.bf16.msra.mxu0 %v2628
        %2683 = vmatprep.subr.bf16.mxu0 0
        %2684 = vmatpush1.bf16.msra.mxu0 %v2629
        %2685 = vmatprep.subr.bf16.mxu0 0
        %2686 = vmatpush1.bf16.msra.mxu0 %v2630
        %2687 = vmatprep.subr.bf16.mxu0 0
        %2688 = vmatpush1.bf16.msra.mxu0 %v2631
        %2689 = vmatprep.subr.bf16.mxu0 0
        %2690 = vmatpush1.bf16.msra.mxu0 %v2632
        %2691 = vmatprep.subr.bf16.mxu0 0
        %2692 = vmatpush1.bf16.msra.mxu0 %v2633
        %2693 = vmatprep.subr.bf16.mxu0 0
        %2694 = vmatpush1.bf16.msra.mxu0 %v2634
        %2695 = vmatprep.subr.bf16.mxu0 0
        %2696 = vmatpush1.bf16.msra.mxu0 %v2635
        %2697 = vmatprep.subr.bf16.mxu0 0
        %2698 = vmatpush1.bf16.msra.mxu0 %v2636
        %2699 = vmatprep.subr.bf16.mxu0 0
        %2700 = vmatpush1.bf16.msra.mxu0 %v2637
        %2701 = vmatprep.subr.bf16.mxu0 0
        %2702 = vmatpush1.bf16.msra.mxu0 %v2638
        %2703 = vmatprep.mubr.bf16.mxu0 %v2447
        %2704 = vmatmul.mubr.bf16.gmra.mrb[0].mxu0 %v2431
        %v2705 = vpop.f32.mrb[0].mxu0
        %v2706 = vadd.f32 0.0, %v2705
        %v2707 = vpop.f32.mrb[0].mxu0
        %v2708 = vpop.f32.mrb[0].mxu0
        %v2709 = vadd.f32 0.0, %v2708
        %v2710 = vpop.f32.mrb[0].mxu0
        %2711 = vmatprep.mubr.bf16.mxu0 %v2448
        %2712 = vmatmul.mubr.bf16.gmra.mrb[0].mxu0 %v2432
        %v2713 = vpop.f32.mrb[0].mxu0
        %v2714 = vadd.f32 0.0, %v2713
        %v2715 = vpop.f32.mrb[0].mxu0
        %v2716 = vpop.f32.mrb[0].mxu0
        %v2717 = vadd.f32 0.0, %v2716
        %v2718 = vpop.f32.mrb[0].mxu0
        %2719 = vmatprep.mubr.bf16.mxu0 %v2449
        %2720 = vmatmul.mubr.bf16.gmra.mrb[0].mxu0 %v2433
        %v2721 = vpop.f32.mrb[0].mxu0
        %v2722 = vadd.f32 0.0, %v2721
        %v2723 = vpop.f32.mrb[0].mxu0
        %v2724 = vpop.f32.mrb[0].mxu0
        %v2725 = vadd.f32 0.0, %v2724
        %v2726 = vpop.f32.mrb[0].mxu0
        %2727 = vmatprep.mubr.bf16.mxu0 %v2450
        %2728 = vmatmul.mubr.bf16.gmra.mrb[0].mxu0 %v2434
        %v2729 = vpop.f32.mrb[0].mxu0
        %v2730 = vadd.f32 0.0, %v2729
        %v2731 = vpop.f32.mrb[0].mxu0
        %v2732 = vpop.f32.mrb[0].mxu0
        %v2733 = vadd.f32 0.0, %v2732
        %v2734 = vpop.f32.mrb[0].mxu0
        %2735 = vmatprep.mubr.bf16.mxu0 %v2451
        %2736 = vmatmul.mubr.bf16.gmra.mrb[0].mxu0 %v2435
        %v2737 = vpop.f32.mrb[0].mxu0
        %v2738 = vadd.f32 0.0, %v2737
        %v2739 = vpop.f32.mrb[0].mxu0
        %v2740 = vpop.f32.mrb[0].mxu0
        %v2741 = vadd.f32 0.0, %v2740
        %v2742 = vpop.f32.mrb[0].mxu0
        %2743 = vmatprep.mubr.bf16.mxu0 %v2452
        %2744 = vmatmul.mubr.bf16.gmra.mrb[0].mxu0 %v2436
        %v2745 = vpop.f32.mrb[0].mxu0
        %v2746 = vadd.f32 0.0, %v2745
        %v2747 = vpop.f32.mrb[0].mxu0
        %v2748 = vpop.f32.mrb[0].mxu0
        %v2749 = vadd.f32 0.0, %v2748
        %v2750 = vpop.f32.mrb[0].mxu0
        %2751 = vmatprep.mubr.bf16.mxu0 %v2453
        %2752 = vmatmul.mubr.bf16.gmra.mrb[0].mxu0 %v2437
        %v2753 = vpop.f32.mrb[0].mxu0
        %v2754 = vadd.f32 0.0, %v2753
        %v2755 = vpop.f32.mrb[0].mxu0
        %v2756 = vpop.f32.mrb[0].mxu0
        %v2757 = vadd.f32 0.0, %v2756
        %v2758 = vpop.f32.mrb[0].mxu0
        %2759 = vmatprep.mubr.bf16.mxu0 %v2454
        %2760 = vmatmul.mubr.bf16.gmra.mrb[0].mxu0 %v2438
        %v2761 = vpop.f32.mrb[0].mxu0
        %v2762 = vadd.f32 0.0, %v2761
        %v2763 = vpop.f32.mrb[0].mxu0
        %v2764 = vpop.f32.mrb[0].mxu0
        %v2765 = vadd.f32 0.0, %v2764
        %v2766 = vpop.f32.mrb[0].mxu0
        %2767 = vmatprep.mubr.bf16.mxu0 %v2455
        %2768 = vmatmul.mubr.bf16.gmra.mrb[0].mxu0 %v2439
        %v2769 = vpop.f32.mrb[0].mxu0
        %v2770 = vadd.f32 0.0, %v2769
        %v2771 = vpop.f32.mrb[0].mxu0
        %v2772 = vpop.f32.mrb[0].mxu0
        %v2773 = vadd.f32 0.0, %v2772
        %v2774 = vpop.f32.mrb[0].mxu0
        %2775 = vmatprep.mubr.bf16.mxu0 %v2456
        %2776 = vmatmul.mubr.bf16.gmra.mrb[0].mxu0 %v2440
        %v2777 = vpop.f32.mrb[0].mxu0
        %v2778 = vadd.f32 0.0, %v2777
        %v2779 = vpop.f32.mrb[0].mxu0
        %v2780 = vpop.f32.mrb[0].mxu0
        %v2781 = vadd.f32 0.0, %v2780
        %v2782 = vpop.f32.mrb[0].mxu0
        %2783 = vmatprep.mubr.bf16.mxu0 %v2457
        %2784 = vmatmul.mubr.bf16.gmra.mrb[0].mxu0 %v2441
        %v2785 = vpop.f32.mrb[0].mxu0
        %v2786 = vadd.f32 0.0, %v2785
        %v2787 = vpop.f32.mrb[0].mxu0
        %v2788 = vpop.f32.mrb[0].mxu0
        %v2789 = vadd.f32 0.0, %v2788
        %v2790 = vpop.f32.mrb[0].mxu0
        %2791 = vmatprep.mubr.bf16.mxu0 %v2458
        %2792 = vmatmul.mubr.bf16.gmra.mrb[0].mxu0 %v2442
        %v2793 = vpop.f32.mrb[0].mxu0
        %v2794 = vadd.f32 0.0, %v2793
        %v2795 = vpop.f32.mrb[0].mxu0
        %v2796 = vpop.f32.mrb[0].mxu0
        %v2797 = vadd.f32 0.0, %v2796
        %v2798 = vpop.f32.mrb[0].mxu0
        %2799 = vmatprep.mubr.bf16.mxu0 %v2459
        %2800 = vmatmul.mubr.bf16.gmra.mrb[0].mxu0 %v2443
        %v2801 = vpop.f32.mrb[0].mxu0
        %v2802 = vadd.f32 0.0, %v2801
        %v2803 = vpop.f32.mrb[0].mxu0
        %v2804 = vpop.f32.mrb[0].mxu0
        %v2805 = vadd.f32 0.0, %v2804
        %v2806 = vpop.f32.mrb[0].mxu0
        %2807 = vmatprep.mubr.bf16.mxu0 %v2460
        %2808 = vmatmul.mubr.bf16.gmra.mrb[0].mxu0 %v2444
        %v2809 = vpop.f32.mrb[0].mxu0
        %v2810 = vadd.f32 0.0, %v2809
        %v2811 = vpop.f32.mrb[0].mxu0
        %v2812 = vpop.f32.mrb[0].mxu0
        %v2813 = vadd.f32 0.0, %v2812
        %v2814 = vpop.f32.mrb[0].mxu0
        %2815 = vmatprep.mubr.bf16.mxu0 %v2461
        %2816 = vmatmul.mubr.bf16.gmra.mrb[0].mxu0 %v2445
        %v2817 = vpop.f32.mrb[0].mxu0
        %v2818 = vadd.f32 0.0, %v2817
        %v2819 = vpop.f32.mrb[0].mxu0
        %v2820 = vpop.f32.mrb[0].mxu0
        %v2821 = vadd.f32 0.0, %v2820
        %v2822 = vpop.f32.mrb[0].mxu0
        %2823 = vmatprep.mubr.bf16.mxu0 %v2462
        %2824 = vmatmul.mubr.bf16.gmra.mrb[0].mxu0 %v2446
        %v2825 = vpop.f32.mrb[0].mxu0
        %v2826 = vadd.f32 0.0, %v2825
        %v2827 = vpop.f32.mrb[0].mxu0
        %v2828 = vpop.f32.mrb[0].mxu0
        %v2829 = vadd.f32 0.0, %v2828
        %v2830 = vpop.f32.mrb[0].mxu0
        %2831 = vdwg.mxu0
        %2832 = vmatprep.subr.bf16.mxu0 0
        %2833 = vmatpush1.bf16.msra.mxu0 %v2639
        %2834 = vmatprep.subr.bf16.mxu0 0
        %2835 = vmatpush1.bf16.msra.mxu0 %v2640
        %2836 = vmatprep.subr.bf16.mxu0 0
        %2837 = vmatpush1.bf16.msra.mxu0 %v2641
        %2838 = vmatprep.subr.bf16.mxu0 0
        %2839 = vmatpush1.bf16.msra.mxu0 %v2642
        %2840 = vmatprep.subr.bf16.mxu0 0
        %2841 = vmatpush1.bf16.msra.mxu0 %v2643
        %2842 = vmatprep.subr.bf16.mxu0 0
        %2843 = vmatpush1.bf16.msra.mxu0 %v2644
        %2844 = vmatprep.subr.bf16.mxu0 0
        %2845 = vmatpush1.bf16.msra.mxu0 %v2645
        %2846 = vmatprep.subr.bf16.mxu0 0
        %2847 = vmatpush1.bf16.msra.mxu0 %v2646
        %2848 = vmatprep.subr.bf16.mxu0 0
        %2849 = vmatpush1.bf16.msra.mxu0 0
        %2850 = vmatprep.subr.bf16.mxu0 0
        %2851 = vmatpush1.bf16.msra.mxu0 0
        %2852 = vmatprep.subr.bf16.mxu0 0
        %2853 = vmatpush1.bf16.msra.mxu0 0
        %2854 = vmatprep.subr.bf16.mxu0 0
        %2855 = vmatpush1.bf16.msra.mxu0 0
        %2856 = vmatprep.subr.bf16.mxu0 0
        %2857 = vmatpush1.bf16.msra.mxu0 0
        %2858 = vmatprep.subr.bf16.mxu0 0
        %2859 = vmatpush1.bf16.msra.mxu0 0
        %2860 = vmatprep.subr.bf16.mxu0 0
        %2861 = vmatpush1.bf16.msra.mxu0 0
        %2862 = vmatprep.subr.bf16.mxu0 0
        %2863 = vmatpush1.bf16.msra.mxu0 0
        %2864 = vmatprep.mubr.bf16.mxu0 0
        %2865 = vmatmul.mubr.bf16.gmra.mrb[0].mxu0 %v2463
        %v2866 = vpop.f32.mrb[0].mxu0
        %v2867 = vadd.f32 %v2706, %v2866
        %v2868 = vpop.f32.mrb[0].mxu0
        %v2869 = vpop.f32.mrb[0].mxu0
        %v2870 = vadd.f32 %v2709, %v2869
        %v2871 = vpop.f32.mrb[0].mxu0
        %2872 = vmatprep.mubr.bf16.mxu0 0
        %2873 = vmatmul.mubr.bf16.gmra.mrb[0].mxu0 %v2464
        %v2874 = vpop.f32.mrb[0].mxu0
        %v2875 = vadd.f32 %v2714, %v2874
        %v2876 = vpop.f32.mrb[0].mxu0
        %v2877 = vpop.f32.mrb[0].mxu0
        %v2878 = vadd.f32 %v2717, %v2877
        %v2879 = vpop.f32.mrb[0].mxu0
        %2880 = vmatprep.mubr.bf16.mxu0 0
        %2881 = vmatmul.mubr.bf16.gmra.mrb[0].mxu0 %v2465
        %v2882 = vpop.f32.mrb[0].mxu0
        %v2883 = vadd.f32 %v2722, %v2882
        %v2884 = vpop.f32.mrb[0].mxu0
        %v2885 = vpop.f32.mrb[0].mxu0
        %v2886 = vadd.f32 %v2725, %v2885
        %v2887 = vpop.f32.mrb[0].mxu0
        %2888 = vmatprep.mubr.bf16.mxu0 0
        %2889 = vmatmul.mubr.bf16.gmra.mrb[0].mxu0 %v2466
        %v2890 = vpop.f32.mrb[0].mxu0
        %v2891 = vadd.f32 %v2730, %v2890
        %v2892 = vpop.f32.mrb[0].mxu0
        %v2893 = vpop.f32.mrb[0].mxu0
        %v2894 = vadd.f32 %v2733, %v2893
        %v2895 = vpop.f32.mrb[0].mxu0
        %2896 = vmatprep.mubr.bf16.mxu0 0
        %2897 = vmatmul.mubr.bf16.gmra.mrb[0].mxu0 %v2467
        %v2898 = vpop.f32.mrb[0].mxu0
        %v2899 = vadd.f32 %v2738, %v2898
        %v2900 = vpop.f32.mrb[0].mxu0
        %v2901 = vpop.f32.mrb[0].mxu0
        %v2902 = vadd.f32 %v2741, %v2901
        %v2903 = vpop.f32.mrb[0].mxu0
        %2904 = vmatprep.mubr.bf16.mxu0 0
        %2905 = vmatmul.mubr.bf16.gmra.mrb[0].mxu0 %v2468
        %v2906 = vpop.f32.mrb[0].mxu0
        %v2907 = vadd.f32 %v2746, %v2906
        %v2908 = vpop.f32.mrb[0].mxu0
        %v2909 = vpop.f32.mrb[0].mxu0
        %v2910 = vadd.f32 %v2749, %v2909
        %v2911 = vpop.f32.mrb[0].mxu0
        %2912 = vmatprep.mubr.bf16.mxu0 0
        %2913 = vmatmul.mubr.bf16.gmra.mrb[0].mxu0 %v2469
        %v2914 = vpop.f32.mrb[0].mxu0
        %v2915 = vadd.f32 %v2754, %v2914
        %v2916 = vpop.f32.mrb[0].mxu0
        %v2917 = vpop.f32.mrb[0].mxu0
        %v2918 = vadd.f32 %v2757, %v2917
        %v2919 = vpop.f32.mrb[0].mxu0
        %2920 = vmatprep.mubr.bf16.mxu0 0
        %2921 = vmatmul.mubr.bf16.gmra.mrb[0].mxu0 %v2470
        %v2922 = vpop.f32.mrb[0].mxu0
        %v2923 = vadd.f32 %v2762, %v2922
        %v2924 = vpop.f32.mrb[0].mxu0
        %v2925 = vpop.f32.mrb[0].mxu0
        %v2926 = vadd.f32 %v2765, %v2925
        %v2927 = vpop.f32.mrb[0].mxu0
        %2928 = vmatprep.mubr.bf16.mxu0 0
        %2929 = vmatmul.mubr.bf16.gmra.mrb[0].mxu0 %v2471
        %v2930 = vpop.f32.mrb[0].mxu0
        %v2931 = vadd.f32 %v2770, %v2930
        %v2932 = vpop.f32.mrb[0].mxu0
        %v2933 = vpop.f32.mrb[0].mxu0
        %v2934 = vadd.f32 %v2773, %v2933
        %v2935 = vpop.f32.mrb[0].mxu0
        %2936 = vmatprep.mubr.bf16.mxu0 0
        %2937 = vmatmul.mubr.bf16.gmra.mrb[0].mxu0 %v2472
        %v2938 = vpop.f32.mrb[0].mxu0
        %v2939 = vadd.f32 %v2778, %v2938
        %v2940 = vpop.f32.mrb[0].mxu0
        %v2941 = vpop.f32.mrb[0].mxu0
        %v2942 = vadd.f32 %v2781, %v2941
        %v2943 = vpop.f32.mrb[0].mxu0
        %2944 = vmatprep.mubr.bf16.mxu0 0
        %2945 = vmatmul.mubr.bf16.gmra.mrb[0].mxu0 %v2473
        %v2946 = vpop.f32.mrb[0].mxu0
        %v2947 = vadd.f32 %v2786, %v2946
        %v2948 = vpop.f32.mrb[0].mxu0
        %v2949 = vpop.f32.mrb[0].mxu0
        %v2950 = vadd.f32 %v2789, %v2949
        %v2951 = vpop.f32.mrb[0].mxu0
        %2952 = vmatprep.mubr.bf16.mxu0 0
        %2953 = vmatmul.mubr.bf16.gmra.mrb[0].mxu0 %v2474
        %v2954 = vpop.f32.mrb[0].mxu0
        %v2955 = vadd.f32 %v2794, %v2954
        %v2956 = vpop.f32.mrb[0].mxu0
        %v2957 = vpop.f32.mrb[0].mxu0
        %v2958 = vadd.f32 %v2797, %v2957
        %v2959 = vpop.f32.mrb[0].mxu0
        %2960 = vmatprep.mubr.bf16.mxu0 0
        %2961 = vmatmul.mubr.bf16.gmra.mrb[0].mxu0 %v2475
        %v2962 = vpop.f32.mrb[0].mxu0
        %v2963 = vadd.f32 %v2802, %v2962
        %v2964 = vpop.f32.mrb[0].mxu0
        %v2965 = vpop.f32.mrb[0].mxu0
        %v2966 = vadd.f32 %v2805, %v2965
        %v2967 = vpop.f32.mrb[0].mxu0
        %2968 = vmatprep.mubr.bf16.mxu0 0
        %2969 = vmatmul.mubr.bf16.gmra.mrb[0].mxu0 %v2476
        %v2970 = vpop.f32.mrb[0].mxu0
        %v2971 = vadd.f32 %v2810, %v2970
        %v2972 = vpop.f32.mrb[0].mxu0
        %v2973 = vpop.f32.mrb[0].mxu0
        %v2974 = vadd.f32 %v2813, %v2973
        %v2975 = vpop.f32.mrb[0].mxu0
        %2976 = vmatprep.mubr.bf16.mxu0 0
        %2977 = vmatmul.mubr.bf16.gmra.mrb[0].mxu0 %v2477
        %v2978 = vpop.f32.mrb[0].mxu0
        %v2979 = vadd.f32 %v2818, %v2978
        %v2980 = vpop.f32.mrb[0].mxu0
        %v2981 = vpop.f32.mrb[0].mxu0
        %v2982 = vadd.f32 %v2821, %v2981
        %v2983 = vpop.f32.mrb[0].mxu0
        %2984 = vmatprep.mubr.bf16.mxu0 0
        %2985 = vmatmul.mubr.bf16.gmra.mrb[0].mxu0 %v2478
        %v2986 = vpop.f32.mrb[0].mxu0
        %v2987 = vadd.f32 %v2826, %v2986
        %v2988 = vpop.f32.mrb[0].mxu0
        %v2989 = vpop.f32.mrb[0].mxu0
        %v2990 = vadd.f32 %v2829, %v2989
        %v2991 = vpop.f32.mrb[0].mxu0
        %2992 = vdwg.mxu0
        %s2993 = scalar_lea.vmem [#allocation8], 192
        %v2994 = vld [vmem:[%s2993] sm:$0xf]
        %v2995 = vld [vmem:[%s2993 + $0x4] sm:$0xf]
        %v2996 = vld [vmem:[%s2993 + $0x8] sm:$0xf]
        %v2997 = vld [vmem:[%s2993 + $0xc] sm:$0xf]
        %v2998 = vld [vmem:[%s2993 + $0x10] sm:$0xf]
        %v2999 = vld [vmem:[%s2993 + $0x14] sm:$0xf]
        %v3000 = vld [vmem:[%s2993 + $0x18] sm:$0xf]
        %v3001 = vld [vmem:[%s2993 + $0x1c] sm:$0xf]
        %v3002 = vld [vmem:[%s2993 + $0x20] sm:$0xf]
        %v3003 = vld [vmem:[%s2993 + $0x24] sm:$0xf]
        %v3004 = vld [vmem:[%s2993 + $0x28] sm:$0xf]
        %v3005 = vld [vmem:[%s2993 + $0x2c] sm:$0xf]
        %v3006 = vld [vmem:[%s2993 + $0x30] sm:$0xf]
        %v3007 = vld [vmem:[%s2993 + $0x34] sm:$0xf]
        %v3008 = vld [vmem:[%s2993 + $0x38] sm:$0xf]
        %v3009 = vld [vmem:[%s2993 + $0x3c] sm:$0xf]
        %v3010 = vld [vmem:[%s2993 + $0x40] sm:$0xf]
        %v3011 = vld [vmem:[%s2993 + $0x44] sm:$0xf]
        %v3012 = vld [vmem:[%s2993 + $0x48] sm:$0xf]
        %v3013 = vld [vmem:[%s2993 + $0x4c] sm:$0xf]
        %v3014 = vld [vmem:[%s2993 + $0x50] sm:$0xf]
        %v3015 = vld [vmem:[%s2993 + $0x54] sm:$0xf]
        %v3016 = vld [vmem:[%s2993 + $0x58] sm:$0xf]
        %v3017 = vld [vmem:[%s2993 + $0x5c] sm:$0xf]
        %v3018 = vld [vmem:[%s2993 + $0x60] sm:$0xf]
        %v3019 = vld [vmem:[%s2993 + $0x64] sm:$0xf]
        %v3020 = vld [vmem:[%s2993 + $0x68] sm:$0xf]
        %v3021 = vld [vmem:[%s2993 + $0x6c] sm:$0xf]
        %v3022 = vld [vmem:[%s2993 + $0x70] sm:$0xf]
        %v3023 = vld [vmem:[%s2993 + $0x74] sm:$0xf]
        %v3024 = vld [vmem:[%s2993 + $0x78] sm:$0xf]
        %v3025 = vld [vmem:[%s2993 + $0x7c] sm:$0xf]
        %v3026 = vld [vmem:[%s2993 + $0x80] sm:$0xf]
        %v3027 = vld [vmem:[%s2993 + $0x84] sm:$0xf]
        %v3028 = vld [vmem:[%s2993 + $0x88] sm:$0xf]
        %v3029 = vld [vmem:[%s2993 + $0x8c] sm:$0xf]
        %v3030 = vld [vmem:[%s2993 + $0x90] sm:$0xf]
        %v3031 = vld [vmem:[%s2993 + $0x94] sm:$0xf]
        %v3032 = vld [vmem:[%s2993 + $0x98] sm:$0xf]
        %v3033 = vld [vmem:[%s2993 + $0x9c] sm:$0xf]
        %v3034 = vld [vmem:[%s2993 + $0xa0] sm:$0xf]
        %v3035 = vld [vmem:[%s2993 + $0xa4] sm:$0xf]
        %v3036 = vld [vmem:[%s2993 + $0xa8] sm:$0xf]
        %v3037 = vld [vmem:[%s2993 + $0xac] sm:$0xf]
        %v3038 = vld [vmem:[%s2993 + $0xb0] sm:$0xf]
        %v3039 = vld [vmem:[%s2993 + $0xb4] sm:$0xf]
        %v3040 = vld [vmem:[%s2993 + $0xb8] sm:$0xf]
        %v3041 = vld [vmem:[%s2993 + $0xbc] sm:$0xf]
        %s3042 = scalar_lea.vmem [#allocation8], 384
        %v3043 = vld [vmem:[%s3042] sm:$0xf]
        %v3044 = vld [vmem:[%s3042 + $0x4] sm:$0xf]
        %v3045 = vld [vmem:[%s3042 + $0x8] sm:$0xf]
        %v3046 = vld [vmem:[%s3042 + $0xc] sm:$0xf]
        %v3047 = vld [vmem:[%s3042 + $0x10] sm:$0xf]
        %v3048 = vld [vmem:[%s3042 + $0x14] sm:$0xf]
        %v3049 = vld [vmem:[%s3042 + $0x18] sm:$0xf]
        %v3050 = vld [vmem:[%s3042 + $0x1c] sm:$0xf]
        %v3051 = vld [vmem:[%s3042 + $0x20] sm:$0xf]
        %v3052 = vld [vmem:[%s3042 + $0x24] sm:$0xf]
        %v3053 = vld [vmem:[%s3042 + $0x28] sm:$0xf]
        %v3054 = vld [vmem:[%s3042 + $0x2c] sm:$0xf]
        %v3055 = vld [vmem:[%s3042 + $0x30] sm:$0xf]
        %v3056 = vld [vmem:[%s3042 + $0x34] sm:$0xf]
        %v3057 = vld [vmem:[%s3042 + $0x38] sm:$0xf]
        %v3058 = vld [vmem:[%s3042 + $0x3c] sm:$0xf]
        %v3059 = vld [vmem:[%s3042 + $0x40] sm:$0xf]
        %v3060 = vld [vmem:[%s3042 + $0x44] sm:$0xf]
        %v3061 = vld [vmem:[%s3042 + $0x48] sm:$0xf]
        %v3062 = vld [vmem:[%s3042 + $0x4c] sm:$0xf]
        %v3063 = vld [vmem:[%s3042 + $0x50] sm:$0xf]
        %v3064 = vld [vmem:[%s3042 + $0x54] sm:$0xf]
        %v3065 = vld [vmem:[%s3042 + $0x58] sm:$0xf]
        %v3066 = vld [vmem:[%s3042 + $0x5c] sm:$0xf]
        %v3067 = vld [vmem:[%s3042 + $0x60] sm:$0xf]
        %v3068 = vld [vmem:[%s3042 + $0x64] sm:$0xf]
        %v3069 = vld [vmem:[%s3042 + $0x68] sm:$0xf]
        %v3070 = vld [vmem:[%s3042 + $0x6c] sm:$0xf]
        %v3071 = vld [vmem:[%s3042 + $0x70] sm:$0xf]
        %v3072 = vld [vmem:[%s3042 + $0x74] sm:$0xf]
        %v3073 = vld [vmem:[%s3042 + $0x78] sm:$0xf]
        %v3074 = vld [vmem:[%s3042 + $0x7c] sm:$0xf]
        %v3075 = vld [vmem:[%s3042 + $0x80] sm:$0xf]
        %v3076 = vld [vmem:[%s3042 + $0x84] sm:$0xf]
        %v3077 = vld [vmem:[%s3042 + $0x88] sm:$0xf]
        %v3078 = vld [vmem:[%s3042 + $0x8c] sm:$0xf]
        %v3079 = vld [vmem:[%s3042 + $0x90] sm:$0xf]
        %v3080 = vld [vmem:[%s3042 + $0x94] sm:$0xf]
        %v3081 = vld [vmem:[%s3042 + $0x98] sm:$0xf]
        %v3082 = vld [vmem:[%s3042 + $0x9c] sm:$0xf]
        %v3083 = vld [vmem:[%s3042 + $0xa0] sm:$0xf]
        %v3084 = vld [vmem:[%s3042 + $0xa4] sm:$0xf]
        %v3085 = vld [vmem:[%s3042 + $0xa8] sm:$0xf]
        %v3086 = vld [vmem:[%s3042 + $0xac] sm:$0xf]
        %v3087 = vld [vmem:[%s3042 + $0xb0] sm:$0xf]
        %v3088 = vld [vmem:[%s3042 + $0xb4] sm:$0xf]
        %v3089 = vld [vmem:[%s3042 + $0xb8] sm:$0xf]
        %v3090 = vld [vmem:[%s3042 + $0xbc] sm:$0xf]
        %v3139 = vunpack.c.l.b16 %v3043
        %v3140 = vunpack.c.l.b16 %v3044
        %v3141 = vunpack.c.l.b16 %v3045
        %v3142 = vunpack.c.l.b16 %v3046
        %v3143 = vunpack.c.l.b16 %v3047
        %v3144 = vunpack.c.l.b16 %v3048
        %v3145 = vunpack.c.l.b16 %v3049
        %v3146 = vunpack.c.l.b16 %v3050
        %v3147 = vunpack.c.l.b16 %v3051
        %v3148 = vunpack.c.l.b16 %v3052
        %v3149 = vunpack.c.l.b16 %v3053
        %v3150 = vunpack.c.l.b16 %v3054
        %v3151 = vunpack.c.l.b16 %v3055
        %v3152 = vunpack.c.l.b16 %v3056
        %v3153 = vunpack.c.l.b16 %v3057
        %v3154 = vunpack.c.l.b16 %v3058
        %v3155 = vunpack.c.l.b16 %v3059
        %v3156 = vunpack.c.l.b16 %v3060
        %v3157 = vunpack.c.l.b16 %v3061
        %v3158 = vunpack.c.l.b16 %v3062
        %v3159 = vunpack.c.l.b16 %v3063
        %v3160 = vunpack.c.l.b16 %v3064
        %v3161 = vunpack.c.l.b16 %v3065
        %v3162 = vunpack.c.l.b16 %v3066
        %v3163 = vunpack.c.l.b16 %v3067
        %v3164 = vunpack.c.l.b16 %v3068
        %v3165 = vunpack.c.l.b16 %v3069
        %v3166 = vunpack.c.l.b16 %v3070
        %v3167 = vunpack.c.l.b16 %v3071
        %v3168 = vunpack.c.l.b16 %v3072
        %v3169 = vunpack.c.l.b16 %v3073
        %v3170 = vunpack.c.l.b16 %v3074
        %v3171 = vunpack.c.l.b16 %v3075
        %v3172 = vunpack.c.l.b16 %v3076
        %v3173 = vunpack.c.l.b16 %v3077
        %v3174 = vunpack.c.l.b16 %v3078
        %v3175 = vunpack.c.l.b16 %v3079
        %v3176 = vunpack.c.l.b16 %v3080
        %v3177 = vunpack.c.l.b16 %v3081
        %v3178 = vunpack.c.l.b16 %v3082
        %v3179 = vunpack.c.l.b16 %v3083
        %v3180 = vunpack.c.l.b16 %v3084
        %v3181 = vunpack.c.l.b16 %v3085
        %v3182 = vunpack.c.l.b16 %v3086
        %v3183 = vunpack.c.l.b16 %v3087
        %v3184 = vunpack.c.l.b16 %v3088
        %v3185 = vunpack.c.l.b16 %v3089
        %v3186 = vunpack.c.l.b16 %v3090
        %v3187 = vpack.c.b16 %v3140, %v3139
        %v3188 = vpack.c.b16 %v3142, %v3141
        %v3189 = vpack.c.b16 %v3144, %v3143
        %v3190 = vpack.c.b16 %v3146, %v3145
        %v3191 = vpack.c.b16 %v3148, %v3147
        %v3192 = vpack.c.b16 %v3150, %v3149
        %v3193 = vpack.c.b16 %v3152, %v3151
        %v3194 = vpack.c.b16 %v3154, %v3153
        %v3195 = vpack.c.b16 %v3156, %v3155
        %v3196 = vpack.c.b16 %v3158, %v3157
        %v3197 = vpack.c.b16 %v3160, %v3159
        %v3198 = vpack.c.b16 %v3162, %v3161
        %v3199 = vpack.c.b16 %v3164, %v3163
        %v3200 = vpack.c.b16 %v3166, %v3165
        %v3201 = vpack.c.b16 %v3168, %v3167
        %v3202 = vpack.c.b16 %v3170, %v3169
        %v3203 = vpack.c.b16 %v3172, %v3171
        %v3204 = vpack.c.b16 %v3174, %v3173
        %v3205 = vpack.c.b16 %v3176, %v3175
        %v3206 = vpack.c.b16 %v3178, %v3177
        %v3207 = vpack.c.b16 %v3180, %v3179
        %v3208 = vpack.c.b16 %v3182, %v3181
        %v3209 = vpack.c.b16 %v3184, %v3183
        %v3210 = vpack.c.b16 %v3186, %v3185
        %3235 = vmatprep.subr.bf16.mxu0 0
        %3236 = vmatpush1.bf16.msra.mxu0 %v3187
        %3237 = vmatprep.subr.bf16.mxu0 0
        %3238 = vmatpush1.bf16.msra.mxu0 %v3188
        %3239 = vmatprep.subr.bf16.mxu0 0
        %3240 = vmatpush1.bf16.msra.mxu0 %v3189
        %3241 = vmatprep.subr.bf16.mxu0 0
        %3242 = vmatpush1.bf16.msra.mxu0 %v3190
        %3243 = vmatprep.subr.bf16.mxu0 0
        %3244 = vmatpush1.bf16.msra.mxu0 %v3191
        %3245 = vmatprep.subr.bf16.mxu0 0
        %3246 = vmatpush1.bf16.msra.mxu0 %v3192
        %3247 = vmatprep.subr.bf16.mxu0 0
        %3248 = vmatpush1.bf16.msra.mxu0 %v3193
        %3249 = vmatprep.subr.bf16.mxu0 0
        %3250 = vmatpush1.bf16.msra.mxu0 %v3194
        %3251 = vmatprep.subr.bf16.mxu0 0
        %3252 = vmatpush1.bf16.msra.mxu0 %v3195
        %3253 = vmatprep.subr.bf16.mxu0 0
        %3254 = vmatpush1.bf16.msra.mxu0 %v3196
        %3255 = vmatprep.subr.bf16.mxu0 0
        %3256 = vmatpush1.bf16.msra.mxu0 %v3197
        %3257 = vmatprep.subr.bf16.mxu0 0
        %3258 = vmatpush1.bf16.msra.mxu0 %v3198
        %3259 = vmatprep.subr.bf16.mxu0 0
        %3260 = vmatpush1.bf16.msra.mxu0 %v3199
        %3261 = vmatprep.subr.bf16.mxu0 0
        %3262 = vmatpush1.bf16.msra.mxu0 %v3200
        %3263 = vmatprep.subr.bf16.mxu0 0
        %3264 = vmatpush1.bf16.msra.mxu0 %v3201
        %3265 = vmatprep.subr.bf16.mxu0 0
        %3266 = vmatpush1.bf16.msra.mxu0 %v3202
        %3267 = vmatprep.mubr.bf16.mxu0 %v2447
        %3268 = vmatmul.mubr.bf16.gmra.mrb[0].mxu0 %v2431
        %v3269 = vpop.f32.mrb[0].mxu0
        %v3270 = vadd.f32 0.0, %v3269
        %v3271 = vpop.f32.mrb[0].mxu0
        %v3272 = vpop.f32.mrb[0].mxu0
        %v3273 = vadd.f32 0.0, %v3272
        %v3274 = vpop.f32.mrb[0].mxu0
        %3275 = vmatprep.mubr.bf16.mxu0 %v2448
        %3276 = vmatmul.mubr.bf16.gmra.mrb[0].mxu0 %v2432
        %v3277 = vpop.f32.mrb[0].mxu0
        %v3278 = vadd.f32 0.0, %v3277
        %v3279 = vpop.f32.mrb[0].mxu0
        %v3280 = vpop.f32.mrb[0].mxu0
        %v3281 = vadd.f32 0.0, %v3280
        %v3282 = vpop.f32.mrb[0].mxu0
        %3283 = vmatprep.mubr.bf16.mxu0 %v2449
        %3284 = vmatmul.mubr.bf16.gmra.mrb[0].mxu0 %v2433
        %v3285 = vpop.f32.mrb[0].mxu0
        %v3286 = vadd.f32 0.0, %v3285
        %v3287 = vpop.f32.mrb[0].mxu0
        %v3288 = vpop.f32.mrb[0].mxu0
        %v3289 = vadd.f32 0.0, %v3288
        %v3290 = vpop.f32.mrb[0].mxu0
        %3291 = vmatprep.mubr.bf16.mxu0 %v2450
        %3292 = vmatmul.mubr.bf16.gmra.mrb[0].mxu0 %v2434
        %v3293 = vpop.f32.mrb[0].mxu0
        %v3294 = vadd.f32 0.0, %v3293
        %v3295 = vpop.f32.mrb[0].mxu0
        %v3296 = vpop.f32.mrb[0].mxu0
        %v3297 = vadd.f32 0.0, %v3296
        %v3298 = vpop.f32.mrb[0].mxu0
        %3299 = vmatprep.mubr.bf16.mxu0 %v2451
        %3300 = vmatmul.mubr.bf16.gmra.mrb[0].mxu0 %v2435
        %v3301 = vpop.f32.mrb[0].mxu0
        %v3302 = vadd.f32 0.0, %v3301
        %v3303 = vpop.f32.mrb[0].mxu0
        %v3304 = vpop.f32.mrb[0].mxu0
        %v3305 = vadd.f32 0.0, %v3304
        %v3306 = vpop.f32.mrb[0].mxu0
        %3307 = vmatprep.mubr.bf16.mxu0 %v2452
        %3308 = vmatmul.mubr.bf16.gmra.mrb[0].mxu0 %v2436
        %v3309 = vpop.f32.mrb[0].mxu0
        %v3310 = vadd.f32 0.0, %v3309
        %v3311 = vpop.f32.mrb[0].mxu0
        %v3312 = vpop.f32.mrb[0].mxu0
        %v3313 = vadd.f32 0.0, %v3312
        %v3314 = vpop.f32.mrb[0].mxu0
        %3315 = vmatprep.mubr.bf16.mxu0 %v2453
        %3316 = vmatmul.mubr.bf16.gmra.mrb[0].mxu0 %v2437
        %v3317 = vpop.f32.mrb[0].mxu0
        %v3318 = vadd.f32 0.0, %v3317
        %v3319 = vpop.f32.mrb[0].mxu0
        %v3320 = vpop.f32.mrb[0].mxu0
        %v3321 = vadd.f32 0.0, %v3320
        %v3322 = vpop.f32.mrb[0].mxu0
        %3323 = vmatprep.mubr.bf16.mxu0 %v2454
        %3324 = vmatmul.mubr.bf16.gmra.mrb[0].mxu0 %v2438
        %v3325 = vpop.f32.mrb[0].mxu0
        %v3326 = vadd.f32 0.0, %v3325
        %v3327 = vpop.f32.mrb[0].mxu0
        %v3328 = vpop.f32.mrb[0].mxu0
        %v3329 = vadd.f32 0.0, %v3328
        %v3330 = vpop.f32.mrb[0].mxu0
        %3331 = vmatprep.mubr.bf16.mxu0 %v2455
        %3332 = vmatmul.mubr.bf16.gmra.mrb[0].mxu0 %v2439
        %v3333 = vpop.f32.mrb[0].mxu0
        %v3334 = vadd.f32 0.0, %v3333
        %v3335 = vpop.f32.mrb[0].mxu0
        %v3336 = vpop.f32.mrb[0].mxu0
        %v3337 = vadd.f32 0.0, %v3336
        %v3338 = vpop.f32.mrb[0].mxu0
        %3339 = vmatprep.mubr.bf16.mxu0 %v2456
        %3340 = vmatmul.mubr.bf16.gmra.mrb[0].mxu0 %v2440
        %v3341 = vpop.f32.mrb[0].mxu0
        %v3342 = vadd.f32 0.0, %v3341
        %v3343 = vpop.f32.mrb[0].mxu0
        %v3344 = vpop.f32.mrb[0].mxu0
        %v3345 = vadd.f32 0.0, %v3344
        %v3346 = vpop.f32.mrb[0].mxu0
        %3347 = vmatprep.mubr.bf16.mxu0 %v2457
        %3348 = vmatmul.mubr.bf16.gmra.mrb[0].mxu0 %v2441
        %v3349 = vpop.f32.mrb[0].mxu0
        %v3350 = vadd.f32 0.0, %v3349
        %v3351 = vpop.f32.mrb[0].mxu0
        %v3352 = vpop.f32.mrb[0].mxu0
        %v3353 = vadd.f32 0.0, %v3352
        %v3354 = vpop.f32.mrb[0].mxu0
        %3355 = vmatprep.mubr.bf16.mxu0 %v2458
        %3356 = vmatmul.mubr.bf16.gmra.mrb[0].mxu0 %v2442
        %v3357 = vpop.f32.mrb[0].mxu0
        %v3358 = vadd.f32 0.0, %v3357
        %v3359 = vpop.f32.mrb[0].mxu0
        %v3360 = vpop.f32.mrb[0].mxu0
        %v3361 = vadd.f32 0.0, %v3360
        %v3362 = vpop.f32.mrb[0].mxu0
        %3363 = vmatprep.mubr.bf16.mxu0 %v2459
        %3364 = vmatmul.mubr.bf16.gmra.mrb[0].mxu0 %v2443
        %v3365 = vpop.f32.mrb[0].mxu0
        %v3366 = vadd.f32 0.0, %v3365
        %v3367 = vpop.f32.mrb[0].mxu0
        %v3368 = vpop.f32.mrb[0].mxu0
        %v3369 = vadd.f32 0.0, %v3368
        %v3370 = vpop.f32.mrb[0].mxu0
        %3371 = vmatprep.mubr.bf16.mxu0 %v2460
        %3372 = vmatmul.mubr.bf16.gmra.mrb[0].mxu0 %v2444
        %v3373 = vpop.f32.mrb[0].mxu0
        %v3374 = vadd.f32 0.0, %v3373
        %v3375 = vpop.f32.mrb[0].mxu0
        %v3376 = vpop.f32.mrb[0].mxu0
        %v3377 = vadd.f32 0.0, %v3376
        %v3378 = vpop.f32.mrb[0].mxu0
        %3379 = vmatprep.mubr.bf16.mxu0 %v2461
        %3380 = vmatmul.mubr.bf16.gmra.mrb[0].mxu0 %v2445
        %v3381 = vpop.f32.mrb[0].mxu0
        %v3382 = vadd.f32 0.0, %v3381
        %v3383 = vpop.f32.mrb[0].mxu0
        %v3384 = vpop.f32.mrb[0].mxu0
        %v3385 = vadd.f32 0.0, %v3384
        %v3386 = vpop.f32.mrb[0].mxu0
        %3387 = vmatprep.mubr.bf16.mxu0 %v2462
        %3388 = vmatmul.mubr.bf16.gmra.mrb[0].mxu0 %v2446
        %v3389 = vpop.f32.mrb[0].mxu0
        %v3390 = vadd.f32 0.0, %v3389
        %v3391 = vpop.f32.mrb[0].mxu0
        %v3392 = vpop.f32.mrb[0].mxu0
        %v3393 = vadd.f32 0.0, %v3392
        %v3394 = vpop.f32.mrb[0].mxu0
        %3395 = vdwg.mxu0
        %3396 = vmatprep.subr.bf16.mxu0 0
        %3397 = vmatpush1.bf16.msra.mxu0 %v3203
        %3398 = vmatprep.subr.bf16.mxu0 0
        %3399 = vmatpush1.bf16.msra.mxu0 %v3204
        %3400 = vmatprep.subr.bf16.mxu0 0
        %3401 = vmatpush1.bf16.msra.mxu0 %v3205
        %3402 = vmatprep.subr.bf16.mxu0 0
        %3403 = vmatpush1.bf16.msra.mxu0 %v3206
        %3404 = vmatprep.subr.bf16.mxu0 0
        %3405 = vmatpush1.bf16.msra.mxu0 %v3207
        %3406 = vmatprep.subr.bf16.mxu0 0
        %3407 = vmatpush1.bf16.msra.mxu0 %v3208
        %3408 = vmatprep.subr.bf16.mxu0 0
        %3409 = vmatpush1.bf16.msra.mxu0 %v3209
        %3410 = vmatprep.subr.bf16.mxu0 0
        %3411 = vmatpush1.bf16.msra.mxu0 %v3210
        %3412 = vmatprep.subr.bf16.mxu0 0
        %3413 = vmatpush1.bf16.msra.mxu0 0
        %3414 = vmatprep.subr.bf16.mxu0 0
        %3415 = vmatpush1.bf16.msra.mxu0 0
        %3416 = vmatprep.subr.bf16.mxu0 0
        %3417 = vmatpush1.bf16.msra.mxu0 0
        %3418 = vmatprep.subr.bf16.mxu0 0
        %3419 = vmatpush1.bf16.msra.mxu0 0
        %3420 = vmatprep.subr.bf16.mxu0 0
        %3421 = vmatpush1.bf16.msra.mxu0 0
        %3422 = vmatprep.subr.bf16.mxu0 0
        %3423 = vmatpush1.bf16.msra.mxu0 0
        %3424 = vmatprep.subr.bf16.mxu0 0
        %3425 = vmatpush1.bf16.msra.mxu0 0
        %3426 = vmatprep.subr.bf16.mxu0 0
        %3427 = vmatpush1.bf16.msra.mxu0 0
        %3428 = vmatprep.mubr.bf16.mxu0 0
        %3429 = vmatmul.mubr.bf16.gmra.mrb[0].mxu0 %v2463
        %v3430 = vpop.f32.mrb[0].mxu0
        %v3431 = vadd.f32 %v3270, %v3430
        %v3432 = vpop.f32.mrb[0].mxu0
        %v3433 = vpop.f32.mrb[0].mxu0
        %v3434 = vadd.f32 %v3273, %v3433
        %v3435 = vpop.f32.mrb[0].mxu0
        %3436 = vmatprep.mubr.bf16.mxu0 0
        %3437 = vmatmul.mubr.bf16.gmra.mrb[0].mxu0 %v2464
        %v3438 = vpop.f32.mrb[0].mxu0
        %v3439 = vadd.f32 %v3278, %v3438
        %v3440 = vpop.f32.mrb[0].mxu0
        %v3441 = vpop.f32.mrb[0].mxu0
        %v3442 = vadd.f32 %v3281, %v3441
        %v3443 = vpop.f32.mrb[0].mxu0
        %3444 = vmatprep.mubr.bf16.mxu0 0
        %3445 = vmatmul.mubr.bf16.gmra.mrb[0].mxu0 %v2465
        %v3446 = vpop.f32.mrb[0].mxu0
        %v3447 = vadd.f32 %v3286, %v3446
        %v3448 = vpop.f32.mrb[0].mxu0
        %v3449 = vpop.f32.mrb[0].mxu0
        %v3450 = vadd.f32 %v3289, %v3449
        %v3451 = vpop.f32.mrb[0].mxu0
        %3452 = vmatprep.mubr.bf16.mxu0 0
        %3453 = vmatmul.mubr.bf16.gmra.mrb[0].mxu0 %v2466
        %v3454 = vpop.f32.mrb[0].mxu0
        %v3455 = vadd.f32 %v3294, %v3454
        %v3456 = vpop.f32.mrb[0].mxu0
        %v3457 = vpop.f32.mrb[0].mxu0
        %v3458 = vadd.f32 %v3297, %v3457
        %v3459 = vpop.f32.mrb[0].mxu0
        %3460 = vmatprep.mubr.bf16.mxu0 0
        %3461 = vmatmul.mubr.bf16.gmra.mrb[0].mxu0 %v2467
        %v3462 = vpop.f32.mrb[0].mxu0
        %v3463 = vadd.f32 %v3302, %v3462
        %v3464 = vpop.f32.mrb[0].mxu0
        %v3465 = vpop.f32.mrb[0].mxu0
        %v3466 = vadd.f32 %v3305, %v3465
        %v3467 = vpop.f32.mrb[0].mxu0
        %3468 = vmatprep.mubr.bf16.mxu0 0
        %3469 = vmatmul.mubr.bf16.gmra.mrb[0].mxu0 %v2468
        %v3470 = vpop.f32.mrb[0].mxu0
        %v3471 = vadd.f32 %v3310, %v3470
        %v3472 = vpop.f32.mrb[0].mxu0
        %v3473 = vpop.f32.mrb[0].mxu0
        %v3474 = vadd.f32 %v3313, %v3473
        %v3475 = vpop.f32.mrb[0].mxu0
        %3476 = vmatprep.mubr.bf16.mxu0 0
        %3477 = vmatmul.mubr.bf16.gmra.mrb[0].mxu0 %v2469
        %v3478 = vpop.f32.mrb[0].mxu0
        %v3479 = vadd.f32 %v3318, %v3478
        %v3480 = vpop.f32.mrb[0].mxu0
        %v3481 = vpop.f32.mrb[0].mxu0
        %v3482 = vadd.f32 %v3321, %v3481
        %v3483 = vpop.f32.mrb[0].mxu0
        %3484 = vmatprep.mubr.bf16.mxu0 0
        %3485 = vmatmul.mubr.bf16.gmra.mrb[0].mxu0 %v2470
        %v3486 = vpop.f32.mrb[0].mxu0
        %v3487 = vadd.f32 %v3326, %v3486
        %v3488 = vpop.f32.mrb[0].mxu0
        %v3489 = vpop.f32.mrb[0].mxu0
        %v3490 = vadd.f32 %v3329, %v3489
        %v3491 = vpop.f32.mrb[0].mxu0
        %3492 = vmatprep.mubr.bf16.mxu0 0
        %3493 = vmatmul.mubr.bf16.gmra.mrb[0].mxu0 %v2471
        %v3494 = vpop.f32.mrb[0].mxu0
        %v3495 = vadd.f32 %v3334, %v3494
        %v3496 = vpop.f32.mrb[0].mxu0
        %v3497 = vpop.f32.mrb[0].mxu0
        %v3498 = vadd.f32 %v3337, %v3497
        %v3499 = vpop.f32.mrb[0].mxu0
        %3500 = vmatprep.mubr.bf16.mxu0 0
        %3501 = vmatmul.mubr.bf16.gmra.mrb[0].mxu0 %v2472
        %v3502 = vpop.f32.mrb[0].mxu0
        %v3503 = vadd.f32 %v3342, %v3502
        %v3504 = vpop.f32.mrb[0].mxu0
        %v3505 = vpop.f32.mrb[0].mxu0
        %v3506 = vadd.f32 %v3345, %v3505
        %v3507 = vpop.f32.mrb[0].mxu0
        %3508 = vmatprep.mubr.bf16.mxu0 0
        %3509 = vmatmul.mubr.bf16.gmra.mrb[0].mxu0 %v2473
        %v3510 = vpop.f32.mrb[0].mxu0
        %v3511 = vadd.f32 %v3350, %v3510
        %v3512 = vpop.f32.mrb[0].mxu0
        %v3513 = vpop.f32.mrb[0].mxu0
        %v3514 = vadd.f32 %v3353, %v3513
        %v3515 = vpop.f32.mrb[0].mxu0
        %3516 = vmatprep.mubr.bf16.mxu0 0
        %3517 = vmatmul.mubr.bf16.gmra.mrb[0].mxu0 %v2474
        %v3518 = vpop.f32.mrb[0].mxu0
        %v3519 = vadd.f32 %v3358, %v3518
        %v3520 = vpop.f32.mrb[0].mxu0
        %v3521 = vpop.f32.mrb[0].mxu0
        %v3522 = vadd.f32 %v3361, %v3521
        %v3523 = vpop.f32.mrb[0].mxu0
        %3524 = vmatprep.mubr.bf16.mxu0 0
        %3525 = vmatmul.mubr.bf16.gmra.mrb[0].mxu0 %v2475
        %v3526 = vpop.f32.mrb[0].mxu0
        %v3527 = vadd.f32 %v3366, %v3526
        %v3528 = vpop.f32.mrb[0].mxu0
        %v3529 = vpop.f32.mrb[0].mxu0
        %v3530 = vadd.f32 %v3369, %v3529
        %v3531 = vpop.f32.mrb[0].mxu0
        %3532 = vmatprep.mubr.bf16.mxu0 0
        %3533 = vmatmul.mubr.bf16.gmra.mrb[0].mxu0 %v2476
        %v3534 = vpop.f32.mrb[0].mxu0
        %v3535 = vadd.f32 %v3374, %v3534
        %v3536 = vpop.f32.mrb[0].mxu0
        %v3537 = vpop.f32.mrb[0].mxu0
        %v3538 = vadd.f32 %v3377, %v3537
        %v3539 = vpop.f32.mrb[0].mxu0
        %3540 = vmatprep.mubr.bf16.mxu0 0
        %3541 = vmatmul.mubr.bf16.gmra.mrb[0].mxu0 %v2477
        %v3542 = vpop.f32.mrb[0].mxu0
        %v3543 = vadd.f32 %v3382, %v3542
        %v3544 = vpop.f32.mrb[0].mxu0
        %v3545 = vpop.f32.mrb[0].mxu0
        %v3546 = vadd.f32 %v3385, %v3545
        %v3547 = vpop.f32.mrb[0].mxu0
        %3548 = vmatprep.mubr.bf16.mxu0 0
        %3549 = vmatmul.mubr.bf16.gmra.mrb[0].mxu0 %v2478
        %v3550 = vpop.f32.mrb[0].mxu0
        %v3551 = vadd.f32 %v3390, %v3550
        %v3552 = vpop.f32.mrb[0].mxu0
        %v3553 = vpop.f32.mrb[0].mxu0
        %v3554 = vadd.f32 %v3393, %v3553
        %v3555 = vpop.f32.mrb[0].mxu0
        %3556 = vdwg.mxu0
        %v3557 = vsel %vm1526, 1, 0
        %v3558 = vsel %vm1527, 1, 0
        %v3559 = vsel %vm1528, 1, 0
        %v3560 = vsel %vm1529, 1, 0
        %v3561 = vsel %vm1530, 1, 0
        %v3562 = vsel %vm1531, 1, 0
        %v3563 = vsel %vm1532, 1, 0
        %v3564 = vsel %vm1533, 1, 0
        %v3565 = vsel %vm1534, 1, 0
        %v3566 = vsel %vm1535, 1, 0
        %v3567 = vsel %vm1536, 1, 0
        %v3568 = vsel %vm1537, 1, 0
        %v3569 = vsel %vm1538, 1, 0
        %v3570 = vsel %vm1539, 1, 0
        %v3571 = vsel %vm1540, 1, 0
        %v3572 = vsel %vm1541, 1, 0
        %v3573 = vsel %vm1542, 1, 0
        %v3574 = vsel %vm1543, 1, 0
        %v3575 = vsel %vm1544, 1, 0
        %v3576 = vsel %vm1545, 1, 0
        %v3577 = vsel %vm1546, 1, 0
        %v3578 = vsel %vm1547, 1, 0
        %v3579 = vsel %vm1548, 1, 0
        %v3580 = vsel %vm1549, 1, 0
        %v3581 = vsel %vm1550, 1, 0
        %v3582 = vsel %vm1551, 1, 0
        %v3583 = vsel %vm1552, 1, 0
        %v3584 = vsel %vm1553, 1, 0
        %v3585 = vsel %vm1554, 1, 0
        %v3586 = vsel %vm1555, 1, 0
        %v3587 = vsel %vm1556, 1, 0
        %v3588 = vsel %vm1557, 1, 0
        %vm3589 = vcmp.eq.s32.totalorder %v3557, 1
        %vm3590 = vcmp.eq.s32.totalorder %v3558, 1
        %vm3591 = vcmp.eq.s32.totalorder %v3559, 1
        %vm3592 = vcmp.eq.s32.totalorder %v3560, 1
        %vm3593 = vcmp.eq.s32.totalorder %v3561, 1
        %vm3594 = vcmp.eq.s32.totalorder %v3562, 1
        %vm3595 = vcmp.eq.s32.totalorder %v3563, 1
        %vm3596 = vcmp.eq.s32.totalorder %v3564, 1
        %vm3597 = vcmp.eq.s32.totalorder %v3565, 1
        %vm3598 = vcmp.eq.s32.totalorder %v3566, 1
        %vm3599 = vcmp.eq.s32.totalorder %v3567, 1
        %vm3600 = vcmp.eq.s32.totalorder %v3568, 1
        %vm3601 = vcmp.eq.s32.totalorder %v3569, 1
        %vm3602 = vcmp.eq.s32.totalorder %v3570, 1
        %vm3603 = vcmp.eq.s32.totalorder %v3571, 1
        %vm3604 = vcmp.eq.s32.totalorder %v3572, 1
        %vm3605 = vcmp.eq.s32.totalorder %v3573, 1
        %vm3606 = vcmp.eq.s32.totalorder %v3574, 1
        %vm3607 = vcmp.eq.s32.totalorder %v3575, 1
        %vm3608 = vcmp.eq.s32.totalorder %v3576, 1
        %vm3609 = vcmp.eq.s32.totalorder %v3577, 1
        %vm3610 = vcmp.eq.s32.totalorder %v3578, 1
        %vm3611 = vcmp.eq.s32.totalorder %v3579, 1
        %vm3612 = vcmp.eq.s32.totalorder %v3580, 1
        %vm3613 = vcmp.eq.s32.totalorder %v3581, 1
        %vm3614 = vcmp.eq.s32.totalorder %v3582, 1
        %vm3615 = vcmp.eq.s32.totalorder %v3583, 1
        %vm3616 = vcmp.eq.s32.totalorder %v3584, 1
        %vm3617 = vcmp.eq.s32.totalorder %v3585, 1
        %vm3618 = vcmp.eq.s32.totalorder %v3586, 1
        %vm3619 = vcmp.eq.s32.totalorder %v3587, 1
        %vm3620 = vcmp.eq.s32.totalorder %v3588, 1
        %v3621 = vsel %vm3589, %v2987, 0.0
        %v3622 = vsel %vm3590, %v2990, 0.0
        %v3623 = vsel %vm3591, %v2867, 0.0
        %v3624 = vsel %vm3592, %v2870, 0.0
        %v3625 = vsel %vm3593, %v2875, 0.0
        %v3626 = vsel %vm3594, %v2878, 0.0
        %v3627 = vsel %vm3595, %v2883, 0.0
        %v3628 = vsel %vm3596, %v2886, 0.0
        %v3629 = vsel %vm3597, %v2891, 0.0
        %v3630 = vsel %vm3598, %v2894, 0.0
        %v3631 = vsel %vm3599, %v2899, 0.0
        %v3632 = vsel %vm3600, %v2902, 0.0
        %v3633 = vsel %vm3601, %v2907, 0.0
        %v3634 = vsel %vm3602, %v2910, 0.0
        %v3635 = vsel %vm3603, %v2915, 0.0
        %v3636 = vsel %vm3604, %v2918, 0.0
        %v3637 = vsel %vm3605, %v2923, 0.0
        %v3638 = vsel %vm3606, %v2926, 0.0
        %v3639 = vsel %vm3607, %v2931, 0.0
        %v3640 = vsel %vm3608, %v2934, 0.0
        %v3641 = vsel %vm3609, %v2939, 0.0
        %v3642 = vsel %vm3610, %v2942, 0.0
        %v3643 = vsel %vm3611, %v2947, 0.0
        %v3644 = vsel %vm3612, %v2950, 0.0
        %v3645 = vsel %vm3613, %v2955, 0.0
        %v3646 = vsel %vm3614, %v2958, 0.0
        %v3647 = vsel %vm3615, %v2963, 0.0
        %v3648 = vsel %vm3616, %v2966, 0.0
        %v3649 = vsel %vm3617, %v2971, 0.0
        %v3650 = vsel %vm3618, %v2974, 0.0
        %v3651 = vsel %vm3619, %v2979, 0.0
        %v3652 = vsel %vm3620, %v2982, 0.0
        %v3701 = vunpack.c.l.b16 %v2994
        %v3702 = vunpack.c.l.b16 %v2995
        %v3703 = vunpack.c.l.b16 %v2996
        %v3704 = vunpack.c.l.b16 %v2997
        %v3705 = vunpack.c.l.b16 %v2998
        %v3706 = vunpack.c.l.b16 %v2999
        %v3707 = vunpack.c.l.b16 %v3000
        %v3708 = vunpack.c.l.b16 %v3001
        %v3709 = vunpack.c.l.b16 %v3002
        %v3710 = vunpack.c.l.b16 %v3003
        %v3711 = vunpack.c.l.b16 %v3004
        %v3712 = vunpack.c.l.b16 %v3005
        %v3713 = vunpack.c.l.b16 %v3006
        %v3714 = vunpack.c.l.b16 %v3007
        %v3715 = vunpack.c.l.b16 %v3008
        %v3716 = vunpack.c.l.b16 %v3009
        %v3717 = vunpack.c.l.b16 %v3010
        %v3718 = vunpack.c.l.b16 %v3011
        %v3719 = vunpack.c.l.b16 %v3012
        %v3720 = vunpack.c.l.b16 %v3013
        %v3721 = vunpack.c.l.b16 %v3014
        %v3722 = vunpack.c.l.b16 %v3015
        %v3723 = vunpack.c.l.b16 %v3016
        %v3724 = vunpack.c.l.b16 %v3017
        %v3725 = vunpack.c.l.b16 %v3018
        %v3726 = vunpack.c.l.b16 %v3019
        %v3727 = vunpack.c.l.b16 %v3020
        %v3728 = vunpack.c.l.b16 %v3021
        %v3729 = vunpack.c.l.b16 %v3022
        %v3730 = vunpack.c.l.b16 %v3023
        %v3731 = vunpack.c.l.b16 %v3024
        %v3732 = vunpack.c.l.b16 %v3025
        %v3733 = vunpack.c.l.b16 %v3026
        %v3734 = vunpack.c.l.b16 %v3027
        %v3735 = vunpack.c.l.b16 %v3028
        %v3736 = vunpack.c.l.b16 %v3029
        %v3737 = vunpack.c.l.b16 %v3030
        %v3738 = vunpack.c.l.b16 %v3031
        %v3739 = vunpack.c.l.b16 %v3032
        %v3740 = vunpack.c.l.b16 %v3033
        %v3741 = vunpack.c.l.b16 %v3034
        %v3742 = vunpack.c.l.b16 %v3035
        %v3743 = vunpack.c.l.b16 %v3036
        %v3744 = vunpack.c.l.b16 %v3037
        %v3745 = vunpack.c.l.b16 %v3038
        %v3746 = vunpack.c.l.b16 %v3039
        %v3747 = vunpack.c.l.b16 %v3040
        %v3748 = vunpack.c.l.b16 %v3041
        %v3749 = vpack.c.b16 %v3702, %v3701
        %v3750 = vpack.c.b16 %v3704, %v3703
        %v3751 = vpack.c.b16 %v3706, %v3705
        %v3752 = vpack.c.b16 %v3708, %v3707
        %v3753 = vpack.c.b16 %v3710, %v3709
        %v3754 = vpack.c.b16 %v3712, %v3711
        %v3755 = vpack.c.b16 %v3714, %v3713
        %v3756 = vpack.c.b16 %v3716, %v3715
        %v3757 = vpack.c.b16 %v3718, %v3717
        %v3758 = vpack.c.b16 %v3720, %v3719
        %v3759 = vpack.c.b16 %v3722, %v3721
        %v3760 = vpack.c.b16 %v3724, %v3723
        %v3761 = vpack.c.b16 %v3726, %v3725
        %v3762 = vpack.c.b16 %v3728, %v3727
        %v3763 = vpack.c.b16 %v3730, %v3729
        %v3764 = vpack.c.b16 %v3732, %v3731
        %v3765 = vpack.c.b16 %v3734, %v3733
        %v3766 = vpack.c.b16 %v3736, %v3735
        %v3767 = vpack.c.b16 %v3738, %v3737
        %v3768 = vpack.c.b16 %v3740, %v3739
        %v3769 = vpack.c.b16 %v3742, %v3741
        %v3770 = vpack.c.b16 %v3744, %v3743
        %v3771 = vpack.c.b16 %v3746, %v3745
        %v3772 = vpack.c.b16 %v3748, %v3747
        %3797 = vmatprep.subr.bf16.mxu0 0
        %3798 = vmatpush1.bf16.msra.mxu0 %v3749
        %3799 = vmatprep.subr.bf16.mxu0 0
        %3800 = vmatpush1.bf16.msra.mxu0 %v3750
        %3801 = vmatprep.subr.bf16.mxu0 0
        %3802 = vmatpush1.bf16.msra.mxu0 %v3751
        %3803 = vmatprep.subr.bf16.mxu0 0
        %3804 = vmatpush1.bf16.msra.mxu0 %v3752
        %3805 = vmatprep.subr.bf16.mxu0 0
        %3806 = vmatpush1.bf16.msra.mxu0 %v3753
        %3807 = vmatprep.subr.bf16.mxu0 0
        %3808 = vmatpush1.bf16.msra.mxu0 %v3754
        %3809 = vmatprep.subr.bf16.mxu0 0
        %3810 = vmatpush1.bf16.msra.mxu0 %v3755
        %3811 = vmatprep.subr.bf16.mxu0 0
        %3812 = vmatpush1.bf16.msra.mxu0 %v3756
        %3813 = vmatprep.subr.bf16.mxu0 0
        %3814 = vmatpush1.bf16.msra.mxu0 %v3757
        %3815 = vmatprep.subr.bf16.mxu0 0
        %3816 = vmatpush1.bf16.msra.mxu0 %v3758
        %3817 = vmatprep.subr.bf16.mxu0 0
        %3818 = vmatpush1.bf16.msra.mxu0 %v3759
        %3819 = vmatprep.subr.bf16.mxu0 0
        %3820 = vmatpush1.bf16.msra.mxu0 %v3760
        %3821 = vmatprep.subr.bf16.mxu0 0
        %3822 = vmatpush1.bf16.msra.mxu0 %v3761
        %3823 = vmatprep.subr.bf16.mxu0 0
        %3824 = vmatpush1.bf16.msra.mxu0 %v3762
        %3825 = vmatprep.subr.bf16.mxu0 0
        %3826 = vmatpush1.bf16.msra.mxu0 %v3763
        %3827 = vmatprep.subr.bf16.mxu0 0
        %3828 = vmatpush1.bf16.msra.mxu0 %v3764
        %3829 = vmatprep.mubr.bf16.mxu0 %v2447
        %3830 = vmatmul.mubr.bf16.gmra.mrb[0].mxu0 %v2431
        %v3831 = vpop.f32.mrb[0].mxu0
        %v3832 = vadd.f32 %v3621, %v3831
        %v3833 = vpop.f32.mrb[0].mxu0
        %v3834 = vpop.f32.mrb[0].mxu0
        %v3835 = vadd.f32 %v3622, %v3834
        %v3836 = vpop.f32.mrb[0].mxu0
        %3837 = vmatprep.mubr.bf16.mxu0 %v2448
        %3838 = vmatmul.mubr.bf16.gmra.mrb[0].mxu0 %v2432
        %v3839 = vpop.f32.mrb[0].mxu0
        %v3840 = vadd.f32 %v3623, %v3839
        %v3841 = vpop.f32.mrb[0].mxu0
        %v3842 = vpop.f32.mrb[0].mxu0
        %v3843 = vadd.f32 %v3624, %v3842
        %v3844 = vpop.f32.mrb[0].mxu0
        %3845 = vmatprep.mubr.bf16.mxu0 %v2449
        %3846 = vmatmul.mubr.bf16.gmra.mrb[0].mxu0 %v2433
        %v3847 = vpop.f32.mrb[0].mxu0
        %v3848 = vadd.f32 %v3625, %v3847
        %v3849 = vpop.f32.mrb[0].mxu0
        %v3850 = vpop.f32.mrb[0].mxu0
        %v3851 = vadd.f32 %v3626, %v3850
        %v3852 = vpop.f32.mrb[0].mxu0
        %3853 = vmatprep.mubr.bf16.mxu0 %v2450
        %3854 = vmatmul.mubr.bf16.gmra.mrb[0].mxu0 %v2434
        %v3855 = vpop.f32.mrb[0].mxu0
        %v3856 = vadd.f32 %v3627, %v3855
        %v3857 = vpop.f32.mrb[0].mxu0
        %v3858 = vpop.f32.mrb[0].mxu0
        %v3859 = vadd.f32 %v3628, %v3858
        %v3860 = vpop.f32.mrb[0].mxu0
        %3861 = vmatprep.mubr.bf16.mxu0 %v2451
        %3862 = vmatmul.mubr.bf16.gmra.mrb[0].mxu0 %v2435
        %v3863 = vpop.f32.mrb[0].mxu0
        %v3864 = vadd.f32 %v3629, %v3863
        %v3865 = vpop.f32.mrb[0].mxu0
        %v3866 = vpop.f32.mrb[0].mxu0
        %v3867 = vadd.f32 %v3630, %v3866
        %v3868 = vpop.f32.mrb[0].mxu0
        %3869 = vmatprep.mubr.bf16.mxu0 %v2452
        %3870 = vmatmul.mubr.bf16.gmra.mrb[0].mxu0 %v2436
        %v3871 = vpop.f32.mrb[0].mxu0
        %v3872 = vadd.f32 %v3631, %v3871
        %v3873 = vpop.f32.mrb[0].mxu0
        %v3874 = vpop.f32.mrb[0].mxu0
        %v3875 = vadd.f32 %v3632, %v3874
        %v3876 = vpop.f32.mrb[0].mxu0
        %3877 = vmatprep.mubr.bf16.mxu0 %v2453
        %3878 = vmatmul.mubr.bf16.gmra.mrb[0].mxu0 %v2437
        %v3879 = vpop.f32.mrb[0].mxu0
        %v3880 = vadd.f32 %v3633, %v3879
        %v3881 = vpop.f32.mrb[0].mxu0
        %v3882 = vpop.f32.mrb[0].mxu0
        %v3883 = vadd.f32 %v3634, %v3882
        %v3884 = vpop.f32.mrb[0].mxu0
        %3885 = vmatprep.mubr.bf16.mxu0 %v2454
        %3886 = vmatmul.mubr.bf16.gmra.mrb[0].mxu0 %v2438
        %v3887 = vpop.f32.mrb[0].mxu0
        %v3888 = vadd.f32 %v3635, %v3887
        %v3889 = vpop.f32.mrb[0].mxu0
        %v3890 = vpop.f32.mrb[0].mxu0
        %v3891 = vadd.f32 %v3636, %v3890
        %v3892 = vpop.f32.mrb[0].mxu0
        %3893 = vmatprep.mubr.bf16.mxu0 %v2455
        %3894 = vmatmul.mubr.bf16.gmra.mrb[0].mxu0 %v2439
        %v3895 = vpop.f32.mrb[0].mxu0
        %v3896 = vadd.f32 %v3637, %v3895
        %v3897 = vpop.f32.mrb[0].mxu0
        %v3898 = vpop.f32.mrb[0].mxu0
        %v3899 = vadd.f32 %v3638, %v3898
        %v3900 = vpop.f32.mrb[0].mxu0
        %3901 = vmatprep.mubr.bf16.mxu0 %v2456
        %3902 = vmatmul.mubr.bf16.gmra.mrb[0].mxu0 %v2440
        %v3903 = vpop.f32.mrb[0].mxu0
        %v3904 = vadd.f32 %v3639, %v3903
        %v3905 = vpop.f32.mrb[0].mxu0
        %v3906 = vpop.f32.mrb[0].mxu0
        %v3907 = vadd.f32 %v3640, %v3906
        %v3908 = vpop.f32.mrb[0].mxu0
        %3909 = vmatprep.mubr.bf16.mxu0 %v2457
        %3910 = vmatmul.mubr.bf16.gmra.mrb[0].mxu0 %v2441
        %v3911 = vpop.f32.mrb[0].mxu0
        %v3912 = vadd.f32 %v3641, %v3911
        %v3913 = vpop.f32.mrb[0].mxu0
        %v3914 = vpop.f32.mrb[0].mxu0
        %v3915 = vadd.f32 %v3642, %v3914
        %v3916 = vpop.f32.mrb[0].mxu0
        %3917 = vmatprep.mubr.bf16.mxu0 %v2458
        %3918 = vmatmul.mubr.bf16.gmra.mrb[0].mxu0 %v2442
        %v3919 = vpop.f32.mrb[0].mxu0
        %v3920 = vadd.f32 %v3643, %v3919
        %v3921 = vpop.f32.mrb[0].mxu0
        %v3922 = vpop.f32.mrb[0].mxu0
        %v3923 = vadd.f32 %v3644, %v3922
        %v3924 = vpop.f32.mrb[0].mxu0
        %3925 = vmatprep.mubr.bf16.mxu0 %v2459
        %3926 = vmatmul.mubr.bf16.gmra.mrb[0].mxu0 %v2443
        %v3927 = vpop.f32.mrb[0].mxu0
        %v3928 = vadd.f32 %v3645, %v3927
        %v3929 = vpop.f32.mrb[0].mxu0
        %v3930 = vpop.f32.mrb[0].mxu0
        %v3931 = vadd.f32 %v3646, %v3930
        %v3932 = vpop.f32.mrb[0].mxu0
        %3933 = vmatprep.mubr.bf16.mxu0 %v2460
        %3934 = vmatmul.mubr.bf16.gmra.mrb[0].mxu0 %v2444
        %v3935 = vpop.f32.mrb[0].mxu0
        %v3936 = vadd.f32 %v3647, %v3935
        %v3937 = vpop.f32.mrb[0].mxu0
        %v3938 = vpop.f32.mrb[0].mxu0
        %v3939 = vadd.f32 %v3648, %v3938
        %v3940 = vpop.f32.mrb[0].mxu0
        %3941 = vmatprep.mubr.bf16.mxu0 %v2461
        %3942 = vmatmul.mubr.bf16.gmra.mrb[0].mxu0 %v2445
        %v3943 = vpop.f32.mrb[0].mxu0
        %v3944 = vadd.f32 %v3649, %v3943
        %v3945 = vpop.f32.mrb[0].mxu0
        %v3946 = vpop.f32.mrb[0].mxu0
        %v3947 = vadd.f32 %v3650, %v3946
        %v3948 = vpop.f32.mrb[0].mxu0
        %3949 = vmatprep.mubr.bf16.mxu0 %v2462
        %3950 = vmatmul.mubr.bf16.gmra.mrb[0].mxu0 %v2446
        %v3951 = vpop.f32.mrb[0].mxu0
        %v3952 = vadd.f32 %v3651, %v3951
        %v3953 = vpop.f32.mrb[0].mxu0
        %v3954 = vpop.f32.mrb[0].mxu0
        %v3955 = vadd.f32 %v3652, %v3954
        %v3956 = vpop.f32.mrb[0].mxu0
        %3957 = vdwg.mxu0
        %3958 = vmatprep.subr.bf16.mxu0 0
        %3959 = vmatpush1.bf16.msra.mxu0 %v3765
        %3960 = vmatprep.subr.bf16.mxu0 0
        %3961 = vmatpush1.bf16.msra.mxu0 %v3766
        %3962 = vmatprep.subr.bf16.mxu0 0
        %3963 = vmatpush1.bf16.msra.mxu0 %v3767
        %3964 = vmatprep.subr.bf16.mxu0 0
        %3965 = vmatpush1.bf16.msra.mxu0 %v3768
        %3966 = vmatprep.subr.bf16.mxu0 0
        %3967 = vmatpush1.bf16.msra.mxu0 %v3769
        %3968 = vmatprep.subr.bf16.mxu0 0
        %3969 = vmatpush1.bf16.msra.mxu0 %v3770
        %3970 = vmatprep.subr.bf16.mxu0 0
        %3971 = vmatpush1.bf16.msra.mxu0 %v3771
        %3972 = vmatprep.subr.bf16.mxu0 0
        %3973 = vmatpush1.bf16.msra.mxu0 %v3772
        %3974 = vmatprep.subr.bf16.mxu0 0
        %3975 = vmatpush1.bf16.msra.mxu0 0
        %3976 = vmatprep.subr.bf16.mxu0 0
        %3977 = vmatpush1.bf16.msra.mxu0 0
        %3978 = vmatprep.subr.bf16.mxu0 0
        %3979 = vmatpush1.bf16.msra.mxu0 0
        %3980 = vmatprep.subr.bf16.mxu0 0
        %3981 = vmatpush1.bf16.msra.mxu0 0
        %3982 = vmatprep.subr.bf16.mxu0 0
        %3983 = vmatpush1.bf16.msra.mxu0 0
        %3984 = vmatprep.subr.bf16.mxu0 0
        %3985 = vmatpush1.bf16.msra.mxu0 0
        %3986 = vmatprep.subr.bf16.mxu0 0
        %3987 = vmatpush1.bf16.msra.mxu0 0
        %3988 = vmatprep.subr.bf16.mxu0 0
        %3989 = vmatpush1.bf16.msra.mxu0 0
        %3990 = vmatprep.mubr.bf16.mxu0 0
        %3991 = vmatmul.mubr.bf16.gmra.mrb[0].mxu0 %v2463
        %v3992 = vpop.f32.mrb[0].mxu0
        %v3993 = vadd.f32 %v3832, %v3992
        %v3994 = vpop.f32.mrb[0].mxu0
        %v3995 = vpop.f32.mrb[0].mxu0
        %v3996 = vadd.f32 %v3835, %v3995
        %v3997 = vpop.f32.mrb[0].mxu0
        %3998 = vmatprep.mubr.bf16.mxu0 0
        %3999 = vmatmul.mubr.bf16.gmra.mrb[0].mxu0 %v2464
        %v4000 = vpop.f32.mrb[0].mxu0
        %v4001 = vadd.f32 %v3840, %v4000
        %v4002 = vpop.f32.mrb[0].mxu0
        %v4003 = vpop.f32.mrb[0].mxu0
        %v4004 = vadd.f32 %v3843, %v4003
        %v4005 = vpop.f32.mrb[0].mxu0
        %4006 = vmatprep.mubr.bf16.mxu0 0
        %4007 = vmatmul.mubr.bf16.gmra.mrb[0].mxu0 %v2465
        %v4008 = vpop.f32.mrb[0].mxu0
        %v4009 = vadd.f32 %v3848, %v4008
        %v4010 = vpop.f32.mrb[0].mxu0
        %v4011 = vpop.f32.mrb[0].mxu0
        %v4012 = vadd.f32 %v3851, %v4011
        %v4013 = vpop.f32.mrb[0].mxu0
        %4014 = vmatprep.mubr.bf16.mxu0 0
        %4015 = vmatmul.mubr.bf16.gmra.mrb[0].mxu0 %v2466
        %v4016 = vpop.f32.mrb[0].mxu0
        %v4017 = vadd.f32 %v3856, %v4016
        %v4018 = vpop.f32.mrb[0].mxu0
        %v4019 = vpop.f32.mrb[0].mxu0
        %v4020 = vadd.f32 %v3859, %v4019
        %v4021 = vpop.f32.mrb[0].mxu0
        %4022 = vmatprep.mubr.bf16.mxu0 0
        %4023 = vmatmul.mubr.bf16.gmra.mrb[0].mxu0 %v2467
        %v4024 = vpop.f32.mrb[0].mxu0
        %v4025 = vadd.f32 %v3864, %v4024
        %v4026 = vpop.f32.mrb[0].mxu0
        %v4027 = vpop.f32.mrb[0].mxu0
        %v4028 = vadd.f32 %v3867, %v4027
        %v4029 = vpop.f32.mrb[0].mxu0
        %4030 = vmatprep.mubr.bf16.mxu0 0
        %4031 = vmatmul.mubr.bf16.gmra.mrb[0].mxu0 %v2468
        %v4032 = vpop.f32.mrb[0].mxu0
        %v4033 = vadd.f32 %v3872, %v4032
        %v4034 = vpop.f32.mrb[0].mxu0
        %v4035 = vpop.f32.mrb[0].mxu0
        %v4036 = vadd.f32 %v3875, %v4035
        %v4037 = vpop.f32.mrb[0].mxu0
        %4038 = vmatprep.mubr.bf16.mxu0 0
        %4039 = vmatmul.mubr.bf16.gmra.mrb[0].mxu0 %v2469
        %v4040 = vpop.f32.mrb[0].mxu0
        %v4041 = vadd.f32 %v3880, %v4040
        %v4042 = vpop.f32.mrb[0].mxu0
        %v4043 = vpop.f32.mrb[0].mxu0
        %v4044 = vadd.f32 %v3883, %v4043
        %v4045 = vpop.f32.mrb[0].mxu0
        %4046 = vmatprep.mubr.bf16.mxu0 0
        %4047 = vmatmul.mubr.bf16.gmra.mrb[0].mxu0 %v2470
        %v4048 = vpop.f32.mrb[0].mxu0
        %v4049 = vadd.f32 %v3888, %v4048
        %v4050 = vpop.f32.mrb[0].mxu0
        %v4051 = vpop.f32.mrb[0].mxu0
        %v4052 = vadd.f32 %v3891, %v4051
        %v4053 = vpop.f32.mrb[0].mxu0
        %4054 = vmatprep.mubr.bf16.mxu0 0
        %4055 = vmatmul.mubr.bf16.gmra.mrb[0].mxu0 %v2471
        %v4056 = vpop.f32.mrb[0].mxu0
        %v4057 = vadd.f32 %v3896, %v4056
        %v4058 = vpop.f32.mrb[0].mxu0
        %v4059 = vpop.f32.mrb[0].mxu0
        %v4060 = vadd.f32 %v3899, %v4059
        %v4061 = vpop.f32.mrb[0].mxu0
        %4062 = vmatprep.mubr.bf16.mxu0 0
        %4063 = vmatmul.mubr.bf16.gmra.mrb[0].mxu0 %v2472
        %v4064 = vpop.f32.mrb[0].mxu0
        %v4065 = vadd.f32 %v3904, %v4064
        %v4066 = vpop.f32.mrb[0].mxu0
        %v4067 = vpop.f32.mrb[0].mxu0
        %v4068 = vadd.f32 %v3907, %v4067
        %v4069 = vpop.f32.mrb[0].mxu0
        %4070 = vmatprep.mubr.bf16.mxu0 0
        %4071 = vmatmul.mubr.bf16.gmra.mrb[0].mxu0 %v2473
        %v4072 = vpop.f32.mrb[0].mxu0
        %v4073 = vadd.f32 %v3912, %v4072
        %v4074 = vpop.f32.mrb[0].mxu0
        %v4075 = vpop.f32.mrb[0].mxu0
        %v4076 = vadd.f32 %v3915, %v4075
        %v4077 = vpop.f32.mrb[0].mxu0
        %4078 = vmatprep.mubr.bf16.mxu0 0
        %4079 = vmatmul.mubr.bf16.gmra.mrb[0].mxu0 %v2474
        %v4080 = vpop.f32.mrb[0].mxu0
        %v4081 = vadd.f32 %v3920, %v4080
        %v4082 = vpop.f32.mrb[0].mxu0
        %v4083 = vpop.f32.mrb[0].mxu0
        %v4084 = vadd.f32 %v3923, %v4083
        %v4085 = vpop.f32.mrb[0].mxu0
        %4086 = vmatprep.mubr.bf16.mxu0 0
        %4087 = vmatmul.mubr.bf16.gmra.mrb[0].mxu0 %v2475
        %v4088 = vpop.f32.mrb[0].mxu0
        %v4089 = vadd.f32 %v3928, %v4088
        %v4090 = vpop.f32.mrb[0].mxu0
        %v4091 = vpop.f32.mrb[0].mxu0
        %v4092 = vadd.f32 %v3931, %v4091
        %v4093 = vpop.f32.mrb[0].mxu0
        %4094 = vmatprep.mubr.bf16.mxu0 0
        %4095 = vmatmul.mubr.bf16.gmra.mrb[0].mxu0 %v2476
        %v4096 = vpop.f32.mrb[0].mxu0
        %v4097 = vadd.f32 %v3936, %v4096
        %v4098 = vpop.f32.mrb[0].mxu0
        %v4099 = vpop.f32.mrb[0].mxu0
        %v4100 = vadd.f32 %v3939, %v4099
        %v4101 = vpop.f32.mrb[0].mxu0
        %4102 = vmatprep.mubr.bf16.mxu0 0
        %4103 = vmatmul.mubr.bf16.gmra.mrb[0].mxu0 %v2477
        %v4104 = vpop.f32.mrb[0].mxu0
        %v4105 = vadd.f32 %v3944, %v4104
        %v4106 = vpop.f32.mrb[0].mxu0
        %v4107 = vpop.f32.mrb[0].mxu0
        %v4108 = vadd.f32 %v3947, %v4107
        %v4109 = vpop.f32.mrb[0].mxu0
        %4110 = vmatprep.mubr.bf16.mxu0 0
        %4111 = vmatmul.mubr.bf16.gmra.mrb[0].mxu0 %v2478
        %v4112 = vpop.f32.mrb[0].mxu0
        %v4113 = vadd.f32 %v3952, %v4112
        %v4114 = vpop.f32.mrb[0].mxu0
        %v4115 = vpop.f32.mrb[0].mxu0
        %v4116 = vadd.f32 %v3955, %v4115
        %v4117 = vpop.f32.mrb[0].mxu0
        %4118 = vdwg.mxu0
        %v4119 = vsel %vm1558, 1, 0
        %v4120 = vsel %vm1559, 1, 0
        %v4121 = vsel %vm1560, 1, 0
        %v4122 = vsel %vm1561, 1, 0
        %v4123 = vsel %vm1562, 1, 0
        %v4124 = vsel %vm1563, 1, 0
        %v4125 = vsel %vm1564, 1, 0
        %v4126 = vsel %vm1565, 1, 0
        %v4127 = vsel %vm1566, 1, 0
        %v4128 = vsel %vm1567, 1, 0
        %v4129 = vsel %vm1568, 1, 0
        %v4130 = vsel %vm1569, 1, 0
        %v4131 = vsel %vm1570, 1, 0
        %v4132 = vsel %vm1571, 1, 0
        %v4133 = vsel %vm1572, 1, 0
        %v4134 = vsel %vm1573, 1, 0
        %v4135 = vsel %vm1574, 1, 0
        %v4136 = vsel %vm1575, 1, 0
        %v4137 = vsel %vm1576, 1, 0
        %v4138 = vsel %vm1577, 1, 0
        %v4139 = vsel %vm1578, 1, 0
        %v4140 = vsel %vm1579, 1, 0
        %v4141 = vsel %vm1580, 1, 0
        %v4142 = vsel %vm1581, 1, 0
        %v4143 = vsel %vm1582, 1, 0
        %v4144 = vsel %vm1583, 1, 0
        %v4145 = vsel %vm1584, 1, 0
        %v4146 = vsel %vm1585, 1, 0
        %v4147 = vsel %vm1586, 1, 0
        %v4148 = vsel %vm1587, 1, 0
        %v4149 = vsel %vm1588, 1, 0
        %v4150 = vsel %vm1589, 1, 0
        %vm4151 = vcmp.eq.s32.totalorder %v4119, 1
        %vm4152 = vcmp.eq.s32.totalorder %v4120, 1
        %vm4153 = vcmp.eq.s32.totalorder %v4121, 1
        %vm4154 = vcmp.eq.s32.totalorder %v4122, 1
        %vm4155 = vcmp.eq.s32.totalorder %v4123, 1
        %vm4156 = vcmp.eq.s32.totalorder %v4124, 1
        %vm4157 = vcmp.eq.s32.totalorder %v4125, 1
        %vm4158 = vcmp.eq.s32.totalorder %v4126, 1
        %vm4159 = vcmp.eq.s32.totalorder %v4127, 1
        %vm4160 = vcmp.eq.s32.totalorder %v4128, 1
        %vm4161 = vcmp.eq.s32.totalorder %v4129, 1
        %vm4162 = vcmp.eq.s32.totalorder %v4130, 1
        %vm4163 = vcmp.eq.s32.totalorder %v4131, 1
        %vm4164 = vcmp.eq.s32.totalorder %v4132, 1
        %vm4165 = vcmp.eq.s32.totalorder %v4133, 1
        %vm4166 = vcmp.eq.s32.totalorder %v4134, 1
        %vm4167 = vcmp.eq.s32.totalorder %v4135, 1
        %vm4168 = vcmp.eq.s32.totalorder %v4136, 1
        %vm4169 = vcmp.eq.s32.totalorder %v4137, 1
        %vm4170 = vcmp.eq.s32.totalorder %v4138, 1
        %vm4171 = vcmp.eq.s32.totalorder %v4139, 1
        %vm4172 = vcmp.eq.s32.totalorder %v4140, 1
        %vm4173 = vcmp.eq.s32.totalorder %v4141, 1
        %vm4174 = vcmp.eq.s32.totalorder %v4142, 1
        %vm4175 = vcmp.eq.s32.totalorder %v4143, 1
        %vm4176 = vcmp.eq.s32.totalorder %v4144, 1
        %vm4177 = vcmp.eq.s32.totalorder %v4145, 1
        %vm4178 = vcmp.eq.s32.totalorder %v4146, 1
        %vm4179 = vcmp.eq.s32.totalorder %v4147, 1
        %vm4180 = vcmp.eq.s32.totalorder %v4148, 1
        %vm4181 = vcmp.eq.s32.totalorder %v4149, 1
        %vm4182 = vcmp.eq.s32.totalorder %v4150, 1
        %v4183 = vsel %vm4151, %v3439, 0.0
        %v4184 = vsel %vm4152, %v3442, 0.0
        %v4185 = vsel %vm4153, %v3447, 0.0
        %v4186 = vsel %vm4154, %v3450, 0.0
        %v4187 = vsel %vm4155, %v3455, 0.0
        %v4188 = vsel %vm4156, %v3458, 0.0
        %v4189 = vsel %vm4157, %v3463, 0.0
        %v4190 = vsel %vm4158, %v3466, 0.0
        %v4191 = vsel %vm4159, %v3471, 0.0
        %v4192 = vsel %vm4160, %v3474, 0.0
        %v4193 = vsel %vm4161, %v3479, 0.0
        %v4194 = vsel %vm4162, %v3482, 0.0
        %v4195 = vsel %vm4163, %v3487, 0.0
        %v4196 = vsel %vm4164, %v3490, 0.0
        %v4197 = vsel %vm4165, %v3495, 0.0
        %v4198 = vsel %vm4166, %v3498, 0.0
        %v4199 = vsel %vm4167, %v3503, 0.0
        %v4200 = vsel %vm4168, %v3506, 0.0
        %v4201 = vsel %vm4169, %v3511, 0.0
        %v4202 = vsel %vm4170, %v3514, 0.0
        %v4203 = vsel %vm4171, %v3519, 0.0
        %v4204 = vsel %vm4172, %v3522, 0.0
        %v4205 = vsel %vm4173, %v3527, 0.0
        %v4206 = vsel %vm4174, %v3530, 0.0
        %v4207 = vsel %vm4175, %v3535, 0.0
        %v4208 = vsel %vm4176, %v3538, 0.0
        %v4209 = vsel %vm4177, %v3543, 0.0
        %v4210 = vsel %vm4178, %v3546, 0.0
        %v4211 = vsel %vm4179, %v3551, 0.0
        %v4212 = vsel %vm4180, %v3554, 0.0
        %v4213 = vsel %vm4181, %v3431, 0.0
        %v4214 = vsel %vm4182, %v3434, 0.0
        %v4215 = vadd.f32 %v3993, %v4183
        %v4216 = vadd.f32 %v3996, %v4184
        %v4217 = vadd.f32 %v4001, %v4185
        %v4218 = vadd.f32 %v4004, %v4186
        %v4219 = vadd.f32 %v4009, %v4187
        %v4220 = vadd.f32 %v4012, %v4188
        %v4221 = vadd.f32 %v4017, %v4189
        %v4222 = vadd.f32 %v4020, %v4190
        %v4223 = vadd.f32 %v4025, %v4191
        %v4224 = vadd.f32 %v4028, %v4192
        %v4225 = vadd.f32 %v4033, %v4193
        %v4226 = vadd.f32 %v4036, %v4194
        %v4227 = vadd.f32 %v4041, %v4195
        %v4228 = vadd.f32 %v4044, %v4196
        %v4229 = vadd.f32 %v4049, %v4197
        %v4230 = vadd.f32 %v4052, %v4198
        %v4231 = vadd.f32 %v4057, %v4199
        %v4232 = vadd.f32 %v4060, %v4200
        %v4233 = vadd.f32 %v4065, %v4201
        %v4234 = vadd.f32 %v4068, %v4202
        %v4235 = vadd.f32 %v4073, %v4203
        %v4236 = vadd.f32 %v4076, %v4204
        %v4237 = vadd.f32 %v4081, %v4205
        %v4238 = vadd.f32 %v4084, %v4206
        %v4239 = vadd.f32 %v4089, %v4207
        %v4240 = vadd.f32 %v4092, %v4208
        %v4241 = vadd.f32 %v4097, %v4209
        %v4242 = vadd.f32 %v4100, %v4210
        %v4243 = vadd.f32 %v4105, %v4211
        %v4244 = vadd.f32 %v4108, %v4212
        %v4245 = vadd.f32 %v4113, %v4213
        %v4246 = vadd.f32 %v4116, %v4214
        %v4247 = vlaneseq
        %v4248 = vshrl.u32 %v4247, 7
        %v4249 = vsub.s32 0, %v4248
        %v4250 = vrot.slane %v1591, %v4249
        %v4251 = vadd.f32 %v4215, %v4250
        %v4252 = vadd.f32 %v4216, %v4250
        %v4253 = vadd.f32 %v4217, %v4250
        %v4254 = vadd.f32 %v4218, %v4250
        %v4255 = vadd.f32 %v4219, %v4250
        %v4256 = vadd.f32 %v4220, %v4250
        %v4257 = vadd.f32 %v4221, %v4250
        %v4258 = vadd.f32 %v4222, %v4250
        %v4259 = vadd.f32 %v4223, %v4250
        %v4260 = vadd.f32 %v4224, %v4250
        %v4261 = vadd.f32 %v4225, %v4250
        %v4262 = vadd.f32 %v4226, %v4250
        %v4263 = vadd.f32 %v4227, %v4250
        %v4264 = vadd.f32 %v4228, %v4250
        %v4265 = vadd.f32 %v4229, %v4250
        %v4266 = vadd.f32 %v4230, %v4250
        %v4267 = vadd.f32 %v4231, %v4250
        %v4268 = vadd.f32 %v4232, %v4250
        %v4269 = vadd.f32 %v4233, %v4250
        %v4270 = vadd.f32 %v4234, %v4250
        %v4271 = vadd.f32 %v4235, %v4250
        %v4272 = vadd.f32 %v4236, %v4250
        %v4273 = vadd.f32 %v4237, %v4250
        %v4274 = vadd.f32 %v4238, %v4250
        %v4275 = vadd.f32 %v4239, %v4250
        %v4276 = vadd.f32 %v4240, %v4250
        %v4277 = vadd.f32 %v4241, %v4250
        %v4278 = vadd.f32 %v4242, %v4250
        %v4279 = vadd.f32 %v4243, %v4250
        %v4280 = vadd.f32 %v4244, %v4250
        %v4281 = vadd.f32 %v4245, %v4250
        %v4282 = vadd.f32 %v4246, %v4250
        %v4283 = vmin.f32 %v4251, 20.0
        %v4284 = vmin.f32 %v4252, 20.0
        %v4285 = vmin.f32 %v4253, 20.0
        %v4286 = vmin.f32 %v4254, 20.0
        %v4287 = vmin.f32 %v4255, 20.0
        %v4288 = vmin.f32 %v4256, 20.0
        %v4289 = vmin.f32 %v4257, 20.0
        %v4290 = vmin.f32 %v4258, 20.0
        %v4291 = vmin.f32 %v4259, 20.0
        %v4292 = vmin.f32 %v4260, 20.0
        %v4293 = vmin.f32 %v4261, 20.0
        %v4294 = vmin.f32 %v4262, 20.0
        %v4295 = vmin.f32 %v4263, 20.0
        %v4296 = vmin.f32 %v4264, 20.0
        %v4297 = vmin.f32 %v4265, 20.0
        %v4298 = vmin.f32 %v4266, 20.0
        %v4299 = vmin.f32 %v4267, 20.0
        %v4300 = vmin.f32 %v4268, 20.0
        %v4301 = vmin.f32 %v4269, 20.0
        %v4302 = vmin.f32 %v4270, 20.0
        %v4303 = vmin.f32 %v4271, 20.0
        %v4304 = vmin.f32 %v4272, 20.0
        %v4305 = vmin.f32 %v4273, 20.0
        %v4306 = vmin.f32 %v4274, 20.0
        %v4307 = vmin.f32 %v4275, 20.0
        %v4308 = vmin.f32 %v4276, 20.0
        %v4309 = vmin.f32 %v4277, 20.0
        %v4310 = vmin.f32 %v4278, 20.0
        %v4311 = vmin.f32 %v4279, 20.0
        %v4312 = vmin.f32 %v4280, 20.0
        %v4313 = vmin.f32 %v4281, 20.0
        %v4314 = vmin.f32 %v4282, 20.0
        %v4315 = vmul.f32 %v4283, 1.442695
        %v4316 = vpow.pop %v4315
        %v4317 = vmul.f32 %v4284, 1.442695
        %v4318 = vpow.pop %v4317
        %v4319 = vmul.f32 %v4285, 1.442695
        %v4320 = vpow.pop %v4319
        %v4321 = vmul.f32 %v4286, 1.442695
        %v4322 = vpow.pop %v4321
        %v4323 = vmul.f32 %v4287, 1.442695
        %v4324 = vpow.pop %v4323
        %v4325 = vmul.f32 %v4288, 1.442695
        %v4326 = vpow.pop %v4325
        %v4327 = vmul.f32 %v4289, 1.442695
        %v4328 = vpow.pop %v4327
        %v4329 = vmul.f32 %v4290, 1.442695
        %v4330 = vpow.pop %v4329
        %v4331 = vmul.f32 %v4291, 1.442695
        %v4332 = vpow.pop %v4331
        %v4333 = vmul.f32 %v4292, 1.442695
        %v4334 = vpow.pop %v4333
        %v4335 = vmul.f32 %v4293, 1.442695
        %v4336 = vpow.pop %v4335
        %v4337 = vmul.f32 %v4294, 1.442695
        %v4338 = vpow.pop %v4337
        %v4339 = vmul.f32 %v4295, 1.442695
        %v4340 = vpow.pop %v4339
        %v4341 = vmul.f32 %v4296, 1.442695
        %v4342 = vpow.pop %v4341
        %v4343 = vmul.f32 %v4297, 1.442695
        %v4344 = vpow.pop %v4343
        %v4345 = vmul.f32 %v4298, 1.442695
        %v4346 = vpow.pop %v4345
        %v4347 = vmul.f32 %v4299, 1.442695
        %v4348 = vpow.pop %v4347
        %v4349 = vmul.f32 %v4300, 1.442695
        %v4350 = vpow.pop %v4349
        %v4351 = vmul.f32 %v4301, 1.442695
        %v4352 = vpow.pop %v4351
        %v4353 = vmul.f32 %v4302, 1.442695
        %v4354 = vpow.pop %v4353
        %v4355 = vmul.f32 %v4303, 1.442695
        %v4356 = vpow.pop %v4355
        %v4357 = vmul.f32 %v4304, 1.442695
        %v4358 = vpow.pop %v4357
        %v4359 = vmul.f32 %v4305, 1.442695
        %v4360 = vpow.pop %v4359
        %v4361 = vmul.f32 %v4306, 1.442695
        %v4362 = vpow.pop %v4361
        %v4363 = vmul.f32 %v4307, 1.442695
        %v4364 = vpow.pop %v4363
        %v4365 = vmul.f32 %v4308, 1.442695
        %v4366 = vpow.pop %v4365
        %v4367 = vmul.f32 %v4309, 1.442695
        %v4368 = vpow.pop %v4367
        %v4369 = vmul.f32 %v4310, 1.442695
        %v4370 = vpow.pop %v4369
        %v4371 = vmul.f32 %v4311, 1.442695
        %v4372 = vpow.pop %v4371
        %v4373 = vmul.f32 %v4312, 1.442695
        %v4374 = vpow.pop %v4373
        %v4375 = vmul.f32 %v4313, 1.442695
        %v4376 = vpow.pop %v4375
        %v4377 = vmul.f32 %v4314, 1.442695
        %v4378 = vpow.pop %v4377
        %v4379 = vadd.f32 %v4316, 2.0
        %v4380 = vadd.f32 %v4318, 2.0
        %v4381 = vadd.f32 %v4320, 2.0
        %v4382 = vadd.f32 %v4322, 2.0
        %v4383 = vadd.f32 %v4324, 2.0
        %v4384 = vadd.f32 %v4326, 2.0
        %v4385 = vadd.f32 %v4328, 2.0
        %v4386 = vadd.f32 %v4330, 2.0
        %v4387 = vadd.f32 %v4332, 2.0
        %v4388 = vadd.f32 %v4334, 2.0
        %v4389 = vadd.f32 %v4336, 2.0
        %v4390 = vadd.f32 %v4338, 2.0
        %v4391 = vadd.f32 %v4340, 2.0
        %v4392 = vadd.f32 %v4342, 2.0
        %v4393 = vadd.f32 %v4344, 2.0
        %v4394 = vadd.f32 %v4346, 2.0
        %v4395 = vadd.f32 %v4348, 2.0
        %v4396 = vadd.f32 %v4350, 2.0
        %v4397 = vadd.f32 %v4352, 2.0
        %v4398 = vadd.f32 %v4354, 2.0
        %v4399 = vadd.f32 %v4356, 2.0
        %v4400 = vadd.f32 %v4358, 2.0
        %v4401 = vadd.f32 %v4360, 2.0
        %v4402 = vadd.f32 %v4362, 2.0
        %v4403 = vadd.f32 %v4364, 2.0
        %v4404 = vadd.f32 %v4366, 2.0
        %v4405 = vadd.f32 %v4368, 2.0
        %v4406 = vadd.f32 %v4370, 2.0
        %v4407 = vadd.f32 %v4372, 2.0
        %v4408 = vadd.f32 %v4374, 2.0
        %v4409 = vadd.f32 %v4376, 2.0
        %v4410 = vadd.f32 %v4378, 2.0
        %v4411 = vmul.f32 %v4316, %v4379
        %v4412 = vmul.f32 %v4318, %v4380
        %v4413 = vmul.f32 %v4320, %v4381
        %v4414 = vmul.f32 %v4322, %v4382
        %v4415 = vmul.f32 %v4324, %v4383
        %v4416 = vmul.f32 %v4326, %v4384
        %v4417 = vmul.f32 %v4328, %v4385
        %v4418 = vmul.f32 %v4330, %v4386
        %v4419 = vmul.f32 %v4332, %v4387
        %v4420 = vmul.f32 %v4334, %v4388
        %v4421 = vmul.f32 %v4336, %v4389
        %v4422 = vmul.f32 %v4338, %v4390
        %v4423 = vmul.f32 %v4340, %v4391
        %v4424 = vmul.f32 %v4342, %v4392
        %v4425 = vmul.f32 %v4344, %v4393
        %v4426 = vmul.f32 %v4346, %v4394
        %v4427 = vmul.f32 %v4348, %v4395
        %v4428 = vmul.f32 %v4350, %v4396
        %v4429 = vmul.f32 %v4352, %v4397
        %v4430 = vmul.f32 %v4354, %v4398
        %v4431 = vmul.f32 %v4356, %v4399
        %v4432 = vmul.f32 %v4358, %v4400
        %v4433 = vmul.f32 %v4360, %v4401
        %v4434 = vmul.f32 %v4362, %v4402
        %v4435 = vmul.f32 %v4364, %v4403
        %v4436 = vmul.f32 %v4366, %v4404
        %v4437 = vmul.f32 %v4368, %v4405
        %v4438 = vmul.f32 %v4370, %v4406
        %v4439 = vmul.f32 %v4372, %v4407
        %v4440 = vmul.f32 %v4374, %v4408
        %v4441 = vmul.f32 %v4376, %v4409
        %v4442 = vmul.f32 %v4378, %v4410
        %v4443 = vmul.f32 %v4251, %v4411
        %v4444 = vmul.f32 %v4252, %v4412
        %v4445 = vmul.f32 %v4253, %v4413
        %v4446 = vmul.f32 %v4254, %v4414
        %v4447 = vmul.f32 %v4255, %v4415
        %v4448 = vmul.f32 %v4256, %v4416
        %v4449 = vmul.f32 %v4257, %v4417
        %v4450 = vmul.f32 %v4258, %v4418
        %v4451 = vmul.f32 %v4259, %v4419
        %v4452 = vmul.f32 %v4260, %v4420
        %v4453 = vmul.f32 %v4261, %v4421
        %v4454 = vmul.f32 %v4262, %v4422
        %v4455 = vmul.f32 %v4263, %v4423
        %v4456 = vmul.f32 %v4264, %v4424
        %v4457 = vmul.f32 %v4265, %v4425
        %v4458 = vmul.f32 %v4266, %v4426
        %v4459 = vmul.f32 %v4267, %v4427
        %v4460 = vmul.f32 %v4268, %v4428
        %v4461 = vmul.f32 %v4269, %v4429
        %v4462 = vmul.f32 %v4270, %v4430
        %v4463 = vmul.f32 %v4271, %v4431
        %v4464 = vmul.f32 %v4272, %v4432
        %v4465 = vmul.f32 %v4273, %v4433
        %v4466 = vmul.f32 %v4274, %v4434
        %v4467 = vmul.f32 %v4275, %v4435
        %v4468 = vmul.f32 %v4276, %v4436
        %v4469 = vmul.f32 %v4277, %v4437
        %v4470 = vmul.f32 %v4278, %v4438
        %v4471 = vmul.f32 %v4279, %v4439
        %v4472 = vmul.f32 %v4280, %v4440
        %v4473 = vmul.f32 %v4281, %v4441
        %v4474 = vmul.f32 %v4282, %v4442
        %v4475 = vadd.f32 %v4411, 2.0
        %v4476 = vadd.f32 %v4412, 2.0
        %v4477 = vadd.f32 %v4413, 2.0
        %v4478 = vadd.f32 %v4414, 2.0
        %v4479 = vadd.f32 %v4415, 2.0
        %v4480 = vadd.f32 %v4416, 2.0
        %v4481 = vadd.f32 %v4417, 2.0
        %v4482 = vadd.f32 %v4418, 2.0
        %v4483 = vadd.f32 %v4419, 2.0
        %v4484 = vadd.f32 %v4420, 2.0
        %v4485 = vadd.f32 %v4421, 2.0
        %v4486 = vadd.f32 %v4422, 2.0
        %v4487 = vadd.f32 %v4423, 2.0
        %v4488 = vadd.f32 %v4424, 2.0
        %v4489 = vadd.f32 %v4425, 2.0
        %v4490 = vadd.f32 %v4426, 2.0
        %v4491 = vadd.f32 %v4427, 2.0
        %v4492 = vadd.f32 %v4428, 2.0
        %v4493 = vadd.f32 %v4429, 2.0
        %v4494 = vadd.f32 %v4430, 2.0
        %v4495 = vadd.f32 %v4431, 2.0
        %v4496 = vadd.f32 %v4432, 2.0
        %v4497 = vadd.f32 %v4433, 2.0
        %v4498 = vadd.f32 %v4434, 2.0
        %v4499 = vadd.f32 %v4435, 2.0
        %v4500 = vadd.f32 %v4436, 2.0
        %v4501 = vadd.f32 %v4437, 2.0
        %v4502 = vadd.f32 %v4438, 2.0
        %v4503 = vadd.f32 %v4439, 2.0
        %v4504 = vadd.f32 %v4440, 2.0
        %v4505 = vadd.f32 %v4441, 2.0
        %v4506 = vadd.f32 %v4442, 2.0
        %v4507 = vrcp.pop %v4475
        %v4508 = vrcp.pop %v4476
        %v4509 = vrcp.pop %v4477
        %v4510 = vrcp.pop %v4478
        %v4511 = vrcp.pop %v4479
        %v4512 = vrcp.pop %v4480
        %v4513 = vrcp.pop %v4481
        %v4514 = vrcp.pop %v4482
        %v4515 = vrcp.pop %v4483
        %v4516 = vrcp.pop %v4484
        %v4517 = vrcp.pop %v4485
        %v4518 = vrcp.pop %v4486
        %v4519 = vrcp.pop %v4487
        %v4520 = vrcp.pop %v4488
        %v4521 = vrcp.pop %v4489
        %v4522 = vrcp.pop %v4490
        %v4523 = vrcp.pop %v4491
        %v4524 = vrcp.pop %v4492
        %v4525 = vrcp.pop %v4493
        %v4526 = vrcp.pop %v4494
        %v4527 = vrcp.pop %v4495
        %v4528 = vrcp.pop %v4496
        %v4529 = vrcp.pop %v4497
        %v4530 = vrcp.pop %v4498
        %v4531 = vrcp.pop %v4499
        %v4532 = vrcp.pop %v4500
        %v4533 = vrcp.pop %v4501
        %v4534 = vrcp.pop %v4502
        %v4535 = vrcp.pop %v4503
        %v4536 = vrcp.pop %v4504
        %v4537 = vrcp.pop %v4505
        %v4538 = vrcp.pop %v4506
        %v4539 = vmul.f32 %v4443, %v4507
        %v4540 = vmul.f32 %v4444, %v4508
        %v4541 = vmul.f32 %v4445, %v4509
        %v4542 = vmul.f32 %v4446, %v4510
        %v4543 = vmul.f32 %v4447, %v4511
        %v4544 = vmul.f32 %v4448, %v4512
        %v4545 = vmul.f32 %v4449, %v4513
        %v4546 = vmul.f32 %v4450, %v4514
        %v4547 = vmul.f32 %v4451, %v4515
        %v4548 = vmul.f32 %v4452, %v4516
        %v4549 = vmul.f32 %v4453, %v4517
        %v4550 = vmul.f32 %v4454, %v4518
        %v4551 = vmul.f32 %v4455, %v4519
        %v4552 = vmul.f32 %v4456, %v4520
        %v4553 = vmul.f32 %v4457, %v4521
        %v4554 = vmul.f32 %v4458, %v4522
        %v4555 = vmul.f32 %v4459, %v4523
        %v4556 = vmul.f32 %v4460, %v4524
        %v4557 = vmul.f32 %v4461, %v4525
        %v4558 = vmul.f32 %v4462, %v4526
        %v4559 = vmul.f32 %v4463, %v4527
        %v4560 = vmul.f32 %v4464, %v4528
        %v4561 = vmul.f32 %v4465, %v4529
        %v4562 = vmul.f32 %v4466, %v4530
        %v4563 = vmul.f32 %v4467, %v4531
        %v4564 = vmul.f32 %v4468, %v4532
        %v4565 = vmul.f32 %v4469, %v4533
        %v4566 = vmul.f32 %v4470, %v4534
        %v4567 = vmul.f32 %v4471, %v4535
        %v4568 = vmul.f32 %v4472, %v4536
        %v4569 = vmul.f32 %v4473, %v4537
        %v4570 = vmul.f32 %v4474, %v4538
        %v4571 = vld [vmem:[#allocation13 + $0x1] sm:$0x1]
        %v4572 = vlaneseq
        %v4573 = vshrl.u32 %v4572, 7
        %v4574 = vsub.s32 0, %v4573
        %v4575 = vrot.slane %v4571, %v4574
        %v4576 = vmul.f32 %v4539, %v4575
        %v4577 = vmul.f32 %v4540, %v4575
        %v4578 = vmul.f32 %v4541, %v4575
        %v4579 = vmul.f32 %v4542, %v4575
        %v4580 = vmul.f32 %v4543, %v4575
        %v4581 = vmul.f32 %v4544, %v4575
        %v4582 = vmul.f32 %v4545, %v4575
        %v4583 = vmul.f32 %v4546, %v4575
        %v4584 = vmul.f32 %v4547, %v4575
        %v4585 = vmul.f32 %v4548, %v4575
        %v4586 = vmul.f32 %v4549, %v4575
        %v4587 = vmul.f32 %v4550, %v4575
        %v4588 = vmul.f32 %v4551, %v4575
        %v4589 = vmul.f32 %v4552, %v4575
        %v4590 = vmul.f32 %v4553, %v4575
        %v4591 = vmul.f32 %v4554, %v4575
        %v4592 = vmul.f32 %v4555, %v4575
        %v4593 = vmul.f32 %v4556, %v4575
        %v4594 = vmul.f32 %v4557, %v4575
        %v4595 = vmul.f32 %v4558, %v4575
        %v4596 = vmul.f32 %v4559, %v4575
        %v4597 = vmul.f32 %v4560, %v4575
        %v4598 = vmul.f32 %v4561, %v4575
        %v4599 = vmul.f32 %v4562, %v4575
        %v4600 = vmul.f32 %v4563, %v4575
        %v4601 = vmul.f32 %v4564, %v4575
        %v4602 = vmul.f32 %v4565, %v4575
        %v4603 = vmul.f32 %v4566, %v4575
        %v4604 = vmul.f32 %v4567, %v4575
        %v4605 = vmul.f32 %v4568, %v4575
        %v4606 = vmul.f32 %v4569, %v4575
        %v4607 = vmul.f32 %v4570, %v4575
        %v4608 = vld [vmem:[#allocation13 + $0x2] sm:$0x1]
        %v4609 = vlaneseq
        %v4610 = vshrl.u32 %v4609, 7
        %v4611 = vsub.s32 0, %v4610
        %v4612 = vrot.slane %v4608, %v4611
        %v4613 = vadd.f32 %v4576, %v4612
        %v4614 = vadd.f32 %v4577, %v4612
        %v4615 = vadd.f32 %v4578, %v4612
        %v4616 = vadd.f32 %v4579, %v4612
        %v4617 = vadd.f32 %v4580, %v4612
        %v4618 = vadd.f32 %v4581, %v4612
        %v4619 = vadd.f32 %v4582, %v4612
        %v4620 = vadd.f32 %v4583, %v4612
        %v4621 = vadd.f32 %v4584, %v4612
        %v4622 = vadd.f32 %v4585, %v4612
        %v4623 = vadd.f32 %v4586, %v4612
        %v4624 = vadd.f32 %v4587, %v4612
        %v4625 = vadd.f32 %v4588, %v4612
        %v4626 = vadd.f32 %v4589, %v4612
        %v4627 = vadd.f32 %v4590, %v4612
        %v4628 = vadd.f32 %v4591, %v4612
        %v4629 = vadd.f32 %v4592, %v4612
        %v4630 = vadd.f32 %v4593, %v4612
        %v4631 = vadd.f32 %v4594, %v4612
        %v4632 = vadd.f32 %v4595, %v4612
        %v4633 = vadd.f32 %v4596, %v4612
        %v4634 = vadd.f32 %v4597, %v4612
        %v4635 = vadd.f32 %v4598, %v4612
        %v4636 = vadd.f32 %v4599, %v4612
        %v4637 = vadd.f32 %v4600, %v4612
        %v4638 = vadd.f32 %v4601, %v4612
        %v4639 = vadd.f32 %v4602, %v4612
        %v4640 = vadd.f32 %v4603, %v4612
        %v4641 = vadd.f32 %v4604, %v4612
        %v4642 = vadd.f32 %v4605, %v4612
        %v4643 = vadd.f32 %v4606, %v4612
        %v4644 = vadd.f32 %v4607, %v4612
        %v4645 = vmin.f32 %v4613, 20.0
        %v4646 = vmin.f32 %v4614, 20.0
        %v4647 = vmin.f32 %v4615, 20.0
        %v4648 = vmin.f32 %v4616, 20.0
        %v4649 = vmin.f32 %v4617, 20.0
        %v4650 = vmin.f32 %v4618, 20.0
        %v4651 = vmin.f32 %v4619, 20.0
        %v4652 = vmin.f32 %v4620, 20.0
        %v4653 = vmin.f32 %v4621, 20.0
        %v4654 = vmin.f32 %v4622, 20.0
        %v4655 = vmin.f32 %v4623, 20.0
        %v4656 = vmin.f32 %v4624, 20.0
        %v4657 = vmin.f32 %v4625, 20.0
        %v4658 = vmin.f32 %v4626, 20.0
        %v4659 = vmin.f32 %v4627, 20.0
        %v4660 = vmin.f32 %v4628, 20.0
        %v4661 = vmin.f32 %v4629, 20.0
        %v4662 = vmin.f32 %v4630, 20.0
        %v4663 = vmin.f32 %v4631, 20.0
        %v4664 = vmin.f32 %v4632, 20.0
        %v4665 = vmin.f32 %v4633, 20.0
        %v4666 = vmin.f32 %v4634, 20.0
        %v4667 = vmin.f32 %v4635, 20.0
        %v4668 = vmin.f32 %v4636, 20.0
        %v4669 = vmin.f32 %v4637, 20.0
        %v4670 = vmin.f32 %v4638, 20.0
        %v4671 = vmin.f32 %v4639, 20.0
        %v4672 = vmin.f32 %v4640, 20.0
        %v4673 = vmin.f32 %v4641, 20.0
        %v4674 = vmin.f32 %v4642, 20.0
        %v4675 = vmin.f32 %v4643, 20.0
        %v4676 = vmin.f32 %v4644, 20.0
        %v4677 = vmul.f32 %v4645, 1.442695
        %v4678 = vpow.pop %v4677
        %v4679 = vmul.f32 %v4646, 1.442695
        %v4680 = vpow.pop %v4679
        %v4681 = vmul.f32 %v4647, 1.442695
        %v4682 = vpow.pop %v4681
        %v4683 = vmul.f32 %v4648, 1.442695
        %v4684 = vpow.pop %v4683
        %v4685 = vmul.f32 %v4649, 1.442695
        %v4686 = vpow.pop %v4685
        %v4687 = vmul.f32 %v4650, 1.442695
        %v4688 = vpow.pop %v4687
        %v4689 = vmul.f32 %v4651, 1.442695
        %v4690 = vpow.pop %v4689
        %v4691 = vmul.f32 %v4652, 1.442695
        %v4692 = vpow.pop %v4691
        %v4693 = vmul.f32 %v4653, 1.442695
        %v4694 = vpow.pop %v4693
        %v4695 = vmul.f32 %v4654, 1.442695
        %v4696 = vpow.pop %v4695
        %v4697 = vmul.f32 %v4655, 1.442695
        %v4698 = vpow.pop %v4697
        %v4699 = vmul.f32 %v4656, 1.442695
        %v4700 = vpow.pop %v4699
        %v4701 = vmul.f32 %v4657, 1.442695
        %v4702 = vpow.pop %v4701
        %v4703 = vmul.f32 %v4658, 1.442695
        %v4704 = vpow.pop %v4703
        %v4705 = vmul.f32 %v4659, 1.442695
        %v4706 = vpow.pop %v4705
        %v4707 = vmul.f32 %v4660, 1.442695
        %v4708 = vpow.pop %v4707
        %v4709 = vmul.f32 %v4661, 1.442695
        %v4710 = vpow.pop %v4709
        %v4711 = vmul.f32 %v4662, 1.442695
        %v4712 = vpow.pop %v4711
        %v4713 = vmul.f32 %v4663, 1.442695
        %v4714 = vpow.pop %v4713
        %v4715 = vmul.f32 %v4664, 1.442695
        %v4716 = vpow.pop %v4715
        %v4717 = vmul.f32 %v4665, 1.442695
        %v4718 = vpow.pop %v4717
        %v4719 = vmul.f32 %v4666, 1.442695
        %v4720 = vpow.pop %v4719
        %v4721 = vmul.f32 %v4667, 1.442695
        %v4722 = vpow.pop %v4721
        %v4723 = vmul.f32 %v4668, 1.442695
        %v4724 = vpow.pop %v4723
        %v4725 = vmul.f32 %v4669, 1.442695
        %v4726 = vpow.pop %v4725
        %v4727 = vmul.f32 %v4670, 1.442695
        %v4728 = vpow.pop %v4727
        %v4729 = vmul.f32 %v4671, 1.442695
        %v4730 = vpow.pop %v4729
        %v4731 = vmul.f32 %v4672, 1.442695
        %v4732 = vpow.pop %v4731
        %v4733 = vmul.f32 %v4673, 1.442695
        %v4734 = vpow.pop %v4733
        %v4735 = vmul.f32 %v4674, 1.442695
        %v4736 = vpow.pop %v4735
        %v4737 = vmul.f32 %v4675, 1.442695
        %v4738 = vpow.pop %v4737
        %v4739 = vmul.f32 %v4676, 1.442695
        %v4740 = vpow.pop %v4739
        %v4741 = vadd.f32 %v4678, 2.0
        %v4742 = vadd.f32 %v4680, 2.0
        %v4743 = vadd.f32 %v4682, 2.0
        %v4744 = vadd.f32 %v4684, 2.0
        %v4745 = vadd.f32 %v4686, 2.0
        %v4746 = vadd.f32 %v4688, 2.0
        %v4747 = vadd.f32 %v4690, 2.0
        %v4748 = vadd.f32 %v4692, 2.0
        %v4749 = vadd.f32 %v4694, 2.0
        %v4750 = vadd.f32 %v4696, 2.0
        %v4751 = vadd.f32 %v4698, 2.0
        %v4752 = vadd.f32 %v4700, 2.0
        %v4753 = vadd.f32 %v4702, 2.0
        %v4754 = vadd.f32 %v4704, 2.0
        %v4755 = vadd.f32 %v4706, 2.0
        %v4756 = vadd.f32 %v4708, 2.0
        %v4757 = vadd.f32 %v4710, 2.0
        %v4758 = vadd.f32 %v4712, 2.0
        %v4759 = vadd.f32 %v4714, 2.0
        %v4760 = vadd.f32 %v4716, 2.0
        %v4761 = vadd.f32 %v4718, 2.0
        %v4762 = vadd.f32 %v4720, 2.0
        %v4763 = vadd.f32 %v4722, 2.0
        %v4764 = vadd.f32 %v4724, 2.0
        %v4765 = vadd.f32 %v4726, 2.0
        %v4766 = vadd.f32 %v4728, 2.0
        %v4767 = vadd.f32 %v4730, 2.0
        %v4768 = vadd.f32 %v4732, 2.0
        %v4769 = vadd.f32 %v4734, 2.0
        %v4770 = vadd.f32 %v4736, 2.0
        %v4771 = vadd.f32 %v4738, 2.0
        %v4772 = vadd.f32 %v4740, 2.0
        %v4773 = vmul.f32 %v4678, %v4741
        %v4774 = vmul.f32 %v4680, %v4742
        %v4775 = vmul.f32 %v4682, %v4743
        %v4776 = vmul.f32 %v4684, %v4744
        %v4777 = vmul.f32 %v4686, %v4745
        %v4778 = vmul.f32 %v4688, %v4746
        %v4779 = vmul.f32 %v4690, %v4747
        %v4780 = vmul.f32 %v4692, %v4748
        %v4781 = vmul.f32 %v4694, %v4749
        %v4782 = vmul.f32 %v4696, %v4750
        %v4783 = vmul.f32 %v4698, %v4751
        %v4784 = vmul.f32 %v4700, %v4752
        %v4785 = vmul.f32 %v4702, %v4753
        %v4786 = vmul.f32 %v4704, %v4754
        %v4787 = vmul.f32 %v4706, %v4755
        %v4788 = vmul.f32 %v4708, %v4756
        %v4789 = vmul.f32 %v4710, %v4757
        %v4790 = vmul.f32 %v4712, %v4758
        %v4791 = vmul.f32 %v4714, %v4759
        %v4792 = vmul.f32 %v4716, %v4760
        %v4793 = vmul.f32 %v4718, %v4761
        %v4794 = vmul.f32 %v4720, %v4762
        %v4795 = vmul.f32 %v4722, %v4763
        %v4796 = vmul.f32 %v4724, %v4764
        %v4797 = vmul.f32 %v4726, %v4765
        %v4798 = vmul.f32 %v4728, %v4766
        %v4799 = vmul.f32 %v4730, %v4767
        %v4800 = vmul.f32 %v4732, %v4768
        %v4801 = vmul.f32 %v4734, %v4769
        %v4802 = vmul.f32 %v4736, %v4770
        %v4803 = vmul.f32 %v4738, %v4771
        %v4804 = vmul.f32 %v4740, %v4772
        %v4805 = vmul.f32 %v4613, %v4773
        %v4806 = vmul.f32 %v4614, %v4774
        %v4807 = vmul.f32 %v4615, %v4775
        %v4808 = vmul.f32 %v4616, %v4776
        %v4809 = vmul.f32 %v4617, %v4777
        %v4810 = vmul.f32 %v4618, %v4778
        %v4811 = vmul.f32 %v4619, %v4779
        %v4812 = vmul.f32 %v4620, %v4780
        %v4813 = vmul.f32 %v4621, %v4781
        %v4814 = vmul.f32 %v4622, %v4782
        %v4815 = vmul.f32 %v4623, %v4783
        %v4816 = vmul.f32 %v4624, %v4784
        %v4817 = vmul.f32 %v4625, %v4785
        %v4818 = vmul.f32 %v4626, %v4786
        %v4819 = vmul.f32 %v4627, %v4787
        %v4820 = vmul.f32 %v4628, %v4788
        %v4821 = vmul.f32 %v4629, %v4789
        %v4822 = vmul.f32 %v4630, %v4790
        %v4823 = vmul.f32 %v4631, %v4791
        %v4824 = vmul.f32 %v4632, %v4792
        %v4825 = vmul.f32 %v4633, %v4793
        %v4826 = vmul.f32 %v4634, %v4794
        %v4827 = vmul.f32 %v4635, %v4795
        %v4828 = vmul.f32 %v4636, %v4796
        %v4829 = vmul.f32 %v4637, %v4797
        %v4830 = vmul.f32 %v4638, %v4798
        %v4831 = vmul.f32 %v4639, %v4799
        %v4832 = vmul.f32 %v4640, %v4800
        %v4833 = vmul.f32 %v4641, %v4801
        %v4834 = vmul.f32 %v4642, %v4802
        %v4835 = vmul.f32 %v4643, %v4803
        %v4836 = vmul.f32 %v4644, %v4804
        %v4837 = vadd.f32 %v4773, 2.0
        %v4838 = vadd.f32 %v4774, 2.0
        %v4839 = vadd.f32 %v4775, 2.0
        %v4840 = vadd.f32 %v4776, 2.0
        %v4841 = vadd.f32 %v4777, 2.0
        %v4842 = vadd.f32 %v4778, 2.0
        %v4843 = vadd.f32 %v4779, 2.0
        %v4844 = vadd.f32 %v4780, 2.0
        %v4845 = vadd.f32 %v4781, 2.0
        %v4846 = vadd.f32 %v4782, 2.0
        %v4847 = vadd.f32 %v4783, 2.0
        %v4848 = vadd.f32 %v4784, 2.0
        %v4849 = vadd.f32 %v4785, 2.0
        %v4850 = vadd.f32 %v4786, 2.0
        %v4851 = vadd.f32 %v4787, 2.0
        %v4852 = vadd.f32 %v4788, 2.0
        %v4853 = vadd.f32 %v4789, 2.0
        %v4854 = vadd.f32 %v4790, 2.0
        %v4855 = vadd.f32 %v4791, 2.0
        %v4856 = vadd.f32 %v4792, 2.0
        %v4857 = vadd.f32 %v4793, 2.0
        %v4858 = vadd.f32 %v4794, 2.0
        %v4859 = vadd.f32 %v4795, 2.0
        %v4860 = vadd.f32 %v4796, 2.0
        %v4861 = vadd.f32 %v4797, 2.0
        %v4862 = vadd.f32 %v4798, 2.0
        %v4863 = vadd.f32 %v4799, 2.0
        %v4864 = vadd.f32 %v4800, 2.0
        %v4865 = vadd.f32 %v4801, 2.0
        %v4866 = vadd.f32 %v4802, 2.0
        %v4867 = vadd.f32 %v4803, 2.0
        %v4868 = vadd.f32 %v4804, 2.0
        %v4869 = vrcp.pop %v4837
        %v4870 = vrcp.pop %v4838
        %v4871 = vrcp.pop %v4839
        %v4872 = vrcp.pop %v4840
        %v4873 = vrcp.pop %v4841
        %v4874 = vrcp.pop %v4842
        %v4875 = vrcp.pop %v4843
        %v4876 = vrcp.pop %v4844
        %v4877 = vrcp.pop %v4845
        %v4878 = vrcp.pop %v4846
        %v4879 = vrcp.pop %v4847
        %v4880 = vrcp.pop %v4848
        %v4881 = vrcp.pop %v4849
        %v4882 = vrcp.pop %v4850
        %v4883 = vrcp.pop %v4851
        %v4884 = vrcp.pop %v4852
        %v4885 = vrcp.pop %v4853
        %v4886 = vrcp.pop %v4854
        %v4887 = vrcp.pop %v4855
        %v4888 = vrcp.pop %v4856
        %v4889 = vrcp.pop %v4857
        %v4890 = vrcp.pop %v4858
        %v4891 = vrcp.pop %v4859
        %v4892 = vrcp.pop %v4860
        %v4893 = vrcp.pop %v4861
        %v4894 = vrcp.pop %v4862
        %v4895 = vrcp.pop %v4863
        %v4896 = vrcp.pop %v4864
        %v4897 = vrcp.pop %v4865
        %v4898 = vrcp.pop %v4866
        %v4899 = vrcp.pop %v4867
        %v4900 = vrcp.pop %v4868
        %v4901 = vmul.f32 %v4805, %v4869
        %v4902 = vmul.f32 %v4806, %v4870
        %v4903 = vmul.f32 %v4807, %v4871
        %v4904 = vmul.f32 %v4808, %v4872
        %v4905 = vmul.f32 %v4809, %v4873
        %v4906 = vmul.f32 %v4810, %v4874
        %v4907 = vmul.f32 %v4811, %v4875
        %v4908 = vmul.f32 %v4812, %v4876
        %v4909 = vmul.f32 %v4813, %v4877
        %v4910 = vmul.f32 %v4814, %v4878
        %v4911 = vmul.f32 %v4815, %v4879
        %v4912 = vmul.f32 %v4816, %v4880
        %v4913 = vmul.f32 %v4817, %v4881
        %v4914 = vmul.f32 %v4818, %v4882
        %v4915 = vmul.f32 %v4819, %v4883
        %v4916 = vmul.f32 %v4820, %v4884
        %v4917 = vmul.f32 %v4821, %v4885
        %v4918 = vmul.f32 %v4822, %v4886
        %v4919 = vmul.f32 %v4823, %v4887
        %v4920 = vmul.f32 %v4824, %v4888
        %v4921 = vmul.f32 %v4825, %v4889
        %v4922 = vmul.f32 %v4826, %v4890
        %v4923 = vmul.f32 %v4827, %v4891
        %v4924 = vmul.f32 %v4828, %v4892
        %v4925 = vmul.f32 %v4829, %v4893
        %v4926 = vmul.f32 %v4830, %v4894
        %v4927 = vmul.f32 %v4831, %v4895
        %v4928 = vmul.f32 %v4832, %v4896
        %v4929 = vmul.f32 %v4833, %v4897
        %v4930 = vmul.f32 %v4834, %v4898
        %v4931 = vmul.f32 %v4835, %v4899
        %v4932 = vmul.f32 %v4836, %v4900
        %v4933 = vld [vmem:[#allocation10] sm:$0xf]
        %v4934 = vld [vmem:[#allocation10 + $0x4] sm:$0xf]
        %v4935 = vld [vmem:[#allocation10 + $0x8] sm:$0xf]
        %v4936 = vld [vmem:[#allocation10 + $0xc] sm:$0xf]
        %v4937 = vld [vmem:[#allocation10 + $0x10] sm:$0xf]
        %v4938 = vld [vmem:[#allocation10 + $0x14] sm:$0xf]
        %v4939 = vld [vmem:[#allocation10 + $0x18] sm:$0xf]
        %v4940 = vld [vmem:[#allocation10 + $0x1c] sm:$0xf]
        %v4941 = vld [vmem:[#allocation10 + $0x20] sm:$0xf]
        %v4942 = vld [vmem:[#allocation10 + $0x24] sm:$0xf]
        %v4943 = vld [vmem:[#allocation10 + $0x28] sm:$0xf]
        %v4944 = vld [vmem:[#allocation10 + $0x2c] sm:$0xf]
        %v4945 = vld [vmem:[#allocation10 + $0x30] sm:$0xf]
        %v4946 = vld [vmem:[#allocation10 + $0x34] sm:$0xf]
        %v4947 = vld [vmem:[#allocation10 + $0x38] sm:$0xf]
        %v4948 = vld [vmem:[#allocation10 + $0x3c] sm:$0xf]
        %v4949 = vld [vmem:[#allocation13 + $0x3] sm:$0x1]
        %v4950 = vlaneseq
        %v4951 = vshrl.u32 %v4950, 7
        %v4952 = vsub.s32 0, %v4951
        %v4953 = vrot.slane %v4949, %v4952
        %v4970 = vunpack.c.l.b16 %v4933
        %v4971 = vunpack.c.l.b16 %v4934
        %v4972 = vunpack.c.l.b16 %v4935
        %v4973 = vunpack.c.l.b16 %v4936
        %v4974 = vunpack.c.l.b16 %v4937
        %v4975 = vunpack.c.l.b16 %v4938
        %v4976 = vunpack.c.l.b16 %v4939
        %v4977 = vunpack.c.l.b16 %v4940
        %v4978 = vunpack.c.l.b16 %v4941
        %v4979 = vunpack.c.l.b16 %v4942
        %v4980 = vunpack.c.l.b16 %v4943
        %v4981 = vunpack.c.l.b16 %v4944
        %v4982 = vunpack.c.l.b16 %v4945
        %v4983 = vunpack.c.l.b16 %v4946
        %v4984 = vunpack.c.l.b16 %v4947
        %v4985 = vunpack.c.l.b16 %v4948
        %v4986 = vpack.c.b16 %v4971, %v4970
        %v4987 = vpack.c.b16 %v4973, %v4972
        %v4988 = vpack.c.b16 %v4975, %v4974
        %v4989 = vpack.c.b16 %v4977, %v4976
        %v4990 = vpack.c.b16 %v4979, %v4978
        %v4991 = vpack.c.b16 %v4981, %v4980
        %v4992 = vpack.c.b16 %v4983, %v4982
        %v4993 = vpack.c.b16 %v4985, %v4984
        %5002 = vmatprep.subr.bf16.mxu0 0
        %5003 = vmatpush1.bf16.msra.mxu0 %v4986
        %5004 = vmatprep.subr.bf16.mxu0 0
        %5005 = vmatpush1.bf16.msra.mxu0 %v4987
        %5006 = vmatprep.subr.bf16.mxu0 0
        %5007 = vmatpush1.bf16.msra.mxu0 %v4988
        %5008 = vmatprep.subr.bf16.mxu0 0
        %5009 = vmatpush1.bf16.msra.mxu0 %v4989
        %5010 = vmatprep.subr.bf16.mxu0 0
        %5011 = vmatpush1.bf16.msra.mxu0 %v4990
        %5012 = vmatprep.subr.bf16.mxu0 0
        %5013 = vmatpush1.bf16.msra.mxu0 %v4991
        %5014 = vmatprep.subr.bf16.mxu0 0
        %5015 = vmatpush1.bf16.msra.mxu0 %v4992
        %5016 = vmatprep.subr.bf16.mxu0 0
        %5017 = vmatpush1.bf16.msra.mxu0 %v4993
        %5018 = vmatprep.subr.bf16.mxu0 0
        %5019 = vmatpush1.bf16.msra.mxu0 0
        %5020 = vmatprep.subr.bf16.mxu0 0
        %5021 = vmatpush1.bf16.msra.mxu0 0
        %5022 = vmatprep.subr.bf16.mxu0 0
        %5023 = vmatpush1.bf16.msra.mxu0 0
        %5024 = vmatprep.subr.bf16.mxu0 0
        %5025 = vmatpush1.bf16.msra.mxu0 0
        %5026 = vmatprep.subr.bf16.mxu0 0
        %5027 = vmatpush1.bf16.msra.mxu0 0
        %5028 = vmatprep.subr.bf16.mxu0 0
        %5029 = vmatpush1.bf16.msra.mxu0 0
        %5030 = vmatprep.subr.bf16.mxu0 0
        %5031 = vmatpush1.bf16.msra.mxu0 0
        %5032 = vmatprep.subr.bf16.mxu0 0
        %5033 = vmatpush1.bf16.msra.mxu0 0
        %5034 = vmatprep.mubr.bf16.mxu0 0
        %5035 = vmatmul.mubr.bf16.gmra.mrb[0].mxu0 %v1029
        %v5036 = vpop.f32.mrb[0].mxu0
        %v5037 = vadd.f32 %v4953, %v5036
        %v5038 = vpop.f32.mrb[0].mxu0
        %v5039 = vpop.f32.mrb[0].mxu0
        %v5040 = vadd.f32 %v4953, %v5039
        %v5041 = vpop.f32.mrb[0].mxu0
        %5042 = vmatprep.mubr.bf16.mxu0 0
        %5043 = vmatmul.mubr.bf16.gmra.mrb[0].mxu0 %v1030
        %v5044 = vpop.f32.mrb[0].mxu0
        %v5045 = vadd.f32 %v4953, %v5044
        %v5046 = vpop.f32.mrb[0].mxu0
        %v5047 = vpop.f32.mrb[0].mxu0
        %v5048 = vadd.f32 %v4953, %v5047
        %v5049 = vpop.f32.mrb[0].mxu0
        %5050 = vmatprep.mubr.bf16.mxu0 0
        %5051 = vmatmul.mubr.bf16.gmra.mrb[0].mxu0 %v1031
        %v5052 = vpop.f32.mrb[0].mxu0
        %v5053 = vadd.f32 %v4953, %v5052
        %v5054 = vpop.f32.mrb[0].mxu0
        %v5055 = vpop.f32.mrb[0].mxu0
        %v5056 = vadd.f32 %v4953, %v5055
        %v5057 = vpop.f32.mrb[0].mxu0
        %5058 = vmatprep.mubr.bf16.mxu0 0
        %5059 = vmatmul.mubr.bf16.gmra.mrb[0].mxu0 %v1032
        %v5060 = vpop.f32.mrb[0].mxu0
        %v5061 = vadd.f32 %v4953, %v5060
        %v5062 = vpop.f32.mrb[0].mxu0
        %v5063 = vpop.f32.mrb[0].mxu0
        %v5064 = vadd.f32 %v4953, %v5063
        %v5065 = vpop.f32.mrb[0].mxu0
        %5066 = vmatprep.mubr.bf16.mxu0 0
        %5067 = vmatmul.mubr.bf16.gmra.mrb[0].mxu0 %v1033
        %v5068 = vpop.f32.mrb[0].mxu0
        %v5069 = vadd.f32 %v4953, %v5068
        %v5070 = vpop.f32.mrb[0].mxu0
        %v5071 = vpop.f32.mrb[0].mxu0
        %v5072 = vadd.f32 %v4953, %v5071
        %v5073 = vpop.f32.mrb[0].mxu0
        %5074 = vmatprep.mubr.bf16.mxu0 0
        %5075 = vmatmul.mubr.bf16.gmra.mrb[0].mxu0 %v1034
        %v5076 = vpop.f32.mrb[0].mxu0
        %v5077 = vadd.f32 %v4953, %v5076
        %v5078 = vpop.f32.mrb[0].mxu0
        %v5079 = vpop.f32.mrb[0].mxu0
        %v5080 = vadd.f32 %v4953, %v5079
        %v5081 = vpop.f32.mrb[0].mxu0
        %5082 = vmatprep.mubr.bf16.mxu0 0
        %5083 = vmatmul.mubr.bf16.gmra.mrb[0].mxu0 %v1035
        %v5084 = vpop.f32.mrb[0].mxu0
        %v5085 = vadd.f32 %v4953, %v5084
        %v5086 = vpop.f32.mrb[0].mxu0
        %v5087 = vpop.f32.mrb[0].mxu0
        %v5088 = vadd.f32 %v4953, %v5087
        %v5089 = vpop.f32.mrb[0].mxu0
        %5090 = vmatprep.mubr.bf16.mxu0 0
        %5091 = vmatmul.mubr.bf16.gmra.mrb[0].mxu0 %v1036
        %v5092 = vpop.f32.mrb[0].mxu0
        %v5093 = vadd.f32 %v4953, %v5092
        %v5094 = vpop.f32.mrb[0].mxu0
        %v5095 = vpop.f32.mrb[0].mxu0
        %v5096 = vadd.f32 %v4953, %v5095
        %v5097 = vpop.f32.mrb[0].mxu0
        %5098 = vmatprep.mubr.bf16.mxu0 0
        %5099 = vmatmul.mubr.bf16.gmra.mrb[0].mxu0 %v1037
        %v5100 = vpop.f32.mrb[0].mxu0
        %v5101 = vadd.f32 %v4953, %v5100
        %v5102 = vpop.f32.mrb[0].mxu0
        %v5103 = vpop.f32.mrb[0].mxu0
        %v5104 = vadd.f32 %v4953, %v5103
        %v5105 = vpop.f32.mrb[0].mxu0
        %5106 = vmatprep.mubr.bf16.mxu0 0
        %5107 = vmatmul.mubr.bf16.gmra.mrb[0].mxu0 %v1038
        %v5108 = vpop.f32.mrb[0].mxu0
        %v5109 = vadd.f32 %v4953, %v5108
        %v5110 = vpop.f32.mrb[0].mxu0
        %v5111 = vpop.f32.mrb[0].mxu0
        %v5112 = vadd.f32 %v4953, %v5111
        %v5113 = vpop.f32.mrb[0].mxu0
        %5114 = vmatprep.mubr.bf16.mxu0 0
        %5115 = vmatmul.mubr.bf16.gmra.mrb[0].mxu0 %v1039
        %v5116 = vpop.f32.mrb[0].mxu0
        %v5117 = vadd.f32 %v4953, %v5116
        %v5118 = vpop.f32.mrb[0].mxu0
        %v5119 = vpop.f32.mrb[0].mxu0
        %v5120 = vadd.f32 %v4953, %v5119
        %v5121 = vpop.f32.mrb[0].mxu0
        %5122 = vmatprep.mubr.bf16.mxu0 0
        %5123 = vmatmul.mubr.bf16.gmra.mrb[0].mxu0 %v1040
        %v5124 = vpop.f32.mrb[0].mxu0
        %v5125 = vadd.f32 %v4953, %v5124
        %v5126 = vpop.f32.mrb[0].mxu0
        %v5127 = vpop.f32.mrb[0].mxu0
        %v5128 = vadd.f32 %v4953, %v5127
        %v5129 = vpop.f32.mrb[0].mxu0
        %5130 = vmatprep.mubr.bf16.mxu0 0
        %5131 = vmatmul.mubr.bf16.gmra.mrb[0].mxu0 %v1041
        %v5132 = vpop.f32.mrb[0].mxu0
        %v5133 = vadd.f32 %v4953, %v5132
        %v5134 = vpop.f32.mrb[0].mxu0
        %v5135 = vpop.f32.mrb[0].mxu0
        %v5136 = vadd.f32 %v4953, %v5135
        %v5137 = vpop.f32.mrb[0].mxu0
        %5138 = vmatprep.mubr.bf16.mxu0 0
        %5139 = vmatmul.mubr.bf16.gmra.mrb[0].mxu0 %v1042
        %v5140 = vpop.f32.mrb[0].mxu0
        %v5141 = vadd.f32 %v4953, %v5140
        %v5142 = vpop.f32.mrb[0].mxu0
        %v5143 = vpop.f32.mrb[0].mxu0
        %v5144 = vadd.f32 %v4953, %v5143
        %v5145 = vpop.f32.mrb[0].mxu0
        %5146 = vmatprep.mubr.bf16.mxu0 0
        %5147 = vmatmul.mubr.bf16.gmra.mrb[0].mxu0 %v1043
        %v5148 = vpop.f32.mrb[0].mxu0
        %v5149 = vadd.f32 %v4953, %v5148
        %v5150 = vpop.f32.mrb[0].mxu0
        %v5151 = vpop.f32.mrb[0].mxu0
        %v5152 = vadd.f32 %v4953, %v5151
        %v5153 = vpop.f32.mrb[0].mxu0
        %5154 = vmatprep.mubr.bf16.mxu0 0
        %5155 = vmatmul.mubr.bf16.gmra.mrb[0].mxu0 %v1044
        %v5156 = vpop.f32.mrb[0].mxu0
        %v5157 = vadd.f32 %v4953, %v5156
        %v5158 = vpop.f32.mrb[0].mxu0
        %v5159 = vpop.f32.mrb[0].mxu0
        %v5160 = vadd.f32 %v4953, %v5159
        %v5161 = vpop.f32.mrb[0].mxu0
        %5162 = vdwg.mxu0
        %v5163 = vmin.f32 %v5037, 20.0
        %v5164 = vmin.f32 %v5040, 20.0
        %v5165 = vmin.f32 %v5045, 20.0
        %v5166 = vmin.f32 %v5048, 20.0
        %v5167 = vmin.f32 %v5053, 20.0
        %v5168 = vmin.f32 %v5056, 20.0
        %v5169 = vmin.f32 %v5061, 20.0
        %v5170 = vmin.f32 %v5064, 20.0
        %v5171 = vmin.f32 %v5069, 20.0
        %v5172 = vmin.f32 %v5072, 20.0
        %v5173 = vmin.f32 %v5077, 20.0
        %v5174 = vmin.f32 %v5080, 20.0
        %v5175 = vmin.f32 %v5085, 20.0
        %v5176 = vmin.f32 %v5088, 20.0
        %v5177 = vmin.f32 %v5093, 20.0
        %v5178 = vmin.f32 %v5096, 20.0
        %v5179 = vmin.f32 %v5101, 20.0
        %v5180 = vmin.f32 %v5104, 20.0
        %v5181 = vmin.f32 %v5109, 20.0
        %v5182 = vmin.f32 %v5112, 20.0
        %v5183 = vmin.f32 %v5117, 20.0
        %v5184 = vmin.f32 %v5120, 20.0
        %v5185 = vmin.f32 %v5125, 20.0
        %v5186 = vmin.f32 %v5128, 20.0
        %v5187 = vmin.f32 %v5133, 20.0
        %v5188 = vmin.f32 %v5136, 20.0
        %v5189 = vmin.f32 %v5141, 20.0
        %v5190 = vmin.f32 %v5144, 20.0
        %v5191 = vmin.f32 %v5149, 20.0
        %v5192 = vmin.f32 %v5152, 20.0
        %v5193 = vmin.f32 %v5157, 20.0
        %v5194 = vmin.f32 %v5160, 20.0
        %v5195 = vmul.f32 %v5163, 1.442695
        %v5196 = vpow.pop %v5195
        %v5197 = vmul.f32 %v5164, 1.442695
        %v5198 = vpow.pop %v5197
        %v5199 = vmul.f32 %v5165, 1.442695
        %v5200 = vpow.pop %v5199
        %v5201 = vmul.f32 %v5166, 1.442695
        %v5202 = vpow.pop %v5201
        %v5203 = vmul.f32 %v5167, 1.442695
        %v5204 = vpow.pop %v5203
        %v5205 = vmul.f32 %v5168, 1.442695
        %v5206 = vpow.pop %v5205
        %v5207 = vmul.f32 %v5169, 1.442695
        %v5208 = vpow.pop %v5207
        %v5209 = vmul.f32 %v5170, 1.442695
        %v5210 = vpow.pop %v5209
        %v5211 = vmul.f32 %v5171, 1.442695
        %v5212 = vpow.pop %v5211
        %v5213 = vmul.f32 %v5172, 1.442695
        %v5214 = vpow.pop %v5213
        %v5215 = vmul.f32 %v5173, 1.442695
        %v5216 = vpow.pop %v5215
        %v5217 = vmul.f32 %v5174, 1.442695
        %v5218 = vpow.pop %v5217
        %v5219 = vmul.f32 %v5175, 1.442695
        %v5220 = vpow.pop %v5219
        %v5221 = vmul.f32 %v5176, 1.442695
        %v5222 = vpow.pop %v5221
        %v5223 = vmul.f32 %v5177, 1.442695
        %v5224 = vpow.pop %v5223
        %v5225 = vmul.f32 %v5178, 1.442695
        %v5226 = vpow.pop %v5225
        %v5227 = vmul.f32 %v5179, 1.442695
        %v5228 = vpow.pop %v5227
        %v5229 = vmul.f32 %v5180, 1.442695
        %v5230 = vpow.pop %v5229
        %v5231 = vmul.f32 %v5181, 1.442695
        %v5232 = vpow.pop %v5231
        %v5233 = vmul.f32 %v5182, 1.442695
        %v5234 = vpow.pop %v5233
        %v5235 = vmul.f32 %v5183, 1.442695
        %v5236 = vpow.pop %v5235
        %v5237 = vmul.f32 %v5184, 1.442695
        %v5238 = vpow.pop %v5237
        %v5239 = vmul.f32 %v5185, 1.442695
        %v5240 = vpow.pop %v5239
        %v5241 = vmul.f32 %v5186, 1.442695
        %v5242 = vpow.pop %v5241
        %v5243 = vmul.f32 %v5187, 1.442695
        %v5244 = vpow.pop %v5243
        %v5245 = vmul.f32 %v5188, 1.442695
        %v5246 = vpow.pop %v5245
        %v5247 = vmul.f32 %v5189, 1.442695
        %v5248 = vpow.pop %v5247
        %v5249 = vmul.f32 %v5190, 1.442695
        %v5250 = vpow.pop %v5249
        %v5251 = vmul.f32 %v5191, 1.442695
        %v5252 = vpow.pop %v5251
        %v5253 = vmul.f32 %v5192, 1.442695
        %v5254 = vpow.pop %v5253
        %v5255 = vmul.f32 %v5193, 1.442695
        %v5256 = vpow.pop %v5255
        %v5257 = vmul.f32 %v5194, 1.442695
        %v5258 = vpow.pop %v5257
        %v5259 = vadd.f32 %v5196, 2.0
        %v5260 = vadd.f32 %v5198, 2.0
        %v5261 = vadd.f32 %v5200, 2.0
        %v5262 = vadd.f32 %v5202, 2.0
        %v5263 = vadd.f32 %v5204, 2.0
        %v5264 = vadd.f32 %v5206, 2.0
        %v5265 = vadd.f32 %v5208, 2.0
        %v5266 = vadd.f32 %v5210, 2.0
        %v5267 = vadd.f32 %v5212, 2.0
        %v5268 = vadd.f32 %v5214, 2.0
        %v5269 = vadd.f32 %v5216, 2.0
        %v5270 = vadd.f32 %v5218, 2.0
        %v5271 = vadd.f32 %v5220, 2.0
        %v5272 = vadd.f32 %v5222, 2.0
        %v5273 = vadd.f32 %v5224, 2.0
        %v5274 = vadd.f32 %v5226, 2.0
        %v5275 = vadd.f32 %v5228, 2.0
        %v5276 = vadd.f32 %v5230, 2.0
        %v5277 = vadd.f32 %v5232, 2.0
        %v5278 = vadd.f32 %v5234, 2.0
        %v5279 = vadd.f32 %v5236, 2.0
        %v5280 = vadd.f32 %v5238, 2.0
        %v5281 = vadd.f32 %v5240, 2.0
        %v5282 = vadd.f32 %v5242, 2.0
        %v5283 = vadd.f32 %v5244, 2.0
        %v5284 = vadd.f32 %v5246, 2.0
        %v5285 = vadd.f32 %v5248, 2.0
        %v5286 = vadd.f32 %v5250, 2.0
        %v5287 = vadd.f32 %v5252, 2.0
        %v5288 = vadd.f32 %v5254, 2.0
        %v5289 = vadd.f32 %v5256, 2.0
        %v5290 = vadd.f32 %v5258, 2.0
        %v5291 = vmul.f32 %v5196, %v5259
        %v5292 = vmul.f32 %v5198, %v5260
        %v5293 = vmul.f32 %v5200, %v5261
        %v5294 = vmul.f32 %v5202, %v5262
        %v5295 = vmul.f32 %v5204, %v5263
        %v5296 = vmul.f32 %v5206, %v5264
        %v5297 = vmul.f32 %v5208, %v5265
        %v5298 = vmul.f32 %v5210, %v5266
        %v5299 = vmul.f32 %v5212, %v5267
        %v5300 = vmul.f32 %v5214, %v5268
        %v5301 = vmul.f32 %v5216, %v5269
        %v5302 = vmul.f32 %v5218, %v5270
        %v5303 = vmul.f32 %v5220, %v5271
        %v5304 = vmul.f32 %v5222, %v5272
        %v5305 = vmul.f32 %v5224, %v5273
        %v5306 = vmul.f32 %v5226, %v5274
        %v5307 = vmul.f32 %v5228, %v5275
        %v5308 = vmul.f32 %v5230, %v5276
        %v5309 = vmul.f32 %v5232, %v5277
        %v5310 = vmul.f32 %v5234, %v5278
        %v5311 = vmul.f32 %v5236, %v5279
        %v5312 = vmul.f32 %v5238, %v5280
        %v5313 = vmul.f32 %v5240, %v5281
        %v5314 = vmul.f32 %v5242, %v5282
        %v5315 = vmul.f32 %v5244, %v5283
        %v5316 = vmul.f32 %v5246, %v5284
        %v5317 = vmul.f32 %v5248, %v5285
        %v5318 = vmul.f32 %v5250, %v5286
        %v5319 = vmul.f32 %v5252, %v5287
        %v5320 = vmul.f32 %v5254, %v5288
        %v5321 = vmul.f32 %v5256, %v5289
        %v5322 = vmul.f32 %v5258, %v5290
        %v5323 = vmul.f32 %v5037, %v5291
        %v5324 = vmul.f32 %v5040, %v5292
        %v5325 = vmul.f32 %v5045, %v5293
        %v5326 = vmul.f32 %v5048, %v5294
        %v5327 = vmul.f32 %v5053, %v5295
        %v5328 = vmul.f32 %v5056, %v5296
        %v5329 = vmul.f32 %v5061, %v5297
        %v5330 = vmul.f32 %v5064, %v5298
        %v5331 = vmul.f32 %v5069, %v5299
        %v5332 = vmul.f32 %v5072, %v5300
        %v5333 = vmul.f32 %v5077, %v5301
        %v5334 = vmul.f32 %v5080, %v5302
        %v5335 = vmul.f32 %v5085, %v5303
        %v5336 = vmul.f32 %v5088, %v5304
        %v5337 = vmul.f32 %v5093, %v5305
        %v5338 = vmul.f32 %v5096, %v5306
        %v5339 = vmul.f32 %v5101, %v5307
        %v5340 = vmul.f32 %v5104, %v5308
        %v5341 = vmul.f32 %v5109, %v5309
        %v5342 = vmul.f32 %v5112, %v5310
        %v5343 = vmul.f32 %v5117, %v5311
        %v5344 = vmul.f32 %v5120, %v5312
        %v5345 = vmul.f32 %v5125, %v5313
        %v5346 = vmul.f32 %v5128, %v5314
        %v5347 = vmul.f32 %v5133, %v5315
        %v5348 = vmul.f32 %v5136, %v5316
        %v5349 = vmul.f32 %v5141, %v5317
        %v5350 = vmul.f32 %v5144, %v5318
        %v5351 = vmul.f32 %v5149, %v5319
        %v5352 = vmul.f32 %v5152, %v5320
        %v5353 = vmul.f32 %v5157, %v5321
        %v5354 = vmul.f32 %v5160, %v5322
        %v5355 = vadd.f32 %v5291, 2.0
        %v5356 = vadd.f32 %v5292, 2.0
        %v5357 = vadd.f32 %v5293, 2.0
        %v5358 = vadd.f32 %v5294, 2.0
        %v5359 = vadd.f32 %v5295, 2.0
        %v5360 = vadd.f32 %v5296, 2.0
        %v5361 = vadd.f32 %v5297, 2.0
        %v5362 = vadd.f32 %v5298, 2.0
        %v5363 = vadd.f32 %v5299, 2.0
        %v5364 = vadd.f32 %v5300, 2.0
        %v5365 = vadd.f32 %v5301, 2.0
        %v5366 = vadd.f32 %v5302, 2.0
        %v5367 = vadd.f32 %v5303, 2.0
        %v5368 = vadd.f32 %v5304, 2.0
        %v5369 = vadd.f32 %v5305, 2.0
        %v5370 = vadd.f32 %v5306, 2.0
        %v5371 = vadd.f32 %v5307, 2.0
        %v5372 = vadd.f32 %v5308, 2.0
        %v5373 = vadd.f32 %v5309, 2.0
        %v5374 = vadd.f32 %v5310, 2.0
        %v5375 = vadd.f32 %v5311, 2.0
        %v5376 = vadd.f32 %v5312, 2.0
        %v5377 = vadd.f32 %v5313, 2.0
        %v5378 = vadd.f32 %v5314, 2.0
        %v5379 = vadd.f32 %v5315, 2.0
        %v5380 = vadd.f32 %v5316, 2.0
        %v5381 = vadd.f32 %v5317, 2.0
        %v5382 = vadd.f32 %v5318, 2.0
        %v5383 = vadd.f32 %v5319, 2.0
        %v5384 = vadd.f32 %v5320, 2.0
        %v5385 = vadd.f32 %v5321, 2.0
        %v5386 = vadd.f32 %v5322, 2.0
        %v5387 = vrcp.pop %v5355
        %v5388 = vrcp.pop %v5356
        %v5389 = vrcp.pop %v5357
        %v5390 = vrcp.pop %v5358
        %v5391 = vrcp.pop %v5359
        %v5392 = vrcp.pop %v5360
        %v5393 = vrcp.pop %v5361
        %v5394 = vrcp.pop %v5362
        %v5395 = vrcp.pop %v5363
        %v5396 = vrcp.pop %v5364
        %v5397 = vrcp.pop %v5365
        %v5398 = vrcp.pop %v5366
        %v5399 = vrcp.pop %v5367
        %v5400 = vrcp.pop %v5368
        %v5401 = vrcp.pop %v5369
        %v5402 = vrcp.pop %v5370
        %v5403 = vrcp.pop %v5371
        %v5404 = vrcp.pop %v5372
        %v5405 = vrcp.pop %v5373
        %v5406 = vrcp.pop %v5374
        %v5407 = vrcp.pop %v5375
        %v5408 = vrcp.pop %v5376
        %v5409 = vrcp.pop %v5377
        %v5410 = vrcp.pop %v5378
        %v5411 = vrcp.pop %v5379
        %v5412 = vrcp.pop %v5380
        %v5413 = vrcp.pop %v5381
        %v5414 = vrcp.pop %v5382
        %v5415 = vrcp.pop %v5383
        %v5416 = vrcp.pop %v5384
        %v5417 = vrcp.pop %v5385
        %v5418 = vrcp.pop %v5386
        %v5419 = vmul.f32 %v5323, %v5387
        %v5420 = vmul.f32 %v5324, %v5388
        %v5421 = vmul.f32 %v5325, %v5389
        %v5422 = vmul.f32 %v5326, %v5390
        %v5423 = vmul.f32 %v5327, %v5391
        %v5424 = vmul.f32 %v5328, %v5392
        %v5425 = vmul.f32 %v5329, %v5393
        %v5426 = vmul.f32 %v5330, %v5394
        %v5427 = vmul.f32 %v5331, %v5395
        %v5428 = vmul.f32 %v5332, %v5396
        %v5429 = vmul.f32 %v5333, %v5397
        %v5430 = vmul.f32 %v5334, %v5398
        %v5431 = vmul.f32 %v5335, %v5399
        %v5432 = vmul.f32 %v5336, %v5400
        %v5433 = vmul.f32 %v5337, %v5401
        %v5434 = vmul.f32 %v5338, %v5402
        %v5435 = vmul.f32 %v5339, %v5403
        %v5436 = vmul.f32 %v5340, %v5404
        %v5437 = vmul.f32 %v5341, %v5405
        %v5438 = vmul.f32 %v5342, %v5406
        %v5439 = vmul.f32 %v5343, %v5407
        %v5440 = vmul.f32 %v5344, %v5408
        %v5441 = vmul.f32 %v5345, %v5409
        %v5442 = vmul.f32 %v5346, %v5410
        %v5443 = vmul.f32 %v5347, %v5411
        %v5444 = vmul.f32 %v5348, %v5412
        %v5445 = vmul.f32 %v5349, %v5413
        %v5446 = vmul.f32 %v5350, %v5414
        %v5447 = vmul.f32 %v5351, %v5415
        %v5448 = vmul.f32 %v5352, %v5416
        %v5449 = vmul.f32 %v5353, %v5417
        %v5450 = vmul.f32 %v5354, %v5418
        %v5451 = vpack.c.bf16 %v4902, %v4901
        %v5452 = vpack.c.bf16 %v4904, %v4903
        %v5453 = vpack.c.bf16 %v4906, %v4905
        %v5454 = vpack.c.bf16 %v4908, %v4907
        %v5455 = vpack.c.bf16 %v4910, %v4909
        %v5456 = vpack.c.bf16 %v4912, %v4911
        %v5457 = vpack.c.bf16 %v4914, %v4913
        %v5458 = vpack.c.bf16 %v4916, %v4915
        %v5459 = vpack.c.bf16 %v4918, %v4917
        %v5460 = vpack.c.bf16 %v4920, %v4919
        %v5461 = vpack.c.bf16 %v4922, %v4921
        %v5462 = vpack.c.bf16 %v4924, %v4923
        %v5463 = vpack.c.bf16 %v4926, %v4925
        %v5464 = vpack.c.bf16 %v4928, %v4927
        %v5465 = vpack.c.bf16 %v4930, %v4929
        %v5466 = vpack.c.bf16 %v4932, %v4931
        %v5467 = vpack.c.bf16 %v5420, %v5419
        %v5468 = vpack.c.bf16 %v5422, %v5421
        %v5469 = vpack.c.bf16 %v5424, %v5423
        %v5470 = vpack.c.bf16 %v5426, %v5425
        %v5471 = vpack.c.bf16 %v5428, %v5427
        %v5472 = vpack.c.bf16 %v5430, %v5429
        %v5473 = vpack.c.bf16 %v5432, %v5431
        %v5474 = vpack.c.bf16 %v5434, %v5433
        %v5475 = vpack.c.bf16 %v5436, %v5435
        %v5476 = vpack.c.bf16 %v5438, %v5437
        %v5477 = vpack.c.bf16 %v5440, %v5439
        %v5478 = vpack.c.bf16 %v5442, %v5441
        %v5479 = vpack.c.bf16 %v5444, %v5443
        %v5480 = vpack.c.bf16 %v5446, %v5445
        %v5481 = vpack.c.bf16 %v5448, %v5447
        %v5482 = vpack.c.bf16 %v5450, %v5449
        %v5483 = vld [vmem:[#allocation11] sm:$0xf]
        %v5484 = vld [vmem:[#allocation11 + $0x4] sm:$0xf]
        %v5485 = vld [vmem:[#allocation11 + $0x8] sm:$0xf]
        %v5486 = vld [vmem:[#allocation11 + $0xc] sm:$0xf]
        %v5487 = vld [vmem:[#allocation11 + $0x10] sm:$0xf]
        %v5488 = vld [vmem:[#allocation11 + $0x14] sm:$0xf]
        %v5489 = vld [vmem:[#allocation11 + $0x18] sm:$0xf]
        %v5490 = vld [vmem:[#allocation11 + $0x1c] sm:$0xf]
        %v5491 = vld [vmem:[#allocation11 + $0x20] sm:$0xf]
        %v5492 = vld [vmem:[#allocation11 + $0x24] sm:$0xf]
        %v5493 = vld [vmem:[#allocation11 + $0x28] sm:$0xf]
        %v5494 = vld [vmem:[#allocation11 + $0x2c] sm:$0xf]
        %v5495 = vld [vmem:[#allocation11 + $0x30] sm:$0xf]
        %v5496 = vld [vmem:[#allocation11 + $0x34] sm:$0xf]
        %v5497 = vld [vmem:[#allocation11 + $0x38] sm:$0xf]
        %v5498 = vld [vmem:[#allocation11 + $0x3c] sm:$0xf]
        %v5499 = vld [vmem:[#allocation11 + $0x40] sm:$0xf]
        %v5500 = vld [vmem:[#allocation11 + $0x44] sm:$0xf]
        %v5501 = vld [vmem:[#allocation11 + $0x48] sm:$0xf]
        %v5502 = vld [vmem:[#allocation11 + $0x4c] sm:$0xf]
        %v5503 = vld [vmem:[#allocation11 + $0x50] sm:$0xf]
        %v5504 = vld [vmem:[#allocation11 + $0x54] sm:$0xf]
        %v5505 = vld [vmem:[#allocation11 + $0x58] sm:$0xf]
        %v5506 = vld [vmem:[#allocation11 + $0x5c] sm:$0xf]
        %v5507 = vld [vmem:[#allocation11 + $0x60] sm:$0xf]
        %v5508 = vld [vmem:[#allocation11 + $0x64] sm:$0xf]
        %v5509 = vld [vmem:[#allocation11 + $0x68] sm:$0xf]
        %v5510 = vld [vmem:[#allocation11 + $0x6c] sm:$0xf]
        %v5511 = vld [vmem:[#allocation11 + $0x70] sm:$0xf]
        %v5512 = vld [vmem:[#allocation11 + $0x74] sm:$0xf]
        %v5513 = vld [vmem:[#allocation11 + $0x78] sm:$0xf]
        %v5514 = vld [vmem:[#allocation11 + $0x7c] sm:$0xf]
        %v5515 = vld [vmem:[#allocation13 + $0x4] sm:$0x1]
        %v5516 = vlaneseq
        %v5517 = vshrl.u32 %v5516, 7
        %v5518 = vsub.s32 0, %v5517
        %v5519 = vrot.slane %v5515, %v5518
        %v5552 = vunpack.c.l.b16 %v5483
        %v5553 = vunpack.c.l.b16 %v5484
        %v5554 = vunpack.c.l.b16 %v5485
        %v5555 = vunpack.c.l.b16 %v5486
        %v5556 = vunpack.c.l.b16 %v5487
        %v5557 = vunpack.c.l.b16 %v5488
        %v5558 = vunpack.c.l.b16 %v5489
        %v5559 = vunpack.c.l.b16 %v5490
        %v5560 = vunpack.c.l.b16 %v5491
        %v5561 = vunpack.c.l.b16 %v5492
        %v5562 = vunpack.c.l.b16 %v5493
        %v5563 = vunpack.c.l.b16 %v5494
        %v5564 = vunpack.c.l.b16 %v5495
        %v5565 = vunpack.c.l.b16 %v5496
        %v5566 = vunpack.c.l.b16 %v5497
        %v5567 = vunpack.c.l.b16 %v5498
        %v5568 = vunpack.c.l.b16 %v5499
        %v5569 = vunpack.c.l.b16 %v5500
        %v5570 = vunpack.c.l.b16 %v5501
        %v5571 = vunpack.c.l.b16 %v5502
        %v5572 = vunpack.c.l.b16 %v5503
        %v5573 = vunpack.c.l.b16 %v5504
        %v5574 = vunpack.c.l.b16 %v5505
        %v5575 = vunpack.c.l.b16 %v5506
        %v5576 = vunpack.c.l.b16 %v5507
        %v5577 = vunpack.c.l.b16 %v5508
        %v5578 = vunpack.c.l.b16 %v5509
        %v5579 = vunpack.c.l.b16 %v5510
        %v5580 = vunpack.c.l.b16 %v5511
        %v5581 = vunpack.c.l.b16 %v5512
        %v5582 = vunpack.c.l.b16 %v5513
        %v5583 = vunpack.c.l.b16 %v5514
        %v5584 = vpack.c.b16 %v5553, %v5552
        %v5585 = vpack.c.b16 %v5555, %v5554
        %v5586 = vpack.c.b16 %v5557, %v5556
        %v5587 = vpack.c.b16 %v5559, %v5558
        %v5588 = vpack.c.b16 %v5561, %v5560
        %v5589 = vpack.c.b16 %v5563, %v5562
        %v5590 = vpack.c.b16 %v5565, %v5564
        %v5591 = vpack.c.b16 %v5567, %v5566
        %v5592 = vpack.c.b16 %v5569, %v5568
        %v5593 = vpack.c.b16 %v5571, %v5570
        %v5594 = vpack.c.b16 %v5573, %v5572
        %v5595 = vpack.c.b16 %v5575, %v5574
        %v5596 = vpack.c.b16 %v5577, %v5576
        %v5597 = vpack.c.b16 %v5579, %v5578
        %v5598 = vpack.c.b16 %v5581, %v5580
        %v5599 = vpack.c.b16 %v5583, %v5582
        %5616 = vmatprep.subr.bf16.mxu0 0
        %5617 = vmatpush1.bf16.msra.mxu0 %v5584
        %5618 = vmatprep.subr.bf16.mxu0 0
        %5619 = vmatpush1.bf16.msra.mxu0 %v5585
        %5620 = vmatprep.subr.bf16.mxu0 0
        %5621 = vmatpush1.bf16.msra.mxu0 %v5586
        %5622 = vmatprep.subr.bf16.mxu0 0
        %5623 = vmatpush1.bf16.msra.mxu0 %v5587
        %5624 = vmatprep.subr.bf16.mxu0 0
        %5625 = vmatpush1.bf16.msra.mxu0 %v5588
        %5626 = vmatprep.subr.bf16.mxu0 0
        %5627 = vmatpush1.bf16.msra.mxu0 %v5589
        %5628 = vmatprep.subr.bf16.mxu0 0
        %5629 = vmatpush1.bf16.msra.mxu0 %v5590
        %5630 = vmatprep.subr.bf16.mxu0 0
        %5631 = vmatpush1.bf16.msra.mxu0 %v5591
        %5632 = vmatprep.subr.bf16.mxu0 0
        %5633 = vmatpush1.bf16.msra.mxu0 %v5592
        %5634 = vmatprep.subr.bf16.mxu0 0
        %5635 = vmatpush1.bf16.msra.mxu0 %v5593
        %5636 = vmatprep.subr.bf16.mxu0 0
        %5637 = vmatpush1.bf16.msra.mxu0 %v5594
        %5638 = vmatprep.subr.bf16.mxu0 0
        %5639 = vmatpush1.bf16.msra.mxu0 %v5595
        %5640 = vmatprep.subr.bf16.mxu0 0
        %5641 = vmatpush1.bf16.msra.mxu0 %v5596
        %5642 = vmatprep.subr.bf16.mxu0 0
        %5643 = vmatpush1.bf16.msra.mxu0 %v5597
        %5644 = vmatprep.subr.bf16.mxu0 0
        %5645 = vmatpush1.bf16.msra.mxu0 %v5598
        %5646 = vmatprep.subr.bf16.mxu0 0
        %5647 = vmatpush1.bf16.msra.mxu0 %v5599
        %5648 = vmatprep.mubr.bf16.mxu0 %v5467
        %5649 = vmatmul.mubr.bf16.gmra.mrb[0].mxu0 %v5451
        %v5650 = vpop.f32.mrb[0].mxu0
        %v5651 = vadd.f32 %v5519, %v5650
        %v5652 = vpop.f32.mrb[0].mxu0
        %v5653 = vpop.f32.mrb[0].mxu0
        %v5654 = vadd.f32 %v5519, %v5653
        %v5655 = vpop.f32.mrb[0].mxu0
        %5656 = vmatprep.mubr.bf16.mxu0 %v5468
        %5657 = vmatmul.mubr.bf16.gmra.mrb[0].mxu0 %v5452
        %v5658 = vpop.f32.mrb[0].mxu0
        %v5659 = vadd.f32 %v5519, %v5658
        %v5660 = vpop.f32.mrb[0].mxu0
        %v5661 = vpop.f32.mrb[0].mxu0
        %v5662 = vadd.f32 %v5519, %v5661
        %v5663 = vpop.f32.mrb[0].mxu0
        %5664 = vmatprep.mubr.bf16.mxu0 %v5469
        %5665 = vmatmul.mubr.bf16.gmra.mrb[0].mxu0 %v5453
        %v5666 = vpop.f32.mrb[0].mxu0
        %v5667 = vadd.f32 %v5519, %v5666
        %v5668 = vpop.f32.mrb[0].mxu0
        %v5669 = vpop.f32.mrb[0].mxu0
        %v5670 = vadd.f32 %v5519, %v5669
        %v5671 = vpop.f32.mrb[0].mxu0
        %5672 = vmatprep.mubr.bf16.mxu0 %v5470
        %5673 = vmatmul.mubr.bf16.gmra.mrb[0].mxu0 %v5454
        %v5674 = vpop.f32.mrb[0].mxu0
        %v5675 = vadd.f32 %v5519, %v5674
        %v5676 = vpop.f32.mrb[0].mxu0
        %v5677 = vpop.f32.mrb[0].mxu0
        %v5678 = vadd.f32 %v5519, %v5677
        %v5679 = vpop.f32.mrb[0].mxu0
        %5680 = vmatprep.mubr.bf16.mxu0 %v5471
        %5681 = vmatmul.mubr.bf16.gmra.mrb[0].mxu0 %v5455
        %v5682 = vpop.f32.mrb[0].mxu0
        %v5683 = vadd.f32 %v5519, %v5682
        %v5684 = vpop.f32.mrb[0].mxu0
        %v5685 = vpop.f32.mrb[0].mxu0
        %v5686 = vadd.f32 %v5519, %v5685
        %v5687 = vpop.f32.mrb[0].mxu0
        %5688 = vmatprep.mubr.bf16.mxu0 %v5472
        %5689 = vmatmul.mubr.bf16.gmra.mrb[0].mxu0 %v5456
        %v5690 = vpop.f32.mrb[0].mxu0
        %v5691 = vadd.f32 %v5519, %v5690
        %v5692 = vpop.f32.mrb[0].mxu0
        %v5693 = vpop.f32.mrb[0].mxu0
        %v5694 = vadd.f32 %v5519, %v5693
        %v5695 = vpop.f32.mrb[0].mxu0
        %5696 = vmatprep.mubr.bf16.mxu0 %v5473
        %5697 = vmatmul.mubr.bf16.gmra.mrb[0].mxu0 %v5457
        %v5698 = vpop.f32.mrb[0].mxu0
        %v5699 = vadd.f32 %v5519, %v5698
        %v5700 = vpop.f32.mrb[0].mxu0
        %v5701 = vpop.f32.mrb[0].mxu0
        %v5702 = vadd.f32 %v5519, %v5701
        %v5703 = vpop.f32.mrb[0].mxu0
        %5704 = vmatprep.mubr.bf16.mxu0 %v5474
        %5705 = vmatmul.mubr.bf16.gmra.mrb[0].mxu0 %v5458
        %v5706 = vpop.f32.mrb[0].mxu0
        %v5707 = vadd.f32 %v5519, %v5706
        %v5708 = vpop.f32.mrb[0].mxu0
        %v5709 = vpop.f32.mrb[0].mxu0
        %v5710 = vadd.f32 %v5519, %v5709
        %v5711 = vpop.f32.mrb[0].mxu0
        %5712 = vmatprep.mubr.bf16.mxu0 %v5475
        %5713 = vmatmul.mubr.bf16.gmra.mrb[0].mxu0 %v5459
        %v5714 = vpop.f32.mrb[0].mxu0
        %v5715 = vadd.f32 %v5519, %v5714
        %v5716 = vpop.f32.mrb[0].mxu0
        %v5717 = vpop.f32.mrb[0].mxu0
        %v5718 = vadd.f32 %v5519, %v5717
        %v5719 = vpop.f32.mrb[0].mxu0
        %5720 = vmatprep.mubr.bf16.mxu0 %v5476
        %5721 = vmatmul.mubr.bf16.gmra.mrb[0].mxu0 %v5460
        %v5722 = vpop.f32.mrb[0].mxu0
        %v5723 = vadd.f32 %v5519, %v5722
        %v5724 = vpop.f32.mrb[0].mxu0
        %v5725 = vpop.f32.mrb[0].mxu0
        %v5726 = vadd.f32 %v5519, %v5725
        %v5727 = vpop.f32.mrb[0].mxu0
        %5728 = vmatprep.mubr.bf16.mxu0 %v5477
        %5729 = vmatmul.mubr.bf16.gmra.mrb[0].mxu0 %v5461
        %v5730 = vpop.f32.mrb[0].mxu0
        %v5731 = vadd.f32 %v5519, %v5730
        %v5732 = vpop.f32.mrb[0].mxu0
        %v5733 = vpop.f32.mrb[0].mxu0
        %v5734 = vadd.f32 %v5519, %v5733
        %v5735 = vpop.f32.mrb[0].mxu0
        %5736 = vmatprep.mubr.bf16.mxu0 %v5478
        %5737 = vmatmul.mubr.bf16.gmra.mrb[0].mxu0 %v5462
        %v5738 = vpop.f32.mrb[0].mxu0
        %v5739 = vadd.f32 %v5519, %v5738
        %v5740 = vpop.f32.mrb[0].mxu0
        %v5741 = vpop.f32.mrb[0].mxu0
        %v5742 = vadd.f32 %v5519, %v5741
        %v5743 = vpop.f32.mrb[0].mxu0
        %5744 = vmatprep.mubr.bf16.mxu0 %v5479
        %5745 = vmatmul.mubr.bf16.gmra.mrb[0].mxu0 %v5463
        %v5746 = vpop.f32.mrb[0].mxu0
        %v5747 = vadd.f32 %v5519, %v5746
        %v5748 = vpop.f32.mrb[0].mxu0
        %v5749 = vpop.f32.mrb[0].mxu0
        %v5750 = vadd.f32 %v5519, %v5749
        %v5751 = vpop.f32.mrb[0].mxu0
        %5752 = vmatprep.mubr.bf16.mxu0 %v5480
        %5753 = vmatmul.mubr.bf16.gmra.mrb[0].mxu0 %v5464
        %v5754 = vpop.f32.mrb[0].mxu0
        %v5755 = vadd.f32 %v5519, %v5754
        %v5756 = vpop.f32.mrb[0].mxu0
        %v5757 = vpop.f32.mrb[0].mxu0
        %v5758 = vadd.f32 %v5519, %v5757
        %v5759 = vpop.f32.mrb[0].mxu0
        %5760 = vmatprep.mubr.bf16.mxu0 %v5481
        %5761 = vmatmul.mubr.bf16.gmra.mrb[0].mxu0 %v5465
        %v5762 = vpop.f32.mrb[0].mxu0
        %v5763 = vadd.f32 %v5519, %v5762
        %v5764 = vpop.f32.mrb[0].mxu0
        %v5765 = vpop.f32.mrb[0].mxu0
        %v5766 = vadd.f32 %v5519, %v5765
        %v5767 = vpop.f32.mrb[0].mxu0
        %5768 = vmatprep.mubr.bf16.mxu0 %v5482
        %5769 = vmatmul.mubr.bf16.gmra.mrb[0].mxu0 %v5466
        %v5770 = vpop.f32.mrb[0].mxu0
        %v5771 = vadd.f32 %v5519, %v5770
        %v5772 = vpop.f32.mrb[0].mxu0
        %v5773 = vpop.f32.mrb[0].mxu0
        %v5774 = vadd.f32 %v5519, %v5773
        %v5775 = vpop.f32.mrb[0].mxu0
        %5776 = vdwg.mxu0
        %v5777 = vmin.f32 %v5651, 20.0
        %v5778 = vmin.f32 %v5654, 20.0
        %v5779 = vmin.f32 %v5659, 20.0
        %v5780 = vmin.f32 %v5662, 20.0
        %v5781 = vmin.f32 %v5667, 20.0
        %v5782 = vmin.f32 %v5670, 20.0
        %v5783 = vmin.f32 %v5675, 20.0
        %v5784 = vmin.f32 %v5678, 20.0
        %v5785 = vmin.f32 %v5683, 20.0
        %v5786 = vmin.f32 %v5686, 20.0
        %v5787 = vmin.f32 %v5691, 20.0
        %v5788 = vmin.f32 %v5694, 20.0
        %v5789 = vmin.f32 %v5699, 20.0
        %v5790 = vmin.f32 %v5702, 20.0
        %v5791 = vmin.f32 %v5707, 20.0
        %v5792 = vmin.f32 %v5710, 20.0
        %v5793 = vmin.f32 %v5715, 20.0
        %v5794 = vmin.f32 %v5718, 20.0
        %v5795 = vmin.f32 %v5723, 20.0
        %v5796 = vmin.f32 %v5726, 20.0
        %v5797 = vmin.f32 %v5731, 20.0
        %v5798 = vmin.f32 %v5734, 20.0
        %v5799 = vmin.f32 %v5739, 20.0
        %v5800 = vmin.f32 %v5742, 20.0
        %v5801 = vmin.f32 %v5747, 20.0
        %v5802 = vmin.f32 %v5750, 20.0
        %v5803 = vmin.f32 %v5755, 20.0
        %v5804 = vmin.f32 %v5758, 20.0
        %v5805 = vmin.f32 %v5763, 20.0
        %v5806 = vmin.f32 %v5766, 20.0
        %v5807 = vmin.f32 %v5771, 20.0
        %v5808 = vmin.f32 %v5774, 20.0
        %v5809 = vmul.f32 %v5777, 1.442695
        %v5810 = vpow.pop %v5809
        %v5811 = vmul.f32 %v5778, 1.442695
        %v5812 = vpow.pop %v5811
        %v5813 = vmul.f32 %v5779, 1.442695
        %v5814 = vpow.pop %v5813
        %v5815 = vmul.f32 %v5780, 1.442695
        %v5816 = vpow.pop %v5815
        %v5817 = vmul.f32 %v5781, 1.442695
        %v5818 = vpow.pop %v5817
        %v5819 = vmul.f32 %v5782, 1.442695
        %v5820 = vpow.pop %v5819
        %v5821 = vmul.f32 %v5783, 1.442695
        %v5822 = vpow.pop %v5821
        %v5823 = vmul.f32 %v5784, 1.442695
        %v5824 = vpow.pop %v5823
        %v5825 = vmul.f32 %v5785, 1.442695
        %v5826 = vpow.pop %v5825
        %v5827 = vmul.f32 %v5786, 1.442695
        %v5828 = vpow.pop %v5827
        %v5829 = vmul.f32 %v5787, 1.442695
        %v5830 = vpow.pop %v5829
        %v5831 = vmul.f32 %v5788, 1.442695
        %v5832 = vpow.pop %v5831
        %v5833 = vmul.f32 %v5789, 1.442695
        %v5834 = vpow.pop %v5833
        %v5835 = vmul.f32 %v5790, 1.442695
        %v5836 = vpow.pop %v5835
        %v5837 = vmul.f32 %v5791, 1.442695
        %v5838 = vpow.pop %v5837
        %v5839 = vmul.f32 %v5792, 1.442695
        %v5840 = vpow.pop %v5839
        %v5841 = vmul.f32 %v5793, 1.442695
        %v5842 = vpow.pop %v5841
        %v5843 = vmul.f32 %v5794, 1.442695
        %v5844 = vpow.pop %v5843
        %v5845 = vmul.f32 %v5795, 1.442695
        %v5846 = vpow.pop %v5845
        %v5847 = vmul.f32 %v5796, 1.442695
        %v5848 = vpow.pop %v5847
        %v5849 = vmul.f32 %v5797, 1.442695
        %v5850 = vpow.pop %v5849
        %v5851 = vmul.f32 %v5798, 1.442695
        %v5852 = vpow.pop %v5851
        %v5853 = vmul.f32 %v5799, 1.442695
        %v5854 = vpow.pop %v5853
        %v5855 = vmul.f32 %v5800, 1.442695
        %v5856 = vpow.pop %v5855
        %v5857 = vmul.f32 %v5801, 1.442695
        %v5858 = vpow.pop %v5857
        %v5859 = vmul.f32 %v5802, 1.442695
        %v5860 = vpow.pop %v5859
        %v5861 = vmul.f32 %v5803, 1.442695
        %v5862 = vpow.pop %v5861
        %v5863 = vmul.f32 %v5804, 1.442695
        %v5864 = vpow.pop %v5863
        %v5865 = vmul.f32 %v5805, 1.442695
        %v5866 = vpow.pop %v5865
        %v5867 = vmul.f32 %v5806, 1.442695
        %v5868 = vpow.pop %v5867
        %v5869 = vmul.f32 %v5807, 1.442695
        %v5870 = vpow.pop %v5869
        %v5871 = vmul.f32 %v5808, 1.442695
        %v5872 = vpow.pop %v5871
        %v5873 = vadd.f32 %v5810, 2.0
        %v5874 = vadd.f32 %v5812, 2.0
        %v5875 = vadd.f32 %v5814, 2.0
        %v5876 = vadd.f32 %v5816, 2.0
        %v5877 = vadd.f32 %v5818, 2.0
        %v5878 = vadd.f32 %v5820, 2.0
        %v5879 = vadd.f32 %v5822, 2.0
        %v5880 = vadd.f32 %v5824, 2.0
        %v5881 = vadd.f32 %v5826, 2.0
        %v5882 = vadd.f32 %v5828, 2.0
        %v5883 = vadd.f32 %v5830, 2.0
        %v5884 = vadd.f32 %v5832, 2.0
        %v5885 = vadd.f32 %v5834, 2.0
        %v5886 = vadd.f32 %v5836, 2.0
        %v5887 = vadd.f32 %v5838, 2.0
        %v5888 = vadd.f32 %v5840, 2.0
        %v5889 = vadd.f32 %v5842, 2.0
        %v5890 = vadd.f32 %v5844, 2.0
        %v5891 = vadd.f32 %v5846, 2.0
        %v5892 = vadd.f32 %v5848, 2.0
        %v5893 = vadd.f32 %v5850, 2.0
        %v5894 = vadd.f32 %v5852, 2.0
        %v5895 = vadd.f32 %v5854, 2.0
        %v5896 = vadd.f32 %v5856, 2.0
        %v5897 = vadd.f32 %v5858, 2.0
        %v5898 = vadd.f32 %v5860, 2.0
        %v5899 = vadd.f32 %v5862, 2.0
        %v5900 = vadd.f32 %v5864, 2.0
        %v5901 = vadd.f32 %v5866, 2.0
        %v5902 = vadd.f32 %v5868, 2.0
        %v5903 = vadd.f32 %v5870, 2.0
        %v5904 = vadd.f32 %v5872, 2.0
        %v5905 = vmul.f32 %v5810, %v5873
        %v5906 = vmul.f32 %v5812, %v5874
        %v5907 = vmul.f32 %v5814, %v5875
        %v5908 = vmul.f32 %v5816, %v5876
        %v5909 = vmul.f32 %v5818, %v5877
        %v5910 = vmul.f32 %v5820, %v5878
        %v5911 = vmul.f32 %v5822, %v5879
        %v5912 = vmul.f32 %v5824, %v5880
        %v5913 = vmul.f32 %v5826, %v5881
        %v5914 = vmul.f32 %v5828, %v5882
        %v5915 = vmul.f32 %v5830, %v5883
        %v5916 = vmul.f32 %v5832, %v5884
        %v5917 = vmul.f32 %v5834, %v5885
        %v5918 = vmul.f32 %v5836, %v5886
        %v5919 = vmul.f32 %v5838, %v5887
        %v5920 = vmul.f32 %v5840, %v5888
        %v5921 = vmul.f32 %v5842, %v5889
        %v5922 = vmul.f32 %v5844, %v5890
        %v5923 = vmul.f32 %v5846, %v5891
        %v5924 = vmul.f32 %v5848, %v5892
        %v5925 = vmul.f32 %v5850, %v5893
        %v5926 = vmul.f32 %v5852, %v5894
        %v5927 = vmul.f32 %v5854, %v5895
        %v5928 = vmul.f32 %v5856, %v5896
        %v5929 = vmul.f32 %v5858, %v5897
        %v5930 = vmul.f32 %v5860, %v5898
        %v5931 = vmul.f32 %v5862, %v5899
        %v5932 = vmul.f32 %v5864, %v5900
        %v5933 = vmul.f32 %v5866, %v5901
        %v5934 = vmul.f32 %v5868, %v5902
        %v5935 = vmul.f32 %v5870, %v5903
        %v5936 = vmul.f32 %v5872, %v5904
        %v5937 = vmul.f32 %v5651, %v5905
        %v5938 = vmul.f32 %v5654, %v5906
        %v5939 = vmul.f32 %v5659, %v5907
        %v5940 = vmul.f32 %v5662, %v5908
        %v5941 = vmul.f32 %v5667, %v5909
        %v5942 = vmul.f32 %v5670, %v5910
        %v5943 = vmul.f32 %v5675, %v5911
        %v5944 = vmul.f32 %v5678, %v5912
        %v5945 = vmul.f32 %v5683, %v5913
        %v5946 = vmul.f32 %v5686, %v5914
        %v5947 = vmul.f32 %v5691, %v5915
        %v5948 = vmul.f32 %v5694, %v5916
        %v5949 = vmul.f32 %v5699, %v5917
        %v5950 = vmul.f32 %v5702, %v5918
        %v5951 = vmul.f32 %v5707, %v5919
        %v5952 = vmul.f32 %v5710, %v5920
        %v5953 = vmul.f32 %v5715, %v5921
        %v5954 = vmul.f32 %v5718, %v5922
        %v5955 = vmul.f32 %v5723, %v5923
        %v5956 = vmul.f32 %v5726, %v5924
        %v5957 = vmul.f32 %v5731, %v5925
        %v5958 = vmul.f32 %v5734, %v5926
        %v5959 = vmul.f32 %v5739, %v5927
        %v5960 = vmul.f32 %v5742, %v5928
        %v5961 = vmul.f32 %v5747, %v5929
        %v5962 = vmul.f32 %v5750, %v5930
        %v5963 = vmul.f32 %v5755, %v5931
        %v5964 = vmul.f32 %v5758, %v5932
        %v5965 = vmul.f32 %v5763, %v5933
        %v5966 = vmul.f32 %v5766, %v5934
        %v5967 = vmul.f32 %v5771, %v5935
        %v5968 = vmul.f32 %v5774, %v5936
        %v5969 = vadd.f32 %v5905, 2.0
        %v5970 = vadd.f32 %v5906, 2.0
        %v5971 = vadd.f32 %v5907, 2.0
        %v5972 = vadd.f32 %v5908, 2.0
        %v5973 = vadd.f32 %v5909, 2.0
        %v5974 = vadd.f32 %v5910, 2.0
        %v5975 = vadd.f32 %v5911, 2.0
        %v5976 = vadd.f32 %v5912, 2.0
        %v5977 = vadd.f32 %v5913, 2.0
        %v5978 = vadd.f32 %v5914, 2.0
        %v5979 = vadd.f32 %v5915, 2.0
        %v5980 = vadd.f32 %v5916, 2.0
        %v5981 = vadd.f32 %v5917, 2.0
        %v5982 = vadd.f32 %v5918, 2.0
        %v5983 = vadd.f32 %v5919, 2.0
        %v5984 = vadd.f32 %v5920, 2.0
        %v5985 = vadd.f32 %v5921, 2.0
        %v5986 = vadd.f32 %v5922, 2.0
        %v5987 = vadd.f32 %v5923, 2.0
        %v5988 = vadd.f32 %v5924, 2.0
        %v5989 = vadd.f32 %v5925, 2.0
        %v5990 = vadd.f32 %v5926, 2.0
        %v5991 = vadd.f32 %v5927, 2.0
        %v5992 = vadd.f32 %v5928, 2.0
        %v5993 = vadd.f32 %v5929, 2.0
        %v5994 = vadd.f32 %v5930, 2.0
        %v5995 = vadd.f32 %v5931, 2.0
        %v5996 = vadd.f32 %v5932, 2.0
        %v5997 = vadd.f32 %v5933, 2.0
        %v5998 = vadd.f32 %v5934, 2.0
        %v5999 = vadd.f32 %v5935, 2.0
        %v6000 = vadd.f32 %v5936, 2.0
        %v6001 = vrcp.pop %v5969
        %v6002 = vrcp.pop %v5970
        %v6003 = vrcp.pop %v5971
        %v6004 = vrcp.pop %v5972
        %v6005 = vrcp.pop %v5973
        %v6006 = vrcp.pop %v5974
        %v6007 = vrcp.pop %v5975
        %v6008 = vrcp.pop %v5976
        %v6009 = vrcp.pop %v5977
        %v6010 = vrcp.pop %v5978
        %v6011 = vrcp.pop %v5979
        %v6012 = vrcp.pop %v5980
        %v6013 = vrcp.pop %v5981
        %v6014 = vrcp.pop %v5982
        %v6015 = vrcp.pop %v5983
        %v6016 = vrcp.pop %v5984
        %v6017 = vrcp.pop %v5985
        %v6018 = vrcp.pop %v5986
        %v6019 = vrcp.pop %v5987
        %v6020 = vrcp.pop %v5988
        %v6021 = vrcp.pop %v5989
        %v6022 = vrcp.pop %v5990
        %v6023 = vrcp.pop %v5991
        %v6024 = vrcp.pop %v5992
        %v6025 = vrcp.pop %v5993
        %v6026 = vrcp.pop %v5994
        %v6027 = vrcp.pop %v5995
        %v6028 = vrcp.pop %v5996
        %v6029 = vrcp.pop %v5997
        %v6030 = vrcp.pop %v5998
        %v6031 = vrcp.pop %v5999
        %v6032 = vrcp.pop %v6000
        %v6033 = vmul.f32 %v5937, %v6001
        %v6034 = vmul.f32 %v5938, %v6002
        %v6035 = vmul.f32 %v5939, %v6003
        %v6036 = vmul.f32 %v5940, %v6004
        %v6037 = vmul.f32 %v5941, %v6005
        %v6038 = vmul.f32 %v5942, %v6006
        %v6039 = vmul.f32 %v5943, %v6007
        %v6040 = vmul.f32 %v5944, %v6008
        %v6041 = vmul.f32 %v5945, %v6009
        %v6042 = vmul.f32 %v5946, %v6010
        %v6043 = vmul.f32 %v5947, %v6011
        %v6044 = vmul.f32 %v5948, %v6012
        %v6045 = vmul.f32 %v5949, %v6013
        %v6046 = vmul.f32 %v5950, %v6014
        %v6047 = vmul.f32 %v5951, %v6015
        %v6048 = vmul.f32 %v5952, %v6016
        %v6049 = vmul.f32 %v5953, %v6017
        %v6050 = vmul.f32 %v5954, %v6018
        %v6051 = vmul.f32 %v5955, %v6019
        %v6052 = vmul.f32 %v5956, %v6020
        %v6053 = vmul.f32 %v5957, %v6021
        %v6054 = vmul.f32 %v5958, %v6022
        %v6055 = vmul.f32 %v5959, %v6023
        %v6056 = vmul.f32 %v5960, %v6024
        %v6057 = vmul.f32 %v5961, %v6025
        %v6058 = vmul.f32 %v5962, %v6026
        %v6059 = vmul.f32 %v5963, %v6027
        %v6060 = vmul.f32 %v5964, %v6028
        %v6061 = vmul.f32 %v5965, %v6029
        %v6062 = vmul.f32 %v5966, %v6030
        %v6063 = vmul.f32 %v5967, %v6031
        %v6064 = vmul.f32 %v5968, %v6032
        %6065 = vst [vmem:[%s381] sm:$0xff] %v6033
        %6066 = vst [vmem:[%s381 + $0x8] sm:$0xff] %v6034
        %6067 = vst [vmem:[%s381 + $0x10] sm:$0xff] %v6035
        %6068 = vst [vmem:[%s381 + $0x18] sm:$0xff] %v6036
        %6069 = vst [vmem:[%s381 + $0x20] sm:$0xff] %v6037
        %6070 = vst [vmem:[%s381 + $0x28] sm:$0xff] %v6038
        %6071 = vst [vmem:[%s381 + $0x30] sm:$0xff] %v6039
        %6072 = vst [vmem:[%s381 + $0x38] sm:$0xff] %v6040
        %6073 = vst [vmem:[%s381 + $0x40] sm:$0xff] %v6041
        %6074 = vst [vmem:[%s381 + $0x48] sm:$0xff] %v6042
        %6075 = vst [vmem:[%s381 + $0x50] sm:$0xff] %v6043
        %6076 = vst [vmem:[%s381 + $0x58] sm:$0xff] %v6044
        %6077 = vst [vmem:[%s381 + $0x60] sm:$0xff] %v6045
        %6078 = vst [vmem:[%s381 + $0x68] sm:$0xff] %v6046
        %6079 = vst [vmem:[%s381 + $0x70] sm:$0xff] %v6047
        %6080 = vst [vmem:[%s381 + $0x78] sm:$0xff] %v6048
        %6081 = vst [vmem:[%s381 + $0x80] sm:$0xff] %v6049
        %6082 = vst [vmem:[%s381 + $0x88] sm:$0xff] %v6050
        %6083 = vst [vmem:[%s381 + $0x90] sm:$0xff] %v6051
        %6084 = vst [vmem:[%s381 + $0x98] sm:$0xff] %v6052
        %6085 = vst [vmem:[%s381 + $0xa0] sm:$0xff] %v6053
        %6086 = vst [vmem:[%s381 + $0xa8] sm:$0xff] %v6054
        %6087 = vst [vmem:[%s381 + $0xb0] sm:$0xff] %v6055
        %6088 = vst [vmem:[%s381 + $0xb8] sm:$0xff] %v6056
        %6089 = vst [vmem:[%s381 + $0xc0] sm:$0xff] %v6057
        %6090 = vst [vmem:[%s381 + $0xc8] sm:$0xff] %v6058
        %6091 = vst [vmem:[%s381 + $0xd0] sm:$0xff] %v6059
        %6092 = vst [vmem:[%s381 + $0xd8] sm:$0xff] %v6060
        %6093 = vst [vmem:[%s381 + $0xe0] sm:$0xff] %v6061
        %6094 = vst [vmem:[%s381 + $0xe8] sm:$0xff] %v6062
        %6095 = vst [vmem:[%s381 + $0xf0] sm:$0xff] %v6063
        %6096 = vst [vmem:[%s381 + $0xf8] sm:$0xff] %v6064
        %s6097 = sand.u32 %s187, 1
        %s6098 = scalar_lea.sflag [#allocation4], %s6097
        %s6099 = sand.u32 %s187, 1
        %s6100 = smul.addr %s6099, 256
        %s6101 = scalar_lea.vmem [#allocation14], %s6100
        // Predicated region
        $region77: #{tpu_custom_call.1} parent=47 // pred_check
          %p6102 = pneg %p197
        $region78: #{tpu_custom_call.1} parent=47 // pred_check_branch
          %6104 = sbr.rel (%p6102) target = $region80
        $region79: #{tpu_custom_call.1} parent=47 // pred_region
          %s6106 = ssub.s32 4096, 4096
          %6107 = vsyncadd %s6098, %s6106
          %s6108 = smul.addr %s27, 32
          %s6109 = smul.addr %s6108, 128
          %s6110 = scalar_lea.hbm %s7, %s6109
          %s6111 = sshll.u32 %s6101, 4
          %s6112 = int_to_ptr.vmem [resolvable:$true] %s6111
          %6117 = dma.vmem_to_hbm [thread:$0]  %s6112, 4096, %s6110, %s6098, 128, 128, 8
        $region80: #{tpu_custom_call.1} parent=47 // pred_fallthru
          _
      $region48: #{tpu_custom_call.1} parent=5 // pred_fallthru
        _
      %p6118 = scmp.le.s32.totalorder 2, %s22
      // Predicated region
      $region81: #{tpu_custom_call.1} parent=5 // pred_check
        %p6119 = pneg %p6118
      $region82: #{tpu_custom_call.1} parent=5 // pred_check_branch
        %6121 = sbr.rel (%p6119) target = $region84
      $region83: #{tpu_custom_call.1} parent=5 // pred_region
        %s6122 = ssub.s32 %s22, 2
        // Predicated region
        $region85: #{tpu_custom_call.1} parent=83 // pred_check
          %p6123 = pneg %p203
        $region86: #{tpu_custom_call.1} parent=83 // pred_check_branch
          %6125 = sbr.rel (%p6123) target = $region88
        $region87: #{tpu_custom_call.1} parent=83 // pred_region
          %s6126 = sand.u32 %s188, 1
          %s6127 = scalar_lea.sflag [#allocation4], %s6126
          %s6128 = sand.u32 %s188, 1
          %s6129 = smul.addr %s6128, 256
          %s6130 = scalar_lea.vmem [#allocation14], %s6129
          %6131 = dma.done %s6127, 4096
        $region88: #{tpu_custom_call.1} parent=83 // pred_fallthru
          _
      $region84: #{tpu_custom_call.1} parent=5 // pred_fallthru
        _
    $region6: #{tpu_custom_call.1} parent=1 // loop_footer
      %s26 = sadd.s32 1, %s22
    $region7: #{tpu_custom_call.1} parent=1 // loop_footer_branch
      %21 = sbr.rel target = $region3
    $region8: #{tpu_custom_call.1} parent=1 // loop_exit
      _
    %6132 = vsyncpa [#allocation3], 1
    %s6133 = scalar_lea.sflag [#allocation3], 1
    %6134 = vsyncpa %s6133, 1
    %6135 = vsyncpa [#allocation6], 1
    %6136 = vsyncpa [#allocation9], 1
    %6137 = vsyncpa [#allocation12], 1
    %6138 = vsyncpa [#allocation4], 1
    %s6139 = scalar_lea.sflag [#allocation4], 1
    %6140 = vsyncpa %s6139, 1

</llo_original>
